<compile_context>
chip_gen: v7x
topology: tpu7x:2x2x1
jax: 0.10.0
libtpu: 0.0.40
codegen_flags: <defaults>
</compile_context>

<pallas_src>
import functools

import jax
import jax.numpy as jnp
from jax.experimental import pallas as pl
from jax.experimental.pallas import tpu as pltpu


# ----------------------------------------------------------------------------
# Fused conv kernel:  out[Cout, HW] = act( IN( W @ A + bias ) )
# ----------------------------------------------------------------------------
def _make_conv_kernel(apply_norm, act):
    def kernel(a_ref, w_ref, b_ref, o_ref):
        # a_ref: [K, HW] bf16, w_ref: [Cout, K] bf16, b_ref: [Cout, 1] f32
        acc = jnp.dot(w_ref[...], a_ref[...],
                      preferred_element_type=jnp.float32)
        acc = acc + b_ref[...]
        if apply_norm:
            m = jnp.mean(acc, axis=-1, keepdims=True)
            v = jnp.mean((acc - m) * (acc - m), axis=-1, keepdims=True)
            acc = (acc - m) * jax.lax.rsqrt(v + 1e-5)
        if act == "relu":
            acc = jnp.maximum(acc, 0.0)
        elif act == "tanh":
            acc = jnp.tanh(acc)
        o_ref[...] = acc
    return kernel


def fused_conv_in_act(A, Wm, bias, apply_norm, act):
    """A: [B, K, HW] bf16, Wm: [Cout, K] bf16, bias: [Cout, 1] f32.

    Returns [B, Cout, HW] f32 (lane-dense on HW)."""
    B, K, HW = A.shape
    Cout = Wm.shape[0]
    kernel = _make_conv_kernel(apply_norm, act)
    return pl.pallas_call(
        kernel,
        out_shape=jax.ShapeDtypeStruct((B, Cout, HW), jnp.float32),
        grid=(B,),
        in_specs=[
            pl.BlockSpec((None, K, HW), lambda i: (i, 0, 0)),
            pl.BlockSpec((Cout, K), lambda i: (0, 0)),
            pl.BlockSpec((Cout, 1), lambda i: (0, 0)),
        ],
        out_specs=pl.BlockSpec((None, Cout, HW), lambda i: (i, 0, 0)),
        compiler_params=pltpu.CompilerParams(
            dimension_semantics=("parallel",)),
    )(A, Wm, bias)


# ----------------------------------------------------------------------------
# Linear (fc) kernel: lane-dense along the output-feature axis
# ----------------------------------------------------------------------------
def _fc_kernel(x_ref, w_ref, b_ref, o_ref):
    o_ref[...] = jnp.dot(x_ref[...], w_ref[...],
                         preferred_element_type=jnp.float32) + b_ref[...]


def linear(x, w, b):
    """x: [M, K], w: [K, N], b: [N] -> [M, N] f32 (matmul in bf16)."""
    x = x.astype(jnp.bfloat16)
    w = w.astype(jnp.bfloat16)
    b = b.astype(jnp.float32)
    M, K = x.shape
    N = w.shape[1]
    tn = 128 if (N % 128 == 0) else N  # split N -> >=2 parallel grid steps
    grid = (N // tn,)
    return pl.pallas_call(
        _fc_kernel,
        out_shape=jax.ShapeDtypeStruct((M, N), jnp.float32),
        grid=grid,
        in_specs=[
            pl.BlockSpec((M, K), lambda j: (0, 0)),
            pl.BlockSpec((K, tn), lambda j: (0, j)),
            pl.BlockSpec((1, tn), lambda j: (0, j)),
        ],
        out_specs=pl.BlockSpec((M, tn), lambda j: (0, j)),
        compiler_params=pltpu.CompilerParams(
            dimension_semantics=("parallel",)),
    )(x, w, b.reshape(1, N))


# ----------------------------------------------------------------------------
# Conv2dBlock: reflect pad -> im2col -> fused (matmul + bias + IN + act)
# ----------------------------------------------------------------------------
def conv2d_block(x, w, b, pad, norm, act):
    """x: [B, Cin, H, W] NCHW, w: [Cout, Cin, kh, kw], b: [Cout]."""
    B, C, H, W = x.shape
    Cout, Cin, kh, kw = w.shape
    assert C == Cin
    x = x.astype(jnp.bfloat16)
    xp = jnp.pad(x, ((0, 0), (0, 0), (pad, pad), (pad, pad)), mode="reflect")
    # im2col in the (K = Cin*kh*kw, HW) layout that matches PyTorch's
    # w.reshape(Cout, Cin*kh*kw) ordering; no transposes needed.
    cols = [xp[:, :, dy:dy + H, dx:dx + W]
            for dy in range(kh) for dx in range(kw)]
    patches = jnp.stack(cols, axis=2)                   # [B, C, kh*kw, H, W]
    A = patches.reshape(B, C * kh * kw, H * W)          # [B, K, HW] bf16
    Wm = w.reshape(Cout, Cin * kh * kw).astype(jnp.bfloat16)
    bm = b.reshape(Cout, 1).astype(jnp.float32)
    out = fused_conv_in_act(A, Wm, bm, apply_norm=(norm == "in"), act=act)
    return out.reshape(B, Cout, H, W)                   # lane-dense -> NCHW free


def upsample_nearest_2x(x):
    return jnp.repeat(jnp.repeat(x, 2, axis=2), 2, axis=3)


# ----------------------------------------------------------------------------
# Decoder forward
# ----------------------------------------------------------------------------
@functools.partial(jax.jit, static_argnames=("height", "width"))
def decoder_forward(x, params, *, height, width):
    b, l, in_dim = x.shape
    W_fc, b_fc = params["fc"]                 # W_fc: [out, in] (PyTorch Linear)
    dim = W_fc.shape[0] // (height * width)

    # fc
    y = linear(x.reshape(b * l, in_dim), W_fc.T, b_fc)   # [b*l, dim*h*w]

    # rearrange 'b l (c w h) -> b c h (l w)'  (h=height, w=width, c=dim)
    y = y.reshape(b, l, dim, width, height)
    y = jnp.transpose(y, (0, 2, 4, 1, 3)).reshape(b, dim, height, l * width)

    # ResBlocks: x + conv3x3/IN/relu -> conv3x3/IN
    for (w1, b1, w2, b2) in params["res"]:
        r = y
        t = conv2d_block(y, w1, b1, pad=1, norm="in", act="relu")
        t = conv2d_block(t, w2, b2, pad=1, norm="in", act="none")
        y = r + t

    # Upsample x2 + Conv2dBlock(dim -> dim//2, 5x5, pad 2, IN, relu)
    for (wu, bu) in params["ups"]:
        y = upsample_nearest_2x(y)
        y = conv2d_block(y, wu, bu, pad=2, norm="in", act="relu")

    # Final Conv2dBlock(dim -> out_dim, 7x7, pad 3, no norm, tanh)
    wf, bf = params["final"]
    y = conv2d_block(y, wf, bf, pad=3, norm="none", act="tanh")
    return y


# ----------------------------------------------------------------------------
# Deterministic parameter init (synthetic weights; no checkpoint loading)
# ----------------------------------------------------------------------------
def init_params(key, ups, n_res, in_dim, dim, out_dim, height, width):
    params = {}
    ks = iter(jax.random.split(key, 4 + 4 * n_res + 2 * ups + 2))

    def dense(k, fan_out, fan_in):
        return jax.random.normal(k, (fan_out, fan_in), jnp.float32) / jnp.sqrt(fan_in)

    def conv(k, cout, cin, kk):
        fan_in = cin * kk * kk
        return jax.random.normal(k, (cout, cin, kk, kk), jnp.float32) / jnp.sqrt(fan_in)

    params["fc"] = (dense(next(ks), dim * height * width, in_dim),
                    0.01 * jax.random.normal(next(ks), (dim * height * width,), jnp.float32))

    res = []
    for _ in range(n_res):
        w1 = conv(next(ks), dim, dim, 3)
        b1 = 0.01 * jax.random.normal(next(ks), (dim,), jnp.float32)
        w2 = conv(next(ks), dim, dim, 3)
        b2 = 0.01 * jax.random.normal(next(ks), (dim,), jnp.float32)
        res.append((w1, b1, w2, b2))
    params["res"] = res

    upsp = []
    d = dim
    for _ in range(ups):
        wu = conv(next(ks), d // 2, d, 5)
        bu = 0.01 * jax.random.normal(next(ks), (d // 2,), jnp.float32)
        upsp.append((wu, bu))
        d = d // 2
    params["ups"] = upsp

    params["final"] = (conv(next(ks), out_dim, d, 7),
                       0.01 * jax.random.normal(next(ks), (out_dim,), jnp.float32))
    return params


if __name__ == "__main__":
    # small, module-consistent configuration
    UPS, N_RES = 2, 1
    IN_DIM, DIM, OUT_DIM = 32, 32, 1
    HEIGHT, WIDTH = 4, 2
    B, L = 2, 4

    key = jax.random.PRNGKey(0)
    kx, kp = jax.random.split(key)
    x = jax.random.normal(kx, (B, L, IN_DIM), jnp.float32)
    params = init_params(kp, UPS, N_RES, IN_DIM, DIM, OUT_DIM, HEIGHT, WIDTH)

    out = decoder_forward(x, params, height=HEIGHT, width=WIDTH)
    out = jax.block_until_ready(out)

    expected_shape = (B, OUT_DIM, HEIGHT * (2 ** UPS), L * WIDTH * (2 ** UPS))
    assert out.shape == expected_shape, (out.shape, expected_shape)
    assert bool(jnp.all(jnp.isfinite(out)))
    assert bool(jnp.all(jnp.abs(out) <= 1.0))  # tanh output range
    print("KERNEL_OK")
</pallas_src>

<mosaic_0001>
module attributes {stable_mosaic.version = 11 : i64} {
  func.func @_fc_kernel(%arg0: i32, %arg1: memref<8x32xbf16, #tpu.memory_space<vmem>>, %arg2: memref<32x128xbf16, #tpu.memory_space<vmem>>, %arg3: memref<1x128xf32, #tpu.memory_space<vmem>>, %arg4: memref<8x128xf32, #tpu.memory_space<vmem>>) attributes {dimension_semantics = [#tpu.dimension_semantics<parallel>], iteration_bounds = array<i64: 2>, scalar_prefetch = 0 : i64, scratch_operands = 0 : i64, tpu.core_type = #tpu.core_type<tc>, window_params = [{pipeline_mode = #tpu.pipeline_mode<synchronous>, transform_indices = @transform_0, window_bounds = array<i64: 8, 32>}, {transform_indices = @transform_1, window_bounds = array<i64: 32, 128>}, {transform_indices = @transform_2, window_bounds = array<i64: 1, 128>}, {transform_indices = @transform_3, window_bounds = array<i64: 8, 128>}]} {
    %c0 = arith.constant 0 : index
    %c0_0 = arith.constant 0 : index
    %0 = vector.load %arg1[%c0, %c0_0] : memref<8x32xbf16, #tpu.memory_space<vmem>>, vector<8x32xbf16>
    %c0_1 = arith.constant 0 : index
    %c0_2 = arith.constant 0 : index
    %1 = vector.load %arg2[%c0_1, %c0_2] : memref<32x128xbf16, #tpu.memory_space<vmem>>, vector<32x128xbf16>
    %cst = arith.constant dense<0.000000e+00> : vector<8x128xf32>
    %2 = tpu.matmul %0, %1, %cst {dimension_numbers = #tpu.dot_dimension_numbers<[1], [0], [0], [1], [0, 0, 1, 1], [], []>} : vector<8x32xbf16>, vector<32x128xbf16>, vector<8x128xf32> -> vector<8x128xf32>
    %c0_3 = arith.constant 0 : index
    %c0_4 = arith.constant 0 : index
    %3 = vector.load %arg3[%c0_3, %c0_4] : memref<1x128xf32, #tpu.memory_space<vmem>>, vector<1x128xf32>
    %4 = vector.broadcast %3 : vector<1x128xf32> to vector<8x128xf32>
    %5 = arith.addf %2, %4 : vector<8x128xf32>
    %c0_5 = arith.constant 0 : index
    %c0_6 = arith.constant 0 : index
    %6 = vector.load %arg4[%c0_5, %c0_6] : memref<8x128xf32, #tpu.memory_space<vmem>>, vector<8x128xf32>
    tpu.vector_store %arg4[%c0_5, %c0_6], %5 {strides = array<i32>} : memref<8x128xf32, #tpu.memory_space<vmem>>, vector<8x128xf32>,
    return
  }
  func.func @transform_0(%arg0: i32) -> (i32, i32) {
    %c0_i32 = arith.constant 0 : i32
    %c0_i32_0 = arith.constant 0 : i32
    %c0_i32_1 = arith.constant 0 : i32
    return %c0_i32, %c0_i32_0 : i32, i32
  }
  func.func @transform_1(%arg0: i32) -> (i32, i32) {
    %c0_i32 = arith.constant 0 : i32
    %c0_i32_0 = arith.constant 0 : i32
    return %c0_i32, %arg0 : i32, i32
  }
  func.func @transform_2(%arg0: i32) -> (i32, i32) {
    %c0_i32 = arith.constant 0 : i32
    %c0_i32_0 = arith.constant 0 : i32
    return %c0_i32, %arg0 : i32, i32
  }
  func.func @transform_3(%arg0: i32) -> (i32, i32) {
    %c0_i32 = arith.constant 0 : i32
    %c0_i32_0 = arith.constant 0 : i32
    return %c0_i32, %arg0 : i32, i32
  }
}

module attributes {stable_mosaic.version = 11 : i64} {
  func.func @kernel(%arg0: i32, %arg1: memref<1x288x32xbf16, #tpu.memory_space<vmem>>, %arg2: memref<32x288xbf16, #tpu.memory_space<vmem>>, %arg3: memref<32x1xf32, #tpu.memory_space<vmem>>, %arg4: memref<1x32x32xf32, #tpu.memory_space<vmem>>) attributes {dimension_semantics = [#tpu.dimension_semantics<parallel>], iteration_bounds = array<i64: 2>, scalar_prefetch = 0 : i64, scratch_operands = 0 : i64, tpu.core_type = #tpu.core_type<tc>, window_params = [{transform_indices = @transform_0, window_bounds = array<i64: 1, 288, 32>}, {pipeline_mode = #tpu.pipeline_mode<synchronous>, transform_indices = @transform_1, window_bounds = array<i64: 32, 288>}, {pipeline_mode = #tpu.pipeline_mode<synchronous>, transform_indices = @transform_2, window_bounds = array<i64: 32, 1>}, {transform_indices = @transform_3, window_bounds = array<i64: 1, 32, 32>}]} {
    %c0 = arith.constant 0 : index
    %c0_0 = arith.constant 0 : index
    %0 = vector.load %arg2[%c0, %c0_0] : memref<32x288xbf16, #tpu.memory_space<vmem>>, vector<32x288xbf16>
    %c0_1 = arith.constant 0 : index
    %c0_2 = arith.constant 0 : index
    %c0_3 = arith.constant 0 : index
    %1 = vector.load %arg1[%c0_1, %c0_2, %c0_3] : memref<1x288x32xbf16, #tpu.memory_space<vmem>>, vector<1x288x32xbf16>
    %2 = vector.shape_cast %1 : vector<1x288x32xbf16> to vector<288x32xbf16>
    %cst = arith.constant dense<0.000000e+00> : vector<32x32xf32>
    %3 = tpu.matmul %0, %2, %cst {dimension_numbers = #tpu.dot_dimension_numbers<[1], [0], [0], [1], [0, 0, 1, 1], [], []>} : vector<32x288xbf16>, vector<288x32xbf16>, vector<32x32xf32> -> vector<32x32xf32>
    %c0_4 = arith.constant 0 : index
    %c0_5 = arith.constant 0 : index
    %4 = vector.load %arg3[%c0_4, %c0_5] : memref<32x1xf32, #tpu.memory_space<vmem>>, vector<32x1xf32>
    %5 = vector.broadcast %4 : vector<32x1xf32> to vector<32x32xf32>
    %6 = arith.addf %3, %5 : vector<32x32xf32>
    %cst_6 = arith.constant dense<0.000000e+00> : vector<32xf32>
    %7 = vector.multi_reduction <add>, %6, %cst_6 [1] : vector<32x32xf32> to vector<32xf32>
    %8 = vector.shape_cast %7 : vector<32xf32> to vector<32x1xf32>
    %cst_7 = arith.constant 3.200000e+01 : f32
    %9 = vector.broadcast %cst_7 : f32 to vector<32x1xf32>
    %10 = arith.divf %8, %9 : vector<32x1xf32>
    %11 = vector.broadcast %10 : vector<32x1xf32> to vector<32x32xf32>
    %12 = arith.subf %6, %11 : vector<32x32xf32>
    %13 = vector.broadcast %10 : vector<32x1xf32> to vector<32x32xf32>
    %14 = arith.subf %6, %13 : vector<32x32xf32>
    %15 = arith.mulf %12, %14 : vector<32x32xf32>
    %cst_8 = arith.constant dense<0.000000e+00> : vector<32xf32>
    %16 = vector.multi_reduction <add>, %15, %cst_8 [1] : vector<32x32xf32> to vector<32xf32>
    %17 = vector.shape_cast %16 : vector<32xf32> to vector<32x1xf32>
    %cst_9 = arith.constant 3.200000e+01 : f32
    %18 = vector.broadcast %cst_9 : f32 to vector<32x1xf32>
    %19 = arith.divf %17, %18 : vector<32x1xf32>
    %20 = vector.broadcast %10 : vector<32x1xf32> to vector<32x32xf32>
    %21 = arith.subf %6, %20 : vector<32x32xf32>
    %cst_10 = arith.constant 9.99999974E-6 : f32
    %22 = vector.broadcast %cst_10 : f32 to vector<32x1xf32>
    %23 = arith.addf %19, %22 : vector<32x1xf32>
    %24 = math.rsqrt %23 : vector<32x1xf32>
    %25 = vector.broadcast %24 : vector<32x1xf32> to vector<32x32xf32>
    %26 = arith.mulf %21, %25 : vector<32x32xf32>
    %cst_11 = arith.constant 0.000000e+00 : f32
    %27 = vector.broadcast %cst_11 : f32 to vector<32x32xf32>
    %28 = arith.maximumf %26, %27 : vector<32x32xf32>
    %c0_12 = arith.constant 0 : index
    %c0_13 = arith.constant 0 : index
    %c0_14 = arith.constant 0 : index
    %29 = vector.load %arg4[%c0_12, %c0_13, %c0_14] : memref<1x32x32xf32, #tpu.memory_space<vmem>>, vector<1x32x32xf32>
    %30 = vector.shape_cast %29 : vector<1x32x32xf32> to vector<32x32xf32>
    %31 = vector.shape_cast %28 : vector<32x32xf32> to vector<1x32x32xf32>
    tpu.vector_store %arg4[%c0_12, %c0_13, %c0_14], %31 {strides = array<i32>} : memref<1x32x32xf32, #tpu.memory_space<vmem>>, vector<1x32x32xf32>,
    return
  }
  func.func @transform_0(%arg0: i32) -> (i32, i32, i32) {
    %c0_i32 = arith.constant 0 : i32
    %c0_i32_0 = arith.constant 0 : i32
    %c0_i32_1 = arith.constant 0 : i32
    return %arg0, %c0_i32, %c0_i32_0 : i32, i32, i32
  }
  func.func @transform_1(%arg0: i32) -> (i32, i32) {
    %c0_i32 = arith.constant 0 : i32
    %c0_i32_0 = arith.constant 0 : i32
    %c0_i32_1 = arith.constant 0 : i32
    return %c0_i32, %c0_i32_0 : i32, i32
  }
  func.func @transform_2(%arg0: i32) -> (i32, i32) {
    %c0_i32 = arith.constant 0 : i32
    %c0_i32_0 = arith.constant 0 : i32
    %c0_i32_1 = arith.constant 0 : i32
    return %c0_i32, %c0_i32_0 : i32, i32
  }
  func.func @transform_3(%arg0: i32) -> (i32, i32, i32) {
    %c0_i32 = arith.constant 0 : i32
    %c0_i32_0 = arith.constant 0 : i32
    %c0_i32_1 = arith.constant 0 : i32
    return %arg0, %c0_i32, %c0_i32_0 : i32, i32, i32
  }
}

module attributes {stable_mosaic.version = 11 : i64} {
  func.func @kernel(%arg0: i32, %arg1: memref<1x288x32xbf16, #tpu.memory_space<vmem>>, %arg2: memref<32x288xbf16, #tpu.memory_space<vmem>>, %arg3: memref<32x1xf32, #tpu.memory_space<vmem>>, %arg4: memref<1x32x32xf32, #tpu.memory_space<vmem>>) attributes {dimension_semantics = [#tpu.dimension_semantics<parallel>], iteration_bounds = array<i64: 2>, scalar_prefetch = 0 : i64, scratch_operands = 0 : i64, tpu.core_type = #tpu.core_type<tc>, window_params = [{transform_indices = @transform_0, window_bounds = array<i64: 1, 288, 32>}, {pipeline_mode = #tpu.pipeline_mode<synchronous>, transform_indices = @transform_1, window_bounds = array<i64: 32, 288>}, {pipeline_mode = #tpu.pipeline_mode<synchronous>, transform_indices = @transform_2, window_bounds = array<i64: 32, 1>}, {transform_indices = @transform_3, window_bounds = array<i64: 1, 32, 32>}]} {
    %c0 = arith.constant 0 : index
    %c0_0 = arith.constant 0 : index
    %0 = vector.load %arg2[%c0, %c0_0] : memref<32x288xbf16, #tpu.memory_space<vmem>>, vector<32x288xbf16>
    %c0_1 = arith.constant 0 : index
    %c0_2 = arith.constant 0 : index
    %c0_3 = arith.constant 0 : index
    %1 = vector.load %arg1[%c0_1, %c0_2, %c0_3] : memref<1x288x32xbf16, #tpu.memory_space<vmem>>, vector<1x288x32xbf16>
    %2 = vector.shape_cast %1 : vector<1x288x32xbf16> to vector<288x32xbf16>
    %cst = arith.constant dense<0.000000e+00> : vector<32x32xf32>
    %3 = tpu.matmul %0, %2, %cst {dimension_numbers = #tpu.dot_dimension_numbers<[1], [0], [0], [1], [0, 0, 1, 1], [], []>} : vector<32x288xbf16>, vector<288x32xbf16>, vector<32x32xf32> -> vector<32x32xf32>
    %c0_4 = arith.constant 0 : index
    %c0_5 = arith.constant 0 : index
    %4 = vector.load %arg3[%c0_4, %c0_5] : memref<32x1xf32, #tpu.memory_space<vmem>>, vector<32x1xf32>
    %5 = vector.broadcast %4 : vector<32x1xf32> to vector<32x32xf32>
    %6 = arith.addf %3, %5 : vector<32x32xf32>
    %cst_6 = arith.constant dense<0.000000e+00> : vector<32xf32>
    %7 = vector.multi_reduction <add>, %6, %cst_6 [1] : vector<32x32xf32> to vector<32xf32>
    %8 = vector.shape_cast %7 : vector<32xf32> to vector<32x1xf32>
    %cst_7 = arith.constant 3.200000e+01 : f32
    %9 = vector.broadcast %cst_7 : f32 to vector<32x1xf32>
    %10 = arith.divf %8, %9 : vector<32x1xf32>
    %11 = vector.broadcast %10 : vector<32x1xf32> to vector<32x32xf32>
    %12 = arith.subf %6, %11 : vector<32x32xf32>
    %13 = vector.broadcast %10 : vector<32x1xf32> to vector<32x32xf32>
    %14 = arith.subf %6, %13 : vector<32x32xf32>
    %15 = arith.mulf %12, %14 : vector<32x32xf32>
    %cst_8 = arith.constant dense<0.000000e+00> : vector<32xf32>
    %16 = vector.multi_reduction <add>, %15, %cst_8 [1] : vector<32x32xf32> to vector<32xf32>
    %17 = vector.shape_cast %16 : vector<32xf32> to vector<32x1xf32>
    %cst_9 = arith.constant 3.200000e+01 : f32
    %18 = vector.broadcast %cst_9 : f32 to vector<32x1xf32>
    %19 = arith.divf %17, %18 : vector<32x1xf32>
    %20 = vector.broadcast %10 : vector<32x1xf32> to vector<32x32xf32>
    %21 = arith.subf %6, %20 : vector<32x32xf32>
    %cst_10 = arith.constant 9.99999974E-6 : f32
    %22 = vector.broadcast %cst_10 : f32 to vector<32x1xf32>
    %23 = arith.addf %19, %22 : vector<32x1xf32>
    %24 = math.rsqrt %23 : vector<32x1xf32>
    %25 = vector.broadcast %24 : vector<32x1xf32> to vector<32x32xf32>
    %26 = arith.mulf %21, %25 : vector<32x32xf32>
    %c0_11 = arith.constant 0 : index
    %c0_12 = arith.constant 0 : index
    %c0_13 = arith.constant 0 : index
    %27 = vector.load %arg4[%c0_11, %c0_12, %c0_13] : memref<1x32x32xf32, #tpu.memory_space<vmem>>, vector<1x32x32xf32>
    %28 = vector.shape_cast %27 : vector<1x32x32xf32> to vector<32x32xf32>
    %29 = vector.shape_cast %26 : vector<32x32xf32> to vector<1x32x32xf32>
    tpu.vector_store %arg4[%c0_11, %c0_12, %c0_13], %29 {strides = array<i32>} : memref<1x32x32xf32, #tpu.memory_space<vmem>>, vector<1x32x32xf32>,
    return
  }
  func.func @transform_0(%arg0: i32) -> (i32, i32, i32) {
    %c0_i32 = arith.constant 0 : i32
    %c0_i32_0 = arith.constant 0 : i32
    %c0_i32_1 = arith.constant 0 : i32
    return %arg0, %c0_i32, %c0_i32_0 : i32, i32, i32
  }
  func.func @transform_1(%arg0: i32) -> (i32, i32) {
    %c0_i32 = arith.constant 0 : i32
    %c0_i32_0 = arith.constant 0 : i32
    %c0_i32_1 = arith.constant 0 : i32
    return %c0_i32, %c0_i32_0 : i32, i32
  }
  func.func @transform_2(%arg0: i32) -> (i32, i32) {
    %c0_i32 = arith.constant 0 : i32
    %c0_i32_0 = arith.constant 0 : i32
    %c0_i32_1 = arith.constant 0 : i32
    return %c0_i32, %c0_i32_0 : i32, i32
  }
  func.func @transform_3(%arg0: i32) -> (i32, i32, i32) {
    %c0_i32 = arith.constant 0 : i32
    %c0_i32_0 = arith.constant 0 : i32
    %c0_i32_1 = arith.constant 0 : i32
    return %arg0, %c0_i32, %c0_i32_0 : i32, i32, i32
  }
}

module attributes {stable_mosaic.version = 11 : i64} {
  func.func @kernel(%arg0: i32, %arg1: memref<1x800x128xbf16, #tpu.memory_space<vmem>>, %arg2: memref<16x800xbf16, #tpu.memory_space<vmem>>, %arg3: memref<16x1xf32, #tpu.memory_space<vmem>>, %arg4: memref<1x16x128xf32, #tpu.memory_space<vmem>>) attributes {dimension_semantics = [#tpu.dimension_semantics<parallel>], iteration_bounds = array<i64: 2>, scalar_prefetch = 0 : i64, scratch_operands = 0 : i64, tpu.core_type = #tpu.core_type<tc>, window_params = [{transform_indices = @transform_0, window_bounds = array<i64: 1, 800, 128>}, {pipeline_mode = #tpu.pipeline_mode<synchronous>, transform_indices = @transform_1, window_bounds = array<i64: 16, 800>}, {pipeline_mode = #tpu.pipeline_mode<synchronous>, transform_indices = @transform_2, window_bounds = array<i64: 16, 1>}, {transform_indices = @transform_3, window_bounds = array<i64: 1, 16, 128>}]} {
    %c0 = arith.constant 0 : index
    %c0_0 = arith.constant 0 : index
    %0 = vector.load %arg2[%c0, %c0_0] : memref<16x800xbf16, #tpu.memory_space<vmem>>, vector<16x800xbf16>
    %c0_1 = arith.constant 0 : index
    %c0_2 = arith.constant 0 : index
    %c0_3 = arith.constant 0 : index
    %1 = vector.load %arg1[%c0_1, %c0_2, %c0_3] : memref<1x800x128xbf16, #tpu.memory_space<vmem>>, vector<1x800x128xbf16>
    %2 = vector.shape_cast %1 : vector<1x800x128xbf16> to vector<800x128xbf16>
    %cst = arith.constant dense<0.000000e+00> : vector<16x128xf32>
    %3 = tpu.matmul %0, %2, %cst {dimension_numbers = #tpu.dot_dimension_numbers<[1], [0], [0], [1], [0, 0, 1, 1], [], []>} : vector<16x800xbf16>, vector<800x128xbf16>, vector<16x128xf32> -> vector<16x128xf32>
    %c0_4 = arith.constant 0 : index
    %c0_5 = arith.constant 0 : index
    %4 = vector.load %arg3[%c0_4, %c0_5] : memref<16x1xf32, #tpu.memory_space<vmem>>, vector<16x1xf32>
    %5 = vector.broadcast %4 : vector<16x1xf32> to vector<16x128xf32>
    %6 = arith.addf %3, %5 : vector<16x128xf32>
    %cst_6 = arith.constant dense<0.000000e+00> : vector<16xf32>
    %7 = vector.multi_reduction <add>, %6, %cst_6 [1] : vector<16x128xf32> to vector<16xf32>
    %8 = vector.shape_cast %7 : vector<16xf32> to vector<16x1xf32>
    %cst_7 = arith.constant 1.280000e+02 : f32
    %9 = vector.broadcast %cst_7 : f32 to vector<16x1xf32>
    %10 = arith.divf %8, %9 : vector<16x1xf32>
    %11 = vector.broadcast %10 : vector<16x1xf32> to vector<16x128xf32>
    %12 = arith.subf %6, %11 : vector<16x128xf32>
    %13 = vector.broadcast %10 : vector<16x1xf32> to vector<16x128xf32>
    %14 = arith.subf %6, %13 : vector<16x128xf32>
    %15 = arith.mulf %12, %14 : vector<16x128xf32>
    %cst_8 = arith.constant dense<0.000000e+00> : vector<16xf32>
    %16 = vector.multi_reduction <add>, %15, %cst_8 [1] : vector<16x128xf32> to vector<16xf32>
    %17 = vector.shape_cast %16 : vector<16xf32> to vector<16x1xf32>
    %cst_9 = arith.constant 1.280000e+02 : f32
    %18 = vector.broadcast %cst_9 : f32 to vector<16x1xf32>
    %19 = arith.divf %17, %18 : vector<16x1xf32>
    %20 = vector.broadcast %10 : vector<16x1xf32> to vector<16x128xf32>
    %21 = arith.subf %6, %20 : vector<16x128xf32>
    %cst_10 = arith.constant 9.99999974E-6 : f32
    %22 = vector.broadcast %cst_10 : f32 to vector<16x1xf32>
    %23 = arith.addf %19, %22 : vector<16x1xf32>
    %24 = math.rsqrt %23 : vector<16x1xf32>
    %25 = vector.broadcast %24 : vector<16x1xf32> to vector<16x128xf32>
    %26 = arith.mulf %21, %25 : vector<16x128xf32>
    %cst_11 = arith.constant 0.000000e+00 : f32
    %27 = vector.broadcast %cst_11 : f32 to vector<16x128xf32>
    %28 = arith.maximumf %26, %27 : vector<16x128xf32>
    %c0_12 = arith.constant 0 : index
    %c0_13 = arith.constant 0 : index
    %c0_14 = arith.constant 0 : index
    %29 = vector.load %arg4[%c0_12, %c0_13, %c0_14] : memref<1x16x128xf32, #tpu.memory_space<vmem>>, vector<1x16x128xf32>
    %30 = vector.shape_cast %29 : vector<1x16x128xf32> to vector<16x128xf32>
    %31 = vector.shape_cast %28 : vector<16x128xf32> to vector<1x16x128xf32>
    tpu.vector_store %arg4[%c0_12, %c0_13, %c0_14], %31 {strides = array<i32>} : memref<1x16x128xf32, #tpu.memory_space<vmem>>, vector<1x16x128xf32>,
    return
  }
  func.func @transform_0(%arg0: i32) -> (i32, i32, i32) {
    %c0_i32 = arith.constant 0 : i32
    %c0_i32_0 = arith.constant 0 : i32
    %c0_i32_1 = arith.constant 0 : i32
    return %arg0, %c0_i32, %c0_i32_0 : i32, i32, i32
  }
  func.func @transform_1(%arg0: i32) -> (i32, i32) {
    %c0_i32 = arith.constant 0 : i32
    %c0_i32_0 = arith.constant 0 : i32
    %c0_i32_1 = arith.constant 0 : i32
    return %c0_i32, %c0_i32_0 : i32, i32
  }
  func.func @transform_2(%arg0: i32) -> (i32, i32) {
    %c0_i32 = arith.constant 0 : i32
    %c0_i32_0 = arith.constant 0 : i32
    %c0_i32_1 = arith.constant 0 : i32
    return %c0_i32, %c0_i32_0 : i32, i32
  }
  func.func @transform_3(%arg0: i32) -> (i32, i32, i32) {
    %c0_i32 = arith.constant 0 : i32
    %c0_i32_0 = arith.constant 0 : i32
    %c0_i32_1 = arith.constant 0 : i32
    return %arg0, %c0_i32, %c0_i32_0 : i32, i32, i32
  }
}

module attributes {stable_mosaic.version = 11 : i64} {
  func.func @kernel(%arg0: i32, %arg1: memref<1x400x512xbf16, #tpu.memory_space<vmem>>, %arg2: memref<8x400xbf16, #tpu.memory_space<vmem>>, %arg3: memref<8x1xf32, #tpu.memory_space<vmem>>, %arg4: memref<1x8x512xf32, #tpu.memory_space<vmem>>) attributes {dimension_semantics = [#tpu.dimension_semantics<parallel>], iteration_bounds = array<i64: 2>, scalar_prefetch = 0 : i64, scratch_operands = 0 : i64, tpu.core_type = #tpu.core_type<tc>, window_params = [{transform_indices = @transform_0, window_bounds = array<i64: 1, 400, 512>}, {pipeline_mode = #tpu.pipeline_mode<synchronous>, transform_indices = @transform_1, window_bounds = array<i64: 8, 400>}, {pipeline_mode = #tpu.pipeline_mode<synchronous>, transform_indices = @transform_2, window_bounds = array<i64: 8, 1>}, {transform_indices = @transform_3, window_bounds = array<i64: 1, 8, 512>}]} {
    %c0 = arith.constant 0 : index
    %c0_0 = arith.constant 0 : index
    %0 = vector.load %arg2[%c0, %c0_0] : memref<8x400xbf16, #tpu.memory_space<vmem>>, vector<8x400xbf16>
    %c0_1 = arith.constant 0 : index
    %c0_2 = arith.constant 0 : index
    %c0_3 = arith.constant 0 : index
    %1 = vector.load %arg1[%c0_1, %c0_2, %c0_3] : memref<1x400x512xbf16, #tpu.memory_space<vmem>>, vector<1x400x512xbf16>
    %2 = vector.shape_cast %1 : vector<1x400x512xbf16> to vector<400x512xbf16>
    %cst = arith.constant dense<0.000000e+00> : vector<8x512xf32>
    %3 = tpu.matmul %0, %2, %cst {dimension_numbers = #tpu.dot_dimension_numbers<[1], [0], [0], [1], [0, 0, 1, 1], [], []>} : vector<8x400xbf16>, vector<400x512xbf16>, vector<8x512xf32> -> vector<8x512xf32>
    %c0_4 = arith.constant 0 : index
    %c0_5 = arith.constant 0 : index
    %4 = vector.load %arg3[%c0_4, %c0_5] : memref<8x1xf32, #tpu.memory_space<vmem>>, vector<8x1xf32>
    %5 = vector.broadcast %4 : vector<8x1xf32> to vector<8x512xf32>
    %6 = arith.addf %3, %5 : vector<8x512xf32>
    %cst_6 = arith.constant dense<0.000000e+00> : vector<8xf32>
    %7 = vector.multi_reduction <add>, %6, %cst_6 [1] : vector<8x512xf32> to vector<8xf32>
    %8 = vector.shape_cast %7 : vector<8xf32> to vector<8x1xf32>
    %cst_7 = arith.constant 5.120000e+02 : f32
    %9 = vector.broadcast %cst_7 : f32 to vector<8x1xf32>
    %10 = arith.divf %8, %9 : vector<8x1xf32>
    %11 = vector.broadcast %10 : vector<8x1xf32> to vector<8x512xf32>
    %12 = arith.subf %6, %11 : vector<8x512xf32>
    %13 = vector.broadcast %10 : vector<8x1xf32> to vector<8x512xf32>
    %14 = arith.subf %6, %13 : vector<8x512xf32>
    %15 = arith.mulf %12, %14 : vector<8x512xf32>
    %cst_8 = arith.constant dense<0.000000e+00> : vector<8xf32>
    %16 = vector.multi_reduction <add>, %15, %cst_8 [1] : vector<8x512xf32> to vector<8xf32>
    %17 = vector.shape_cast %16 : vector<8xf32> to vector<8x1xf32>
    %cst_9 = arith.constant 5.120000e+02 : f32
    %18 = vector.broadcast %cst_9 : f32 to vector<8x1xf32>
    %19 = arith.divf %17, %18 : vector<8x1xf32>
    %20 = vector.broadcast %10 : vector<8x1xf32> to vector<8x512xf32>
    %21 = arith.subf %6, %20 : vector<8x512xf32>
    %cst_10 = arith.constant 9.99999974E-6 : f32
    %22 = vector.broadcast %cst_10 : f32 to vector<8x1xf32>
    %23 = arith.addf %19, %22 : vector<8x1xf32>
    %24 = math.rsqrt %23 : vector<8x1xf32>
    %25 = vector.broadcast %24 : vector<8x1xf32> to vector<8x512xf32>
    %26 = arith.mulf %21, %25 : vector<8x512xf32>
    %cst_11 = arith.constant 0.000000e+00 : f32
    %27 = vector.broadcast %cst_11 : f32 to vector<8x512xf32>
    %28 = arith.maximumf %26, %27 : vector<8x512xf32>
    %c0_12 = arith.constant 0 : index
    %c0_13 = arith.constant 0 : index
    %c0_14 = arith.constant 0 : index
    %29 = vector.load %arg4[%c0_12, %c0_13, %c0_14] : memref<1x8x512xf32, #tpu.memory_space<vmem>>, vector<1x8x512xf32>
    %30 = vector.shape_cast %29 : vector<1x8x512xf32> to vector<8x512xf32>
    %31 = vector.shape_cast %28 : vector<8x512xf32> to vector<1x8x512xf32>
    tpu.vector_store %arg4[%c0_12, %c0_13, %c0_14], %31 {strides = array<i32>} : memref<1x8x512xf32, #tpu.memory_space<vmem>>, vector<1x8x512xf32>,
    return
  }
  func.func @transform_0(%arg0: i32) -> (i32, i32, i32) {
    %c0_i32 = arith.constant 0 : i32
    %c0_i32_0 = arith.constant 0 : i32
    %c0_i32_1 = arith.constant 0 : i32
    return %arg0, %c0_i32, %c0_i32_0 : i32, i32, i32
  }
  func.func @transform_1(%arg0: i32) -> (i32, i32) {
    %c0_i32 = arith.constant 0 : i32
    %c0_i32_0 = arith.constant 0 : i32
    %c0_i32_1 = arith.constant 0 : i32
    return %c0_i32, %c0_i32_0 : i32, i32
  }
  func.func @transform_2(%arg0: i32) -> (i32, i32) {
    %c0_i32 = arith.constant 0 : i32
    %c0_i32_0 = arith.constant 0 : i32
    %c0_i32_1 = arith.constant 0 : i32
    return %c0_i32, %c0_i32_0 : i32, i32
  }
  func.func @transform_3(%arg0: i32) -> (i32, i32, i32) {
    %c0_i32 = arith.constant 0 : i32
    %c0_i32_0 = arith.constant 0 : i32
    %c0_i32_1 = arith.constant 0 : i32
    return %arg0, %c0_i32, %c0_i32_0 : i32, i32, i32
  }
}

module attributes {stable_mosaic.version = 11 : i64} {
  func.func @kernel(%arg0: i32, %arg1: memref<1x392x512xbf16, #tpu.memory_space<vmem>>, %arg2: memref<1x392xbf16, #tpu.memory_space<vmem>>, %arg3: memref<1x1xf32, #tpu.memory_space<vmem>>, %arg4: memref<1x1x512xf32, #tpu.memory_space<vmem>>) attributes {dimension_semantics = [#tpu.dimension_semantics<parallel>], iteration_bounds = array<i64: 2>, scalar_prefetch = 0 : i64, scratch_operands = 0 : i64, tpu.core_type = #tpu.core_type<tc>, window_params = [{transform_indices = @transform_0, window_bounds = array<i64: 1, 392, 512>}, {pipeline_mode = #tpu.pipeline_mode<synchronous>, transform_indices = @transform_1, window_bounds = array<i64: 1, 392>}, {pipeline_mode = #tpu.pipeline_mode<synchronous>, transform_indices = @transform_2, window_bounds = array<i64: 1, 1>}, {transform_indices = @transform_3, window_bounds = array<i64: 1, 1, 512>}]} {
    %c0 = arith.constant 0 : index
    %c0_0 = arith.constant 0 : index
    %0 = vector.load %arg2[%c0, %c0_0] : memref<1x392xbf16, #tpu.memory_space<vmem>>, vector<1x392xbf16>
    %c0_1 = arith.constant 0 : index
    %c0_2 = arith.constant 0 : index
    %c0_3 = arith.constant 0 : index
    %1 = vector.load %arg1[%c0_1, %c0_2, %c0_3] : memref<1x392x512xbf16, #tpu.memory_space<vmem>>, vector<1x392x512xbf16>
    %2 = vector.shape_cast %1 : vector<1x392x512xbf16> to vector<392x512xbf16>
    %cst = arith.constant dense<0.000000e+00> : vector<1x512xf32>
    %3 = tpu.matmul %0, %2, %cst {dimension_numbers = #tpu.dot_dimension_numbers<[1], [0], [0], [1], [0, 0, 1, 1], [], []>} : vector<1x392xbf16>, vector<392x512xbf16>, vector<1x512xf32> -> vector<1x512xf32>
    %c0_4 = arith.constant 0 : index
    %c0_5 = arith.constant 0 : index
    %4 = vector.load %arg3[%c0_4, %c0_5] : memref<1x1xf32, #tpu.memory_space<vmem>>, vector<1x1xf32>
    %5 = vector.broadcast %4 : vector<1x1xf32> to vector<1x512xf32>
    %6 = arith.addf %3, %5 : vector<1x512xf32>
    %7 = math.tanh %6 : vector<1x512xf32>
    %c0_6 = arith.constant 0 : index
    %c0_7 = arith.constant 0 : index
    %c0_8 = arith.constant 0 : index
    %8 = vector.load %arg4[%c0_6, %c0_7, %c0_8] : memref<1x1x512xf32, #tpu.memory_space<vmem>>, vector<1x1x512xf32>
    %9 = vector.shape_cast %8 : vector<1x1x512xf32> to vector<1x512xf32>
    %10 = vector.shape_cast %7 : vector<1x512xf32> to vector<1x1x512xf32>
    tpu.vector_store %arg4[%c0_6, %c0_7, %c0_8], %10 {strides = array<i32>} : memref<1x1x512xf32, #tpu.memory_space<vmem>>, vector<1x1x512xf32>,
    return
  }
  func.func @transform_0(%arg0: i32) -> (i32, i32, i32) {
    %c0_i32 = arith.constant 0 : i32
    %c0_i32_0 = arith.constant 0 : i32
    %c0_i32_1 = arith.constant 0 : i32
    return %arg0, %c0_i32, %c0_i32_0 : i32, i32, i32
  }
  func.func @transform_1(%arg0: i32) -> (i32, i32) {
    %c0_i32 = arith.constant 0 : i32
    %c0_i32_0 = arith.constant 0 : i32
    %c0_i32_1 = arith.constant 0 : i32
    return %c0_i32, %c0_i32_0 : i32, i32
  }
  func.func @transform_2(%arg0: i32) -> (i32, i32) {
    %c0_i32 = arith.constant 0 : i32
    %c0_i32_0 = arith.constant 0 : i32
    %c0_i32_1 = arith.constant 0 : i32
    return %c0_i32, %c0_i32_0 : i32, i32
  }
  func.func @transform_3(%arg0: i32) -> (i32, i32, i32) {
    %c0_i32 = arith.constant 0 : i32
    %c0_i32_0 = arith.constant 0 : i32
    %c0_i32_1 = arith.constant 0 : i32
    return %arg0, %c0_i32, %c0_i32_0 : i32, i32, i32
  }
}

</mosaic_0001>

<llo_original>
// kernel: decoder_forward.6
$region0: #{decoder_forward.6}
  #allocation0 [shape = 'u32[]', space=smem, size = 0x4, offset = 0x4, fixed_abs, tag = 'smem constant byte address 0x4 - core index']
  #allocation1 [shape = 'u32[144,128]{1,0:T(1,128)}', space=vmem, size = 0x12000, scoped, tag = 'internal scratch']
  %s0 = inlined_call_operand.vmem [shape: bf16[8,32], index: 0, kind: input, shape index: {}]
  %s1 = inlined_call_operand.vmem [shape: bf16[32,256], index: 1, kind: input, shape index: {}]
  %s2 = inlined_call_operand.hbm [shape: f32[1,256], index: 2, kind: input, shape index: {}]
  %s3 = inlined_call_operand.vmem [shape: f32[8,256], index: 3, kind: output, shape index: {}]
  %s4 = sld [smem:[#allocation0]]
  $region90: #{decoder_forward.6} parent=0
    _
  %s6 = ssub.s32 1, %s4
  %s7 = scalar_select 0, %s6, %s4
  $region1: #{decoder_forward.6} parent=0
    #allocation2 [shape = 'u8[16384]{0}', space=vmem, size = 0x4000, scoped, tag = 'input window, operand 1']
    #allocation3 [shape = 'u8[1024]{0}', space=vmem, size = 0x400, scoped, tag = 'input window, operand 2']
    #allocation4 [shape = 's32[2]{0}', space=sflag, size = 0x8, scoped, tag = 'scoped memory for decoder_forward.6']
    %8 = vsyncpa [#allocation4], 0
    %s9 = scalar_lea.sflag [#allocation4], 1
    %10 = vsyncpa %s9, 0
    loop: start=0, step=1, limit=4
    $region2: #{decoder_forward.6} parent=1 // loop_pre_header
      _
    $region3: #{decoder_forward.6} parent=1 // loop_header
      %s12 = sphi 0, %s16
      %p13 = scmp.ge.s32.totalorder %s12, 4
      %s20 = sphi 0, %s20
      %s22 = sphi 0, %s20
      %s23 = sphi 0, %s22
      %s37 = sphi 0, %s23
      %s43 = sphi 0, %s45
      %s46 = sphi 0, %s43
      %s47 = sphi 0, %s46
      %s63 = sphi 0, %s47
      %s69 = sphi 0, %s71
      %s72 = sphi 0, %s69
      %s73 = sphi 0, %s72
      %s89 = sphi 0, %s73
      %s95 = sphi 0, %s97
      %s98 = sphi 0, %s95
      %s99 = sphi 0, %s98
      %s115 = sphi 0, %s99
    $region4: #{decoder_forward.6} parent=1 // loop_header_branch
      %15 = sbr.rel (%p13) target = $region8
    $region5: #{decoder_forward.6} parent=1 // loop_body
      %s17 = ssub.s32 %s12, 1
      %s18 = ssub.s32 %s12, 2
      %s19 = sadd.s32 %s12, 1
      %s21 = sadd.s32 %s20, 1
      %p24 = scmp.eq.s32.totalorder %s12, 1
      %p25 = scmp.ne.s32.totalorder %s20, %s22
      %p26 = scmp.eq.s32.totalorder %s12, 0
      %p27 = por %p25, %p26
      %p28 = scmp.ne.s32.totalorder %s20, %s22
      %p29 = scmp.eq.s32.totalorder %s17, 1
      %p30 = por %p28, %p29
      %p31 = scmp.ne.s32.totalorder %s22, %s23
      %p32 = scmp.eq.s32.totalorder %s17, 0
      %p33 = por %p31, %p32
      %p34 = scmp.ne.s32.totalorder %s22, %s23
      %p35 = scmp.eq.s32.totalorder %s18, 1
      %p36 = por %p34, %p35
      %p38 = scmp.ne.s32.totalorder %s23, %s37
      %p39 = scmp.eq.s32.totalorder %s18, 0
      %p40 = por %p38, %p39
      %s41 = ssub.s32 %s12, %s19
      %p42 = scmp.eq.s32.totalorder %s41, 0
      %s44 = sadd.s32 %s43, 1
      %s45 = scalar_select %p42, %s43, %s44
      %p48 = pneg %p42
      %p49 = scmp.eq.s32.totalorder %s12, 1
      %p50 = por %p48, %p49
      %p51 = scmp.ne.s32.totalorder %s43, %s46
      %p52 = scmp.eq.s32.totalorder %s12, 0
      %p53 = por %p51, %p52
      %p54 = scmp.ne.s32.totalorder %s43, %s46
      %p55 = scmp.eq.s32.totalorder %s17, 1
      %p56 = por %p54, %p55
      %p57 = scmp.ne.s32.totalorder %s46, %s47
      %p58 = scmp.eq.s32.totalorder %s17, 0
      %p59 = por %p57, %p58
      %p60 = scmp.ne.s32.totalorder %s46, %s47
      %p61 = scmp.eq.s32.totalorder %s18, 1
      %p62 = por %p60, %p61
      %p64 = scmp.ne.s32.totalorder %s47, %s63
      %p65 = scmp.eq.s32.totalorder %s18, 0
      %p66 = por %p64, %p65
      %s67 = ssub.s32 %s12, %s19
      %p68 = scmp.eq.s32.totalorder %s67, 0
      %s70 = sadd.s32 %s69, 1
      %s71 = scalar_select %p68, %s69, %s70
      %p74 = pneg %p68
      %p75 = scmp.eq.s32.totalorder %s12, 1
      %p76 = por %p74, %p75
      %p77 = scmp.ne.s32.totalorder %s69, %s72
      %p78 = scmp.eq.s32.totalorder %s12, 0
      %p79 = por %p77, %p78
      %p80 = scmp.ne.s32.totalorder %s69, %s72
      %p81 = scmp.eq.s32.totalorder %s17, 1
      %p82 = por %p80, %p81
      %p83 = scmp.ne.s32.totalorder %s72, %s73
      %p84 = scmp.eq.s32.totalorder %s17, 0
      %p85 = por %p83, %p84
      %p86 = scmp.ne.s32.totalorder %s72, %s73
      %p87 = scmp.eq.s32.totalorder %s18, 1
      %p88 = por %p86, %p87
      %p90 = scmp.ne.s32.totalorder %s73, %s89
      %p91 = scmp.eq.s32.totalorder %s18, 0
      %p92 = por %p90, %p91
      %s93 = ssub.s32 %s12, %s19
      %p94 = scmp.eq.s32.totalorder %s93, 0
      %s96 = sadd.s32 %s95, 1
      %s97 = scalar_select %p94, %s95, %s96
      %p100 = pneg %p94
      %p101 = scmp.eq.s32.totalorder %s12, 1
      %p102 = por %p100, %p101
      %p103 = scmp.ne.s32.totalorder %s95, %s98
      %p104 = scmp.eq.s32.totalorder %s12, 0
      %p105 = por %p103, %p104
      %p106 = scmp.ne.s32.totalorder %s95, %s98
      %p107 = scmp.eq.s32.totalorder %s17, 1
      %p108 = por %p106, %p107
      %p109 = scmp.ne.s32.totalorder %s98, %s99
      %p110 = scmp.eq.s32.totalorder %s17, 0
      %p111 = por %p109, %p110
      %p112 = scmp.ne.s32.totalorder %s98, %s99
      %p113 = scmp.eq.s32.totalorder %s18, 1
      %p114 = por %p112, %p113
      %p116 = scmp.ne.s32.totalorder %s99, %s115
      %p117 = scmp.eq.s32.totalorder %s18, 0
      %p118 = por %p116, %p117
      %p119 = scmp.le.s32.totalorder 1, %s12
      %p120 = scmp.lt.s32.totalorder %s12, 3
      %p121 = pnand %p119, %p120
      %p122 = pneg %p121
      // Predicated region
      $region9: #{decoder_forward.6} parent=5 // pred_check
        _
      $region10: #{decoder_forward.6} parent=5 // pred_check_branch
        %124 = sbr.rel (%p121) target = $region12
      $region11: #{decoder_forward.6} parent=5 // pred_region
        %s125 = ssub.s32 %s12, 1
        // Predicated region
        $region13: #{decoder_forward.6} parent=11 // pred_check
          %p126 = pneg %p33
        $region14: #{decoder_forward.6} parent=11 // pred_check_branch
          %128 = sbr.rel (%p126) target = $region16
        $region15: #{decoder_forward.6} parent=11 // pred_region
          _
        $region16: #{decoder_forward.6} parent=11 // pred_fallthru
          _
      $region12: #{decoder_forward.6} parent=5 // pred_fallthru
        _
      %p129 = scmp.lt.s32.totalorder %s12, 2
      // Predicated region
      $region17: #{decoder_forward.6} parent=5 // pred_check
        %p130 = pneg %p129
      $region18: #{decoder_forward.6} parent=5 // pred_check_branch
        %132 = sbr.rel (%p130) target = $region20
      $region19: #{decoder_forward.6} parent=5 // pred_region
        // Predicated region
        $region21: #{decoder_forward.6} parent=19 // pred_check
          %p133 = pneg %p53
        $region22: #{decoder_forward.6} parent=19 // pred_check_branch
          %135 = sbr.rel (%p133) target = $region24
        $region23: #{decoder_forward.6} parent=19 // pred_region
          %s136 = sand.u32 %s43, 1
          %s137 = sand.u32 %s43, 1
          %s138 = smul.addr %s137, 16
          %s139 = scalar_lea.vmem [#allocation2], %s138
          %s140 = smul.addr %s12, 4
          %s141 = scalar_lea.vmem %s1, %s140
          // Predicated region
          $region25: #{decoder_forward.6} parent=23 // pred_check
            _
          $region26: #{decoder_forward.6} parent=23 // pred_check_branch
            %143 = sbr.rel (0) target = $region28
          $region27: #{decoder_forward.6} parent=23 // pred_region
            // Predicated region
            $region29: #{decoder_forward.6} parent=27 // pred_check
              _
            $region30: #{decoder_forward.6} parent=27 // pred_check_branch
              %145 = sbr.rel target = $region32
            $region31: #{decoder_forward.6} parent=27 // pred_region
              // Predicated region
              $region44: #{decoder_forward.6} parent=31 // pred_check
                _
              $region45: #{decoder_forward.6} parent=31 // pred_check_branch
                %166 = sbr.rel (0) target = $region47
              $region46: #{decoder_forward.6} parent=31 // pred_region
                loop: start=0, step=1, limit=1
                $region48: #{decoder_forward.6} parent=46 // loop_pre_header
                  _
                $region49: #{decoder_forward.6} parent=46 // loop_header
                  %s168 = sphi 0, %s172
                  %p169 = scmp.ge.s32.totalorder %s168, 1
                  %s173 = sphi %s141, %s141
                  %s174 = sphi %s139, %s139
                $region50: #{decoder_forward.6} parent=46 // loop_header_branch
                  %171 = sbr.rel (%p169) target = $region54
                $region51: #{decoder_forward.6} parent=46 // loop_body
                  _
                $region52: #{decoder_forward.6} parent=46 // loop_footer
                  %s172 = sadd.s32 1, %s168
                $region53: #{decoder_forward.6} parent=46 // loop_footer_branch
                  %167 = sbr.rel target = $region49
                $region54: #{decoder_forward.6} parent=46 // loop_exit
                  _
                loop: start=0, step=1, limit=1
                $region55: #{decoder_forward.6} parent=46 // loop_pre_header
                  _
                $region56: #{decoder_forward.6} parent=46 // loop_header
                  %s177 = sphi 0, %s181
                  %p178 = scmp.ge.s32.totalorder %s177, 1
                  %s182 = sphi %s141, %s141
                  %s183 = sphi %s139, %s139
                $region57: #{decoder_forward.6} parent=46 // loop_header_branch
                  %180 = sbr.rel (%p178) target = $region61
                $region58: #{decoder_forward.6} parent=46 // loop_body
                  %v184 = vld [vmem:[%s182] sm:$0xf]
                  %185 = vst [vmem:[%s183] sm:$0xf] %v184
                  %v186 = vld [vmem:[%s182 + $0x8] sm:$0xf]
                  %187 = vst [vmem:[%s183 + $0x4] sm:$0xf] %v186
                  %v188 = vld [vmem:[%s182 + $0x10] sm:$0xf]
                  %189 = vst [vmem:[%s183 + $0x8] sm:$0xf] %v188
                  %v190 = vld [vmem:[%s182 + $0x18] sm:$0xf]
                  %191 = vst [vmem:[%s183 + $0xc] sm:$0xf] %v190
                $region59: #{decoder_forward.6} parent=46 // loop_footer
                  %s181 = sadd.s32 1, %s177
                $region60: #{decoder_forward.6} parent=46 // loop_footer_branch
                  %176 = sbr.rel target = $region56
                $region61: #{decoder_forward.6} parent=46 // loop_exit
                  _
              $region47: #{decoder_forward.6} parent=31 // pred_fallthru
                _
            $region32: #{decoder_forward.6} parent=27 // pred_fallthru
              _
            // Predicated region
            $region33: #{decoder_forward.6} parent=27 // pred_check
              _
            $region34: #{decoder_forward.6} parent=27 // pred_check_branch
              %147 = sbr.rel (0) target = $region36
            $region35: #{decoder_forward.6} parent=27 // pred_region
              loop: start=0, step=1, limit=1
              $region37: #{decoder_forward.6} parent=35 // loop_pre_header
                _
              $region38: #{decoder_forward.6} parent=35 // loop_header
                %s150 = sphi 0, %s154
                %p151 = scmp.ge.s32.totalorder %s150, 1
                %s155 = sphi %s141, %s141
                %s156 = sphi %s139, %s139
              $region39: #{decoder_forward.6} parent=35 // loop_header_branch
                %153 = sbr.rel (%p151) target = $region43
              $region40: #{decoder_forward.6} parent=35 // loop_body
                %v157 = vld [vmem:[%s155] sm:$0xf]
                %158 = vst [vmem:[%s156] sm:$0xf] %v157
                %v159 = vld [vmem:[%s155 + $0x8] sm:$0xf]
                %160 = vst [vmem:[%s156 + $0x4] sm:$0xf] %v159
                %v161 = vld [vmem:[%s155 + $0x10] sm:$0xf]
                %162 = vst [vmem:[%s156 + $0x8] sm:$0xf] %v161
                %v163 = vld [vmem:[%s155 + $0x18] sm:$0xf]
                %164 = vst [vmem:[%s156 + $0xc] sm:$0xf] %v163
              $region41: #{decoder_forward.6} parent=35 // loop_footer
                %s154 = sadd.s32 1, %s150
              $region42: #{decoder_forward.6} parent=35 // loop_footer_branch
                %149 = sbr.rel target = $region38
              $region43: #{decoder_forward.6} parent=35 // loop_exit
                _
            $region36: #{decoder_forward.6} parent=27 // pred_fallthru
              _
          $region28: #{decoder_forward.6} parent=23 // pred_fallthru
            _
          %192 = vnop
        $region24: #{decoder_forward.6} parent=19 // pred_fallthru
          _
        // Predicated region
        $region62: #{decoder_forward.6} parent=19 // pred_check
          %p193 = pneg %p79
        $region63: #{decoder_forward.6} parent=19 // pred_check_branch
          %195 = sbr.rel (%p193) target = $region65
        $region64: #{decoder_forward.6} parent=19 // pred_region
          %s196 = sand.u32 %s69, 1
          %s197 = scalar_lea.sflag [#allocation4], %s196
          %s198 = sand.u32 %s69, 1
          %s199 = scalar_lea.vmem [#allocation3], %s198
          %s201 = ssub.s32 16, 16
          %202 = vsyncadd %s197, %s201
          %s203 = smul.addr %s12, 16
          %s204 = scalar_lea.hbm %s2, %s203
          %s206 = sshll.u32 %s199, 4
          %s207 = int_to_ptr.vmem [resolvable:$true] %s206
          %209 = dma.hbm_to_vmem [thread:$0]  %s204, 16, %s207, %s197
        $region65: #{decoder_forward.6} parent=19 // pred_fallthru
          _
      $region20: #{decoder_forward.6} parent=5 // pred_fallthru
        _
      %p210 = scmp.le.s32.totalorder 1, %s12
      %p211 = scmp.lt.s32.totalorder %s12, 3
      %p212 = pnand %p210, %p211
      %p213 = pneg %p212
      // Predicated region
      $region66: #{decoder_forward.6} parent=5 // pred_check
        _
      $region67: #{decoder_forward.6} parent=5 // pred_check_branch
        %215 = sbr.rel (%p212) target = $region69
      $region68: #{decoder_forward.6} parent=5 // pred_region
        %s216 = ssub.s32 %s12, 1
        %s217 = sand.u32 %s46, 1
        %s218 = sand.u32 %s46, 1
        %s219 = smul.addr %s218, 16
        %s220 = scalar_lea.vmem [#allocation2], %s219
        // Predicated region
        $region70: #{decoder_forward.6} parent=68 // pred_check
          %p221 = pneg %p59
        $region71: #{decoder_forward.6} parent=68 // pred_check_branch
          %223 = sbr.rel (%p221) target = $region73
        $region72: #{decoder_forward.6} parent=68 // pred_region
          _
        $region73: #{decoder_forward.6} parent=68 // pred_fallthru
          _
        %s224 = sand.u32 %s72, 1
        %s225 = scalar_lea.sflag [#allocation4], %s224
        %s226 = sand.u32 %s72, 1
        %s227 = scalar_lea.vmem [#allocation3], %s226
        // Predicated region
        $region74: #{decoder_forward.6} parent=68 // pred_check
          %p228 = pneg %p85
        $region75: #{decoder_forward.6} parent=68 // pred_check_branch
          %230 = sbr.rel (%p228) target = $region77
        $region76: #{decoder_forward.6} parent=68 // pred_region
          %231 = dma.done %s225, 16
        $region77: #{decoder_forward.6} parent=68 // pred_fallthru
          _
        %p232 = pneg %p33
        %p233 = pneg %p30
        %s234 = sand.u32 %s46, 1
        %s235 = sand.u32 %s46, 1
        %s236 = smul.addr %s235, 16
        %s237 = scalar_lea.vmem [#allocation2], %s236
        %p238 = pneg %p59
        %p239 = pneg %p56
        %s240 = sand.u32 %s72, 1
        %s241 = scalar_lea.sflag [#allocation4], %s240
        %s242 = sand.u32 %s72, 1
        %s243 = scalar_lea.vmem [#allocation3], %s242
        %p244 = pneg %p85
        %p245 = pneg %p82
        %p246 = pneg %p111
        %p247 = pneg %p108
        %p248 = scmp.lt.s32.totalorder %s17, 1
        %s249 = scalar_select %p248, %s17, 1
        %s250 = smul.addr %s249, 8
        %s251 = scalar_lea.vmem %s3, %s250
        %p252 = scmp.lt.s32.totalorder %s17, 1
        %s253 = scalar_select %p252, %s17, 1
        %s254 = smul.addr %s253, 8
        %s255 = scalar_lea.vmem %s3, %s254
        %v257 = vld [vmem:[%s0] sm:$0xf]
        %v258 = vld [vmem:[%s220] sm:$0xf]
        %v259 = vld [vmem:[%s220 + $0x4] sm:$0xf]
        %v260 = vld [vmem:[%s220 + $0x8] sm:$0xf]
        %v261 = vld [vmem:[%s220 + $0xc] sm:$0xf]
        %v262 = vld [vmem:[%s227] sm:$0x1]
        %v264 = vlaneseq
        %v265 = vshrl.u32 %v264, 7
        %v266 = vsub.s32 0, %v265
        %v267 = vrot.slane %v262, %v266
        %v273 = vunpack.c.l.b16 %v258
        %v274 = vunpack.c.l.b16 %v259
        %v275 = vunpack.c.l.b16 %v260
        %v276 = vunpack.c.l.b16 %v261
        %v277 = vpack.c.b16 %v274, %v273
        %v278 = vpack.c.b16 %v276, %v275
        %vm281 = vcmask 261120
        %v283 = vsel %vm281, %v257, 0
        %285 = vmatprep.subr.bf16.mxu0 0
        %286 = vmatpush1.bf16.msra.mxu0 %v277
        %287 = vmatprep.subr.bf16.mxu0 0
        %288 = vmatpush1.bf16.msra.mxu0 %v278
        %289 = vmatprep.subr.bf16.mxu0 0
        %290 = vmatpush1.bf16.msra.mxu0 0
        %291 = vmatprep.subr.bf16.mxu0 0
        %292 = vmatpush1.bf16.msra.mxu0 0
        %293 = vmatprep.subr.bf16.mxu0 0
        %294 = vmatpush1.bf16.msra.mxu0 0
        %295 = vmatprep.subr.bf16.mxu0 0
        %296 = vmatpush1.bf16.msra.mxu0 0
        %297 = vmatprep.subr.bf16.mxu0 0
        %298 = vmatpush1.bf16.msra.mxu0 0
        %299 = vmatprep.subr.bf16.mxu0 0
        %300 = vmatpush1.bf16.msra.mxu0 0
        %301 = vmatprep.subr.bf16.mxu0 0
        %302 = vmatpush1.bf16.msra.mxu0 0
        %303 = vmatprep.subr.bf16.mxu0 0
        %304 = vmatpush1.bf16.msra.mxu0 0
        %305 = vmatprep.subr.bf16.mxu0 0
        %306 = vmatpush1.bf16.msra.mxu0 0
        %307 = vmatprep.subr.bf16.mxu0 0
        %308 = vmatpush1.bf16.msra.mxu0 0
        %309 = vmatprep.subr.bf16.mxu0 0
        %310 = vmatpush1.bf16.msra.mxu0 0
        %311 = vmatprep.subr.bf16.mxu0 0
        %312 = vmatpush1.bf16.msra.mxu0 0
        %313 = vmatprep.subr.bf16.mxu0 0
        %314 = vmatpush1.bf16.msra.mxu0 0
        %315 = vmatprep.subr.bf16.mxu0 0
        %316 = vmatpush1.bf16.msra.mxu0 0
        %317 = vmatprep.mubr.bf16.mxu0 0
        %318 = vmatmul.mubr.bf16.gmra.mrb[0].mxu0 %v283
        %v319 = vpop.f32.mrb[0].mxu0
        %v320 = vadd.f32 %v267, %v319
        %v321 = vpop.f32.mrb[0].mxu0
        %v322 = vpop.f32.mrb[0].mxu0
        %v323 = vpop.f32.mrb[0].mxu0
        %324 = vdwg.mxu0
        %325 = vst [vmem:[%s255] sm:$0xff] %v320
        %p326 = scmp.lt.s32.totalorder %s17, 1
        %s327 = scalar_select %p326, %s17, 1
        %s328 = smul.addr %s327, 8
        %s329 = scalar_lea.vmem %s3, %s328
        // Predicated region
        $region78: #{decoder_forward.6} parent=68 // pred_check
          %p330 = pneg %p108
        $region79: #{decoder_forward.6} parent=68 // pred_check_branch
          %332 = sbr.rel (%p330) target = $region81
        $region80: #{decoder_forward.6} parent=68 // pred_region
          _
        $region81: #{decoder_forward.6} parent=68 // pred_fallthru
          _
      $region69: #{decoder_forward.6} parent=5 // pred_fallthru
        _
      %p333 = scmp.le.s32.totalorder 2, %s12
      // Predicated region
      $region82: #{decoder_forward.6} parent=5 // pred_check
        %p334 = pneg %p333
      $region83: #{decoder_forward.6} parent=5 // pred_check_branch
        %336 = sbr.rel (%p334) target = $region85
      $region84: #{decoder_forward.6} parent=5 // pred_region
        %s337 = ssub.s32 %s12, 2
        // Predicated region
        $region86: #{decoder_forward.6} parent=84 // pred_check
          %p338 = pneg %p114
        $region87: #{decoder_forward.6} parent=84 // pred_check_branch
          %340 = sbr.rel (%p338) target = $region89
        $region88: #{decoder_forward.6} parent=84 // pred_region
          %p341 = scmp.lt.s32.totalorder %s18, 1
          %s342 = scalar_select %p341, %s18, 1
          %s343 = smul.addr %s342, 8
          %s344 = scalar_lea.vmem %s3, %s343
        $region89: #{decoder_forward.6} parent=84 // pred_fallthru
          _
      $region85: #{decoder_forward.6} parent=5 // pred_fallthru
        _
    $region6: #{decoder_forward.6} parent=1 // loop_footer
      %s16 = sadd.s32 1, %s12
    $region7: #{decoder_forward.6} parent=1 // loop_footer_branch
      %11 = sbr.rel target = $region3
    $region8: #{decoder_forward.6} parent=1 // loop_exit
      _
    %345 = vsyncpa [#allocation4], 1
    %s346 = scalar_lea.sflag [#allocation4], 1
    %347 = vsyncpa %s346, 1

// kernel: decoder_forward.7
$region0: #{decoder_forward.7}
  #allocation0 [shape = 'u32[]', space=smem, size = 0x4, offset = 0x4, fixed_abs, tag = 'smem constant byte address 0x4 - core index']
  #allocation1 [shape = 'u32[144,128]{1,0:T(1,128)}', space=vmem, size = 0x12000, scoped, tag = 'internal scratch']
  %s0 = inlined_call_operand.vmem [shape: bf16[2,288,32], index: 0, kind: input, shape index: {}]
  %s1 = inlined_call_operand.vmem [shape: bf16[32,288], index: 1, kind: input, shape index: {}]
  %s2 = inlined_call_operand.vmem [shape: f32[32,1], index: 2, kind: input, shape index: {}]
  %s3 = inlined_call_operand.vmem [shape: f32[2,32,32], index: 3, kind: output, shape index: {}]
  %s4 = sld [smem:[#allocation0]]
  $region45: #{decoder_forward.7} parent=0
    _
  %s6 = ssub.s32 1, %s4
  %s7 = scalar_select 0, %s6, %s4
  loop: start=0, step=1, limit=4
  $region2: #{decoder_forward.7} parent=0 // loop_pre_header
    _
  $region3: #{decoder_forward.7} parent=0 // loop_header
    %s9 = sphi 0, %s13
    %p10 = scmp.ge.s32.totalorder %s9, 4
    %s19 = sphi 0, %s21
    %s22 = sphi 0, %s19
    %s23 = sphi 0, %s22
    %s39 = sphi 0, %s23
    %s43 = sphi 0, %s43
    %s45 = sphi 0, %s43
    %s46 = sphi 0, %s45
    %s60 = sphi 0, %s46
    %s64 = sphi 0, %s64
    %s66 = sphi 0, %s64
    %s67 = sphi 0, %s66
    %s81 = sphi 0, %s67
    %s87 = sphi 0, %s89
    %s90 = sphi 0, %s87
    %s91 = sphi 0, %s90
    %s107 = sphi 0, %s91
  $region4: #{decoder_forward.7} parent=0 // loop_header_branch
    %12 = sbr.rel (%p10) target = $region8
  $region5: #{decoder_forward.7} parent=0 // loop_body
    %s14 = ssub.s32 %s9, 1
    %s15 = ssub.s32 %s9, 2
    %s16 = sadd.s32 %s9, 1
    %s17 = ssub.s32 %s9, %s16
    %p18 = scmp.eq.s32.totalorder %s17, 0
    %s20 = sadd.s32 %s19, 1
    %s21 = scalar_select %p18, %s19, %s20
    %p24 = pneg %p18
    %p25 = scmp.eq.s32.totalorder %s9, 1
    %p26 = por %p24, %p25
    %p27 = scmp.ne.s32.totalorder %s19, %s22
    %p28 = scmp.eq.s32.totalorder %s9, 0
    %p29 = por %p27, %p28
    %p30 = scmp.ne.s32.totalorder %s19, %s22
    %p31 = scmp.eq.s32.totalorder %s14, 1
    %p32 = por %p30, %p31
    %p33 = scmp.ne.s32.totalorder %s22, %s23
    %p34 = scmp.eq.s32.totalorder %s14, 0
    %p35 = por %p33, %p34
    %p36 = scmp.ne.s32.totalorder %s22, %s23
    %p37 = scmp.eq.s32.totalorder %s15, 1
    %p38 = por %p36, %p37
    %p40 = scmp.ne.s32.totalorder %s23, %s39
    %p41 = scmp.eq.s32.totalorder %s15, 0
    %p42 = por %p40, %p41
    %s44 = sadd.s32 %s43, 1
    %p47 = scmp.eq.s32.totalorder %s9, 1
    %p48 = scmp.ne.s32.totalorder %s43, %s45
    %p49 = scmp.eq.s32.totalorder %s9, 0
    %p50 = por %p48, %p49
    %p51 = scmp.ne.s32.totalorder %s43, %s45
    %p52 = scmp.eq.s32.totalorder %s14, 1
    %p53 = por %p51, %p52
    %p54 = scmp.ne.s32.totalorder %s45, %s46
    %p55 = scmp.eq.s32.totalorder %s14, 0
    %p56 = por %p54, %p55
    %p57 = scmp.ne.s32.totalorder %s45, %s46
    %p58 = scmp.eq.s32.totalorder %s15, 1
    %p59 = por %p57, %p58
    %p61 = scmp.ne.s32.totalorder %s46, %s60
    %p62 = scmp.eq.s32.totalorder %s15, 0
    %p63 = por %p61, %p62
    %s65 = sadd.s32 %s64, 1
    %p68 = scmp.eq.s32.totalorder %s9, 1
    %p69 = scmp.ne.s32.totalorder %s64, %s66
    %p70 = scmp.eq.s32.totalorder %s9, 0
    %p71 = por %p69, %p70
    %p72 = scmp.ne.s32.totalorder %s64, %s66
    %p73 = scmp.eq.s32.totalorder %s14, 1
    %p74 = por %p72, %p73
    %p75 = scmp.ne.s32.totalorder %s66, %s67
    %p76 = scmp.eq.s32.totalorder %s14, 0
    %p77 = por %p75, %p76
    %p78 = scmp.ne.s32.totalorder %s66, %s67
    %p79 = scmp.eq.s32.totalorder %s15, 1
    %p80 = por %p78, %p79
    %p82 = scmp.ne.s32.totalorder %s67, %s81
    %p83 = scmp.eq.s32.totalorder %s15, 0
    %p84 = por %p82, %p83
    %s85 = ssub.s32 %s9, %s16
    %p86 = scmp.eq.s32.totalorder %s85, 0
    %s88 = sadd.s32 %s87, 1
    %s89 = scalar_select %p86, %s87, %s88
    %p92 = pneg %p86
    %p93 = scmp.eq.s32.totalorder %s9, 1
    %p94 = por %p92, %p93
    %p95 = scmp.ne.s32.totalorder %s87, %s90
    %p96 = scmp.eq.s32.totalorder %s9, 0
    %p97 = por %p95, %p96
    %p98 = scmp.ne.s32.totalorder %s87, %s90
    %p99 = scmp.eq.s32.totalorder %s14, 1
    %p100 = por %p98, %p99
    %p101 = scmp.ne.s32.totalorder %s90, %s91
    %p102 = scmp.eq.s32.totalorder %s14, 0
    %p103 = por %p101, %p102
    %p104 = scmp.ne.s32.totalorder %s90, %s91
    %p105 = scmp.eq.s32.totalorder %s15, 1
    %p106 = por %p104, %p105
    %p108 = scmp.ne.s32.totalorder %s91, %s107
    %p109 = scmp.eq.s32.totalorder %s15, 0
    %p110 = por %p108, %p109
    %p111 = scmp.le.s32.totalorder 1, %s9
    %p112 = scmp.lt.s32.totalorder %s9, 3
    %p113 = pnand %p111, %p112
    %p114 = pneg %p113
    // Predicated region
    $region9: #{decoder_forward.7} parent=5 // pred_check
      _
    $region10: #{decoder_forward.7} parent=5 // pred_check_branch
      %116 = sbr.rel (%p113) target = $region12
    $region11: #{decoder_forward.7} parent=5 // pred_region
      %s117 = ssub.s32 %s9, 1
      // Predicated region
      $region13: #{decoder_forward.7} parent=11 // pred_check
        %p118 = pneg %p56
      $region14: #{decoder_forward.7} parent=11 // pred_check_branch
        %120 = sbr.rel (%p118) target = $region16
      $region15: #{decoder_forward.7} parent=11 // pred_region
        _
      $region16: #{decoder_forward.7} parent=11 // pred_fallthru
        _
      // Predicated region
      $region17: #{decoder_forward.7} parent=11 // pred_check
        %p121 = pneg %p77
      $region18: #{decoder_forward.7} parent=11 // pred_check_branch
        %123 = sbr.rel (%p121) target = $region20
      $region19: #{decoder_forward.7} parent=11 // pred_region
        _
      $region20: #{decoder_forward.7} parent=11 // pred_fallthru
        _
    $region12: #{decoder_forward.7} parent=5 // pred_fallthru
      _
    %p124 = scmp.lt.s32.totalorder %s9, 2
    // Predicated region
    $region21: #{decoder_forward.7} parent=5 // pred_check
      %p125 = pneg %p124
    $region22: #{decoder_forward.7} parent=5 // pred_check_branch
      %127 = sbr.rel (%p125) target = $region24
    $region23: #{decoder_forward.7} parent=5 // pred_region
      // Predicated region
      $region25: #{decoder_forward.7} parent=23 // pred_check
        %p128 = pneg %p29
      $region26: #{decoder_forward.7} parent=23 // pred_check_branch
        %130 = sbr.rel (%p128) target = $region28
      $region27: #{decoder_forward.7} parent=23 // pred_region
        %p131 = scmp.lt.s32.totalorder %s9, 1
        %s132 = scalar_select %p131, %s9, 1
        %s133 = smul.addr %s132, 36
        %s134 = smul.addr %s133, 4
        %s135 = scalar_lea.vmem %s0, %s134
      $region28: #{decoder_forward.7} parent=23 // pred_fallthru
        _
    $region24: #{decoder_forward.7} parent=5 // pred_fallthru
      _
    %p136 = scmp.le.s32.totalorder 1, %s9
    %p137 = scmp.lt.s32.totalorder %s9, 3
    %p138 = pnand %p136, %p137
    %p139 = pneg %p138
    // Predicated region
    $region29: #{decoder_forward.7} parent=5 // pred_check
      _
    $region30: #{decoder_forward.7} parent=5 // pred_check_branch
      %141 = sbr.rel (%p138) target = $region32
    $region31: #{decoder_forward.7} parent=5 // pred_region
      %s142 = ssub.s32 %s9, 1
      %p143 = scmp.lt.s32.totalorder %s14, 1
      %s144 = scalar_select %p143, %s14, 1
      %s145 = smul.addr %s144, 36
      %s146 = smul.addr %s145, 4
      %s147 = scalar_lea.vmem %s0, %s146
      %p148 = pneg %p35
      %p149 = pneg %p32
      %p150 = pneg %p56
      %p151 = pneg %p53
      %p152 = pneg %p77
      %p153 = pneg %p74
      %p154 = pneg %p103
      %p155 = pneg %p100
      %p156 = scmp.lt.s32.totalorder %s14, 1
      %s157 = scalar_select %p156, %s14, 1
      %s158 = smul.addr %s157, 4
      %s159 = smul.addr %s158, 8
      %s160 = scalar_lea.vmem %s3, %s159
      %p161 = scmp.lt.s32.totalorder %s14, 1
      %s162 = scalar_select %p161, %s14, 1
      %s163 = smul.addr %s162, 36
      %s164 = smul.addr %s163, 4
      %s165 = scalar_lea.vmem %s0, %s164
      %p166 = scmp.lt.s32.totalorder %s14, 1
      %s167 = scalar_select %p166, %s14, 1
      %s168 = smul.addr %s167, 4
      %s169 = smul.addr %s168, 8
      %s170 = scalar_lea.vmem %s3, %s169
      %v172 = vld [vmem:[%s1] sm:$0xff]
      %v173 = vld [vmem:[%s1 + $0x8] sm:$0xf]
      %v174 = vld [vmem:[%s1 + $0xc] sm:$0xff]
      %v175 = vld [vmem:[%s1 + $0x14] sm:$0xf]
      %v176 = vld [vmem:[%s1 + $0x18] sm:$0xff]
      %v177 = vld [vmem:[%s1 + $0x20] sm:$0xf]
      %v178 = vld [vmem:[%s1 + $0x24] sm:$0xff]
      %v179 = vld [vmem:[%s1 + $0x2c] sm:$0xf]
      %v180 = vld [vmem:[%s165] sm:$0xf]
      %v181 = vld [vmem:[%s165 + $0x4] sm:$0xf]
      %v182 = vld [vmem:[%s165 + $0x8] sm:$0xf]
      %v183 = vld [vmem:[%s165 + $0xc] sm:$0xf]
      %v184 = vld [vmem:[%s165 + $0x10] sm:$0xf]
      %v185 = vld [vmem:[%s165 + $0x14] sm:$0xf]
      %v186 = vld [vmem:[%s165 + $0x18] sm:$0xf]
      %v187 = vld [vmem:[%s165 + $0x1c] sm:$0xf]
      %v188 = vld [vmem:[%s165 + $0x20] sm:$0xf]
      %v189 = vld [vmem:[%s165 + $0x24] sm:$0xf]
      %v190 = vld [vmem:[%s165 + $0x28] sm:$0xf]
      %v191 = vld [vmem:[%s165 + $0x2c] sm:$0xf]
      %v192 = vld [vmem:[%s165 + $0x30] sm:$0xf]
      %v193 = vld [vmem:[%s165 + $0x34] sm:$0xf]
      %v194 = vld [vmem:[%s165 + $0x38] sm:$0xf]
      %v195 = vld [vmem:[%s165 + $0x3c] sm:$0xf]
      %v196 = vld [vmem:[%s165 + $0x40] sm:$0xf]
      %v197 = vld [vmem:[%s165 + $0x44] sm:$0xf]
      %v198 = vld [vmem:[%s165 + $0x48] sm:$0xf]
      %v199 = vld [vmem:[%s165 + $0x4c] sm:$0xf]
      %v200 = vld [vmem:[%s165 + $0x50] sm:$0xf]
      %v201 = vld [vmem:[%s165 + $0x54] sm:$0xf]
      %v202 = vld [vmem:[%s165 + $0x58] sm:$0xf]
      %v203 = vld [vmem:[%s165 + $0x5c] sm:$0xf]
      %v204 = vld [vmem:[%s165 + $0x60] sm:$0xf]
      %v205 = vld [vmem:[%s165 + $0x64] sm:$0xf]
      %v206 = vld [vmem:[%s165 + $0x68] sm:$0xf]
      %v207 = vld [vmem:[%s165 + $0x6c] sm:$0xf]
      %v208 = vld [vmem:[%s165 + $0x70] sm:$0xf]
      %v209 = vld [vmem:[%s165 + $0x74] sm:$0xf]
      %v210 = vld [vmem:[%s165 + $0x78] sm:$0xf]
      %v211 = vld [vmem:[%s165 + $0x7c] sm:$0xf]
      %v212 = vld [vmem:[%s165 + $0x80] sm:$0xf]
      %v213 = vld [vmem:[%s165 + $0x84] sm:$0xf]
      %v214 = vld [vmem:[%s165 + $0x88] sm:$0xf]
      %v215 = vld [vmem:[%s165 + $0x8c] sm:$0xf]
      %v216 = vld [vmem:[%s2] sm:$0xff]
      %v217 = vld [vmem:[%s2 + $0x8] sm:$0xff]
      %v218 = vld [vmem:[%s2 + $0x10] sm:$0xff]
      %v219 = vld [vmem:[%s2 + $0x18] sm:$0xff]
      %221 = vset.pattern.permute.xlu0 0
      %222 = vperm.xlu0 %221, %v216
      %v223 = vpop.permute.xlu0 %222
      %226 = vset.pattern.permute.xlu0 0
      %227 = vperm.xlu0 %226, %v217
      %v228 = vpop.permute.xlu0 %227
      %231 = vset.pattern.permute.xlu0 0
      %232 = vperm.xlu0 %231, %v218
      %v233 = vpop.permute.xlu0 %232
      %236 = vset.pattern.permute.xlu0 0
      %237 = vperm.xlu0 %236, %v219
      %v238 = vpop.permute.xlu0 %237
      %v248 = vunpack.c.l.b16 %v172
      %v249 = vunpack.c.h.b16 %v172
      %v250 = vunpack.c.l.b16 %v173
      %v251 = vunpack.c.l.b16 %v174
      %v252 = vunpack.c.h.b16 %v174
      %v253 = vunpack.c.l.b16 %v175
      %v254 = vunpack.c.l.b16 %v176
      %v255 = vunpack.c.h.b16 %v176
      %v256 = vunpack.c.l.b16 %v177
      %v257 = vunpack.c.l.b16 %v178
      %v258 = vunpack.c.h.b16 %v178
      %v259 = vunpack.c.l.b16 %v179
      %v260 = vpack.c.b16 %v251, %v248
      %v261 = vpack.c.b16 %v252, %v249
      %v262 = vpack.c.b16 %v253, %v250
      %v263 = vpack.c.b16 %v257, %v254
      %v264 = vpack.c.b16 %v258, %v255
      %v265 = vpack.c.b16 %v259, %v256
      %v306 = vunpack.c.l.b16 %v180
      %v307 = vunpack.c.l.b16 %v181
      %v308 = vunpack.c.l.b16 %v182
      %v309 = vunpack.c.l.b16 %v183
      %v310 = vunpack.c.l.b16 %v184
      %v311 = vunpack.c.l.b16 %v185
      %v312 = vunpack.c.l.b16 %v186
      %v313 = vunpack.c.l.b16 %v187
      %v314 = vunpack.c.l.b16 %v188
      %v315 = vunpack.c.l.b16 %v189
      %v316 = vunpack.c.l.b16 %v190
      %v317 = vunpack.c.l.b16 %v191
      %v318 = vunpack.c.l.b16 %v192
      %v319 = vunpack.c.l.b16 %v193
      %v320 = vunpack.c.l.b16 %v194
      %v321 = vunpack.c.l.b16 %v195
      %v322 = vunpack.c.l.b16 %v196
      %v323 = vunpack.c.l.b16 %v197
      %v324 = vunpack.c.l.b16 %v198
      %v325 = vunpack.c.l.b16 %v199
      %v326 = vunpack.c.l.b16 %v200
      %v327 = vunpack.c.l.b16 %v201
      %v328 = vunpack.c.l.b16 %v202
      %v329 = vunpack.c.l.b16 %v203
      %v330 = vunpack.c.l.b16 %v204
      %v331 = vunpack.c.l.b16 %v205
      %v332 = vunpack.c.l.b16 %v206
      %v333 = vunpack.c.l.b16 %v207
      %v334 = vunpack.c.l.b16 %v208
      %v335 = vunpack.c.l.b16 %v209
      %v336 = vunpack.c.l.b16 %v210
      %v337 = vunpack.c.l.b16 %v211
      %v338 = vunpack.c.l.b16 %v212
      %v339 = vunpack.c.l.b16 %v213
      %v340 = vunpack.c.l.b16 %v214
      %v341 = vunpack.c.l.b16 %v215
      %v342 = vpack.c.b16 %v307, %v306
      %v343 = vpack.c.b16 %v309, %v308
      %v344 = vpack.c.b16 %v311, %v310
      %v345 = vpack.c.b16 %v313, %v312
      %v346 = vpack.c.b16 %v315, %v314
      %v347 = vpack.c.b16 %v317, %v316
      %v348 = vpack.c.b16 %v319, %v318
      %v349 = vpack.c.b16 %v321, %v320
      %v350 = vpack.c.b16 %v323, %v322
      %v351 = vpack.c.b16 %v325, %v324
      %v352 = vpack.c.b16 %v327, %v326
      %v353 = vpack.c.b16 %v329, %v328
      %v354 = vpack.c.b16 %v331, %v330
      %v355 = vpack.c.b16 %v333, %v332
      %v356 = vpack.c.b16 %v335, %v334
      %v357 = vpack.c.b16 %v337, %v336
      %v358 = vpack.c.b16 %v339, %v338
      %v359 = vpack.c.b16 %v341, %v340
      %vm378 = vcmask 261120
      %v380 = vsel %vm378, %v262, 0
      %v383 = vsel %vm378, %v265, 0
      %385 = vmatprep.subr.bf16.mxu0 0
      %386 = vmatpush1.bf16.msra.mxu0 %v342
      %387 = vmatprep.subr.bf16.mxu0 0
      %388 = vmatpush1.bf16.msra.mxu0 %v343
      %389 = vmatprep.subr.bf16.mxu0 0
      %390 = vmatpush1.bf16.msra.mxu0 %v344
      %391 = vmatprep.subr.bf16.mxu0 0
      %392 = vmatpush1.bf16.msra.mxu0 %v345
      %393 = vmatprep.subr.bf16.mxu0 0
      %394 = vmatpush1.bf16.msra.mxu0 %v346
      %395 = vmatprep.subr.bf16.mxu0 0
      %396 = vmatpush1.bf16.msra.mxu0 %v347
      %397 = vmatprep.subr.bf16.mxu0 0
      %398 = vmatpush1.bf16.msra.mxu0 %v348
      %399 = vmatprep.subr.bf16.mxu0 0
      %400 = vmatpush1.bf16.msra.mxu0 %v349
      %401 = vmatprep.subr.bf16.mxu0 0
      %402 = vmatpush1.bf16.msra.mxu0 %v350
      %403 = vmatprep.subr.bf16.mxu0 0
      %404 = vmatpush1.bf16.msra.mxu0 %v351
      %405 = vmatprep.subr.bf16.mxu0 0
      %406 = vmatpush1.bf16.msra.mxu0 %v352
      %407 = vmatprep.subr.bf16.mxu0 0
      %408 = vmatpush1.bf16.msra.mxu0 %v353
      %409 = vmatprep.subr.bf16.mxu0 0
      %410 = vmatpush1.bf16.msra.mxu0 %v354
      %411 = vmatprep.subr.bf16.mxu0 0
      %412 = vmatpush1.bf16.msra.mxu0 %v355
      %413 = vmatprep.subr.bf16.mxu0 0
      %414 = vmatpush1.bf16.msra.mxu0 %v356
      %415 = vmatprep.subr.bf16.mxu0 0
      %416 = vmatpush1.bf16.msra.mxu0 %v357
      %417 = vmatprep.mubr.bf16.mxu0 %v261
      %418 = vmatmul.mubr.bf16.gmra.mrb[0].mxu0 %v260
      %v419 = vpop.f32.mrb[0].mxu0
      %v420 = vadd.f32 %v223, %v419
      %v421 = vpop.f32.mrb[0].mxu0
      %v422 = vpop.f32.mrb[0].mxu0
      %v423 = vadd.f32 %v228, %v422
      %v424 = vpop.f32.mrb[0].mxu0
      %425 = vmatprep.mubr.bf16.mxu0 %v264
      %426 = vmatmul.mubr.bf16.gmra.mrb[0].mxu0 %v263
      %v427 = vpop.f32.mrb[0].mxu0
      %v428 = vadd.f32 %v233, %v427
      %v429 = vpop.f32.mrb[0].mxu0
      %v430 = vpop.f32.mrb[0].mxu0
      %v431 = vadd.f32 %v238, %v430
      %v432 = vpop.f32.mrb[0].mxu0
      %433 = vdwg.mxu0
      %434 = vmatprep.subr.bf16.mxu0 0
      %435 = vmatpush1.bf16.msra.mxu0 %v358
      %436 = vmatprep.subr.bf16.mxu0 0
      %437 = vmatpush1.bf16.msra.mxu0 %v359
      %438 = vmatprep.subr.bf16.mxu0 0
      %439 = vmatpush1.bf16.msra.mxu0 0
      %440 = vmatprep.subr.bf16.mxu0 0
      %441 = vmatpush1.bf16.msra.mxu0 0
      %442 = vmatprep.subr.bf16.mxu0 0
      %443 = vmatpush1.bf16.msra.mxu0 0
      %444 = vmatprep.subr.bf16.mxu0 0
      %445 = vmatpush1.bf16.msra.mxu0 0
      %446 = vmatprep.subr.bf16.mxu0 0
      %447 = vmatpush1.bf16.msra.mxu0 0
      %448 = vmatprep.subr.bf16.mxu0 0
      %449 = vmatpush1.bf16.msra.mxu0 0
      %450 = vmatprep.subr.bf16.mxu0 0
      %451 = vmatpush1.bf16.msra.mxu0 0
      %452 = vmatprep.subr.bf16.mxu0 0
      %453 = vmatpush1.bf16.msra.mxu0 0
      %454 = vmatprep.subr.bf16.mxu0 0
      %455 = vmatpush1.bf16.msra.mxu0 0
      %456 = vmatprep.subr.bf16.mxu0 0
      %457 = vmatpush1.bf16.msra.mxu0 0
      %458 = vmatprep.subr.bf16.mxu0 0
      %459 = vmatpush1.bf16.msra.mxu0 0
      %460 = vmatprep.subr.bf16.mxu0 0
      %461 = vmatpush1.bf16.msra.mxu0 0
      %462 = vmatprep.subr.bf16.mxu0 0
      %463 = vmatpush1.bf16.msra.mxu0 0
      %464 = vmatprep.subr.bf16.mxu0 0
      %465 = vmatpush1.bf16.msra.mxu0 0
      %466 = vmatprep.mubr.bf16.mxu0 0
      %467 = vmatmul.mubr.bf16.gmra.mrb[0].mxu0 %v380
      %v468 = vpop.f32.mrb[0].mxu0
      %v469 = vadd.f32 %v420, %v468
      %v470 = vpop.f32.mrb[0].mxu0
      %v471 = vpop.f32.mrb[0].mxu0
      %v472 = vadd.f32 %v423, %v471
      %v473 = vpop.f32.mrb[0].mxu0
      %474 = vmatprep.mubr.bf16.mxu0 0
      %475 = vmatmul.mubr.bf16.gmra.mrb[0].mxu0 %v383
      %v476 = vpop.f32.mrb[0].mxu0
      %v477 = vadd.f32 %v428, %v476
      %v478 = vpop.f32.mrb[0].mxu0
      %v479 = vpop.f32.mrb[0].mxu0
      %v480 = vadd.f32 %v431, %v479
      %v481 = vpop.f32.mrb[0].mxu0
      %482 = vdwg.mxu0
      %v483 = vsel %vm378, %v469, 0.0
      %484 = vadd.xlane.f32.xlu0 %v483
      %v485 = vpop.xlane.xlu0 %484
      %v486 = vsel %vm378, %v472, 0.0
      %487 = vadd.xlane.f32.xlu0 %v486
      %v488 = vpop.xlane.xlu0 %487
      %v489 = vsel %vm378, %v477, 0.0
      %490 = vadd.xlane.f32.xlu0 %v489
      %v491 = vpop.xlane.xlu0 %490
      %v492 = vsel %vm378, %v480, 0.0
      %493 = vadd.xlane.f32.xlu0 %v492
      %v494 = vpop.xlane.xlu0 %493
      %v495 = vrcp.pop 32.0
      %v496 = vmul.f32 %v485, %v495
      %v497 = vmul.f32 %v488, %v495
      %v498 = vmul.f32 %v491, %v495
      %v499 = vmul.f32 %v494, %v495
      %v500 = vsub.f32 %v469, %v496
      %v501 = vsub.f32 %v472, %v497
      %v502 = vsub.f32 %v477, %v498
      %v503 = vsub.f32 %v480, %v499
      %v504 = vmul.f32 %v500, %v500
      %v505 = vmul.f32 %v501, %v501
      %v506 = vmul.f32 %v502, %v502
      %v507 = vmul.f32 %v503, %v503
      %v508 = vsel %vm378, %v504, 0.0
      %509 = vadd.xlane.f32.xlu0 %v508
      %v510 = vpop.xlane.xlu0 %509
      %v511 = vsel %vm378, %v505, 0.0
      %512 = vadd.xlane.f32.xlu0 %v511
      %v513 = vpop.xlane.xlu0 %512
      %v514 = vsel %vm378, %v506, 0.0
      %515 = vadd.xlane.f32.xlu0 %v514
      %v516 = vpop.xlane.xlu0 %515
      %v517 = vsel %vm378, %v507, 0.0
      %518 = vadd.xlane.f32.xlu0 %v517
      %v519 = vpop.xlane.xlu0 %518
      %v520 = vmul.f32 %v510, %v495
      %v521 = vmul.f32 %v513, %v495
      %v522 = vmul.f32 %v516, %v495
      %v523 = vmul.f32 %v519, %v495
      %v524 = vadd.f32 %v520, 1e-05
      %v525 = vadd.f32 %v521, 1e-05
      %v526 = vadd.f32 %v522, 1e-05
      %v527 = vadd.f32 %v523, 1e-05
      %v528 = vrsqrt.pop %v524
      %v529 = vrsqrt.pop %v525
      %v530 = vrsqrt.pop %v526
      %v531 = vrsqrt.pop %v527
      %v532 = vmul.f32 %v500, %v528
      %v533 = vmul.f32 %v501, %v529
      %v534 = vmul.f32 %v502, %v530
      %v535 = vmul.f32 %v503, %v531
      %v536 = vmax.f32 %v532, 0.0
      %v537 = vmax.f32 %v533, 0.0
      %v538 = vmax.f32 %v534, 0.0
      %v539 = vmax.f32 %v535, 0.0
      %540 = vst.msk [vmem:[%s170] sm:$0xff] %vm378, %v536
      %541 = vst.msk [vmem:[%s170 + $0x8] sm:$0xff] %vm378, %v537
      %542 = vst.msk [vmem:[%s170 + $0x10] sm:$0xff] %vm378, %v538
      %543 = vst.msk [vmem:[%s170 + $0x18] sm:$0xff] %vm378, %v539
      %p544 = scmp.lt.s32.totalorder %s14, 1
      %s545 = scalar_select %p544, %s14, 1
      %s546 = smul.addr %s545, 4
      %s547 = smul.addr %s546, 8
      %s548 = scalar_lea.vmem %s3, %s547
      // Predicated region
      $region33: #{decoder_forward.7} parent=31 // pred_check
        %p549 = pneg %p100
      $region34: #{decoder_forward.7} parent=31 // pred_check_branch
        %551 = sbr.rel (%p549) target = $region36
      $region35: #{decoder_forward.7} parent=31 // pred_region
        _
      $region36: #{decoder_forward.7} parent=31 // pred_fallthru
        _
    $region32: #{decoder_forward.7} parent=5 // pred_fallthru
      _
    %p552 = scmp.le.s32.totalorder 2, %s9
    // Predicated region
    $region37: #{decoder_forward.7} parent=5 // pred_check
      %p553 = pneg %p552
    $region38: #{decoder_forward.7} parent=5 // pred_check_branch
      %555 = sbr.rel (%p553) target = $region40
    $region39: #{decoder_forward.7} parent=5 // pred_region
      %s556 = ssub.s32 %s9, 2
      // Predicated region
      $region41: #{decoder_forward.7} parent=39 // pred_check
        %p557 = pneg %p106
      $region42: #{decoder_forward.7} parent=39 // pred_check_branch
        %559 = sbr.rel (%p557) target = $region44
      $region43: #{decoder_forward.7} parent=39 // pred_region
        %p560 = scmp.lt.s32.totalorder %s15, 1
        %s561 = scalar_select %p560, %s15, 1
        %s562 = smul.addr %s561, 4
        %s563 = smul.addr %s562, 8
        %s564 = scalar_lea.vmem %s3, %s563
      $region44: #{decoder_forward.7} parent=39 // pred_fallthru
        _
    $region40: #{decoder_forward.7} parent=5 // pred_fallthru
      _
  $region6: #{decoder_forward.7} parent=0 // loop_footer
    %s13 = sadd.s32 1, %s9
  $region7: #{decoder_forward.7} parent=0 // loop_footer_branch
    %8 = sbr.rel target = $region3
  $region8: #{decoder_forward.7} parent=0 // loop_exit
    _

// kernel: decoder_forward.8
$region0: #{decoder_forward.8}
  #allocation0 [shape = 'u32[]', space=smem, size = 0x4, offset = 0x4, fixed_abs, tag = 'smem constant byte address 0x4 - core index']
  #allocation1 [shape = 'u32[144,128]{1,0:T(1,128)}', space=vmem, size = 0x12000, scoped, tag = 'internal scratch']
  %s0 = inlined_call_operand.vmem [shape: bf16[2,288,32], index: 0, kind: input, shape index: {}]
  %s1 = inlined_call_operand.vmem [shape: bf16[32,288], index: 1, kind: input, shape index: {}]
  %s2 = inlined_call_operand.vmem [shape: f32[32,1], index: 2, kind: input, shape index: {}]
  %s3 = inlined_call_operand.vmem [shape: f32[2,32,32], index: 3, kind: output, shape index: {}]
  %s4 = sld [smem:[#allocation0]]
  $region45: #{decoder_forward.8} parent=0
    _
  %s6 = ssub.s32 1, %s4
  %s7 = scalar_select 0, %s6, %s4
  loop: start=0, step=1, limit=4
  $region2: #{decoder_forward.8} parent=0 // loop_pre_header
    _
  $region3: #{decoder_forward.8} parent=0 // loop_header
    %s9 = sphi 0, %s13
    %p10 = scmp.ge.s32.totalorder %s9, 4
    %s19 = sphi 0, %s21
    %s22 = sphi 0, %s19
    %s23 = sphi 0, %s22
    %s39 = sphi 0, %s23
    %s43 = sphi 0, %s43
    %s45 = sphi 0, %s43
    %s46 = sphi 0, %s45
    %s60 = sphi 0, %s46
    %s64 = sphi 0, %s64
    %s66 = sphi 0, %s64
    %s67 = sphi 0, %s66
    %s81 = sphi 0, %s67
    %s87 = sphi 0, %s89
    %s90 = sphi 0, %s87
    %s91 = sphi 0, %s90
    %s107 = sphi 0, %s91
  $region4: #{decoder_forward.8} parent=0 // loop_header_branch
    %12 = sbr.rel (%p10) target = $region8
  $region5: #{decoder_forward.8} parent=0 // loop_body
    %s14 = ssub.s32 %s9, 1
    %s15 = ssub.s32 %s9, 2
    %s16 = sadd.s32 %s9, 1
    %s17 = ssub.s32 %s9, %s16
    %p18 = scmp.eq.s32.totalorder %s17, 0
    %s20 = sadd.s32 %s19, 1
    %s21 = scalar_select %p18, %s19, %s20
    %p24 = pneg %p18
    %p25 = scmp.eq.s32.totalorder %s9, 1
    %p26 = por %p24, %p25
    %p27 = scmp.ne.s32.totalorder %s19, %s22
    %p28 = scmp.eq.s32.totalorder %s9, 0
    %p29 = por %p27, %p28
    %p30 = scmp.ne.s32.totalorder %s19, %s22
    %p31 = scmp.eq.s32.totalorder %s14, 1
    %p32 = por %p30, %p31
    %p33 = scmp.ne.s32.totalorder %s22, %s23
    %p34 = scmp.eq.s32.totalorder %s14, 0
    %p35 = por %p33, %p34
    %p36 = scmp.ne.s32.totalorder %s22, %s23
    %p37 = scmp.eq.s32.totalorder %s15, 1
    %p38 = por %p36, %p37
    %p40 = scmp.ne.s32.totalorder %s23, %s39
    %p41 = scmp.eq.s32.totalorder %s15, 0
    %p42 = por %p40, %p41
    %s44 = sadd.s32 %s43, 1
    %p47 = scmp.eq.s32.totalorder %s9, 1
    %p48 = scmp.ne.s32.totalorder %s43, %s45
    %p49 = scmp.eq.s32.totalorder %s9, 0
    %p50 = por %p48, %p49
    %p51 = scmp.ne.s32.totalorder %s43, %s45
    %p52 = scmp.eq.s32.totalorder %s14, 1
    %p53 = por %p51, %p52
    %p54 = scmp.ne.s32.totalorder %s45, %s46
    %p55 = scmp.eq.s32.totalorder %s14, 0
    %p56 = por %p54, %p55
    %p57 = scmp.ne.s32.totalorder %s45, %s46
    %p58 = scmp.eq.s32.totalorder %s15, 1
    %p59 = por %p57, %p58
    %p61 = scmp.ne.s32.totalorder %s46, %s60
    %p62 = scmp.eq.s32.totalorder %s15, 0
    %p63 = por %p61, %p62
    %s65 = sadd.s32 %s64, 1
    %p68 = scmp.eq.s32.totalorder %s9, 1
    %p69 = scmp.ne.s32.totalorder %s64, %s66
    %p70 = scmp.eq.s32.totalorder %s9, 0
    %p71 = por %p69, %p70
    %p72 = scmp.ne.s32.totalorder %s64, %s66
    %p73 = scmp.eq.s32.totalorder %s14, 1
    %p74 = por %p72, %p73
    %p75 = scmp.ne.s32.totalorder %s66, %s67
    %p76 = scmp.eq.s32.totalorder %s14, 0
    %p77 = por %p75, %p76
    %p78 = scmp.ne.s32.totalorder %s66, %s67
    %p79 = scmp.eq.s32.totalorder %s15, 1
    %p80 = por %p78, %p79
    %p82 = scmp.ne.s32.totalorder %s67, %s81
    %p83 = scmp.eq.s32.totalorder %s15, 0
    %p84 = por %p82, %p83
    %s85 = ssub.s32 %s9, %s16
    %p86 = scmp.eq.s32.totalorder %s85, 0
    %s88 = sadd.s32 %s87, 1
    %s89 = scalar_select %p86, %s87, %s88
    %p92 = pneg %p86
    %p93 = scmp.eq.s32.totalorder %s9, 1
    %p94 = por %p92, %p93
    %p95 = scmp.ne.s32.totalorder %s87, %s90
    %p96 = scmp.eq.s32.totalorder %s9, 0
    %p97 = por %p95, %p96
    %p98 = scmp.ne.s32.totalorder %s87, %s90
    %p99 = scmp.eq.s32.totalorder %s14, 1
    %p100 = por %p98, %p99
    %p101 = scmp.ne.s32.totalorder %s90, %s91
    %p102 = scmp.eq.s32.totalorder %s14, 0
    %p103 = por %p101, %p102
    %p104 = scmp.ne.s32.totalorder %s90, %s91
    %p105 = scmp.eq.s32.totalorder %s15, 1
    %p106 = por %p104, %p105
    %p108 = scmp.ne.s32.totalorder %s91, %s107
    %p109 = scmp.eq.s32.totalorder %s15, 0
    %p110 = por %p108, %p109
    %p111 = scmp.le.s32.totalorder 1, %s9
    %p112 = scmp.lt.s32.totalorder %s9, 3
    %p113 = pnand %p111, %p112
    %p114 = pneg %p113
    // Predicated region
    $region9: #{decoder_forward.8} parent=5 // pred_check
      _
    $region10: #{decoder_forward.8} parent=5 // pred_check_branch
      %116 = sbr.rel (%p113) target = $region12
    $region11: #{decoder_forward.8} parent=5 // pred_region
      %s117 = ssub.s32 %s9, 1
      // Predicated region
      $region13: #{decoder_forward.8} parent=11 // pred_check
        %p118 = pneg %p56
      $region14: #{decoder_forward.8} parent=11 // pred_check_branch
        %120 = sbr.rel (%p118) target = $region16
      $region15: #{decoder_forward.8} parent=11 // pred_region
        _
      $region16: #{decoder_forward.8} parent=11 // pred_fallthru
        _
      // Predicated region
      $region17: #{decoder_forward.8} parent=11 // pred_check
        %p121 = pneg %p77
      $region18: #{decoder_forward.8} parent=11 // pred_check_branch
        %123 = sbr.rel (%p121) target = $region20
      $region19: #{decoder_forward.8} parent=11 // pred_region
        _
      $region20: #{decoder_forward.8} parent=11 // pred_fallthru
        _
    $region12: #{decoder_forward.8} parent=5 // pred_fallthru
      _
    %p124 = scmp.lt.s32.totalorder %s9, 2
    // Predicated region
    $region21: #{decoder_forward.8} parent=5 // pred_check
      %p125 = pneg %p124
    $region22: #{decoder_forward.8} parent=5 // pred_check_branch
      %127 = sbr.rel (%p125) target = $region24
    $region23: #{decoder_forward.8} parent=5 // pred_region
      // Predicated region
      $region25: #{decoder_forward.8} parent=23 // pred_check
        %p128 = pneg %p29
      $region26: #{decoder_forward.8} parent=23 // pred_check_branch
        %130 = sbr.rel (%p128) target = $region28
      $region27: #{decoder_forward.8} parent=23 // pred_region
        %p131 = scmp.lt.s32.totalorder %s9, 1
        %s132 = scalar_select %p131, %s9, 1
        %s133 = smul.addr %s132, 36
        %s134 = smul.addr %s133, 4
        %s135 = scalar_lea.vmem %s0, %s134
      $region28: #{decoder_forward.8} parent=23 // pred_fallthru
        _
    $region24: #{decoder_forward.8} parent=5 // pred_fallthru
      _
    %p136 = scmp.le.s32.totalorder 1, %s9
    %p137 = scmp.lt.s32.totalorder %s9, 3
    %p138 = pnand %p136, %p137
    %p139 = pneg %p138
    // Predicated region
    $region29: #{decoder_forward.8} parent=5 // pred_check
      _
    $region30: #{decoder_forward.8} parent=5 // pred_check_branch
      %141 = sbr.rel (%p138) target = $region32
    $region31: #{decoder_forward.8} parent=5 // pred_region
      %s142 = ssub.s32 %s9, 1
      %p143 = scmp.lt.s32.totalorder %s14, 1
      %s144 = scalar_select %p143, %s14, 1
      %s145 = smul.addr %s144, 36
      %s146 = smul.addr %s145, 4
      %s147 = scalar_lea.vmem %s0, %s146
      %p148 = pneg %p35
      %p149 = pneg %p32
      %p150 = pneg %p56
      %p151 = pneg %p53
      %p152 = pneg %p77
      %p153 = pneg %p74
      %p154 = pneg %p103
      %p155 = pneg %p100
      %p156 = scmp.lt.s32.totalorder %s14, 1
      %s157 = scalar_select %p156, %s14, 1
      %s158 = smul.addr %s157, 4
      %s159 = smul.addr %s158, 8
      %s160 = scalar_lea.vmem %s3, %s159
      %p161 = scmp.lt.s32.totalorder %s14, 1
      %s162 = scalar_select %p161, %s14, 1
      %s163 = smul.addr %s162, 36
      %s164 = smul.addr %s163, 4
      %s165 = scalar_lea.vmem %s0, %s164
      %p166 = scmp.lt.s32.totalorder %s14, 1
      %s167 = scalar_select %p166, %s14, 1
      %s168 = smul.addr %s167, 4
      %s169 = smul.addr %s168, 8
      %s170 = scalar_lea.vmem %s3, %s169
      %v172 = vld [vmem:[%s1] sm:$0xff]
      %v173 = vld [vmem:[%s1 + $0x8] sm:$0xf]
      %v174 = vld [vmem:[%s1 + $0xc] sm:$0xff]
      %v175 = vld [vmem:[%s1 + $0x14] sm:$0xf]
      %v176 = vld [vmem:[%s1 + $0x18] sm:$0xff]
      %v177 = vld [vmem:[%s1 + $0x20] sm:$0xf]
      %v178 = vld [vmem:[%s1 + $0x24] sm:$0xff]
      %v179 = vld [vmem:[%s1 + $0x2c] sm:$0xf]
      %v180 = vld [vmem:[%s165] sm:$0xf]
      %v181 = vld [vmem:[%s165 + $0x4] sm:$0xf]
      %v182 = vld [vmem:[%s165 + $0x8] sm:$0xf]
      %v183 = vld [vmem:[%s165 + $0xc] sm:$0xf]
      %v184 = vld [vmem:[%s165 + $0x10] sm:$0xf]
      %v185 = vld [vmem:[%s165 + $0x14] sm:$0xf]
      %v186 = vld [vmem:[%s165 + $0x18] sm:$0xf]
      %v187 = vld [vmem:[%s165 + $0x1c] sm:$0xf]
      %v188 = vld [vmem:[%s165 + $0x20] sm:$0xf]
      %v189 = vld [vmem:[%s165 + $0x24] sm:$0xf]
      %v190 = vld [vmem:[%s165 + $0x28] sm:$0xf]
      %v191 = vld [vmem:[%s165 + $0x2c] sm:$0xf]
      %v192 = vld [vmem:[%s165 + $0x30] sm:$0xf]
      %v193 = vld [vmem:[%s165 + $0x34] sm:$0xf]
      %v194 = vld [vmem:[%s165 + $0x38] sm:$0xf]
      %v195 = vld [vmem:[%s165 + $0x3c] sm:$0xf]
      %v196 = vld [vmem:[%s165 + $0x40] sm:$0xf]
      %v197 = vld [vmem:[%s165 + $0x44] sm:$0xf]
      %v198 = vld [vmem:[%s165 + $0x48] sm:$0xf]
      %v199 = vld [vmem:[%s165 + $0x4c] sm:$0xf]
      %v200 = vld [vmem:[%s165 + $0x50] sm:$0xf]
      %v201 = vld [vmem:[%s165 + $0x54] sm:$0xf]
      %v202 = vld [vmem:[%s165 + $0x58] sm:$0xf]
      %v203 = vld [vmem:[%s165 + $0x5c] sm:$0xf]
      %v204 = vld [vmem:[%s165 + $0x60] sm:$0xf]
      %v205 = vld [vmem:[%s165 + $0x64] sm:$0xf]
      %v206 = vld [vmem:[%s165 + $0x68] sm:$0xf]
      %v207 = vld [vmem:[%s165 + $0x6c] sm:$0xf]
      %v208 = vld [vmem:[%s165 + $0x70] sm:$0xf]
      %v209 = vld [vmem:[%s165 + $0x74] sm:$0xf]
      %v210 = vld [vmem:[%s165 + $0x78] sm:$0xf]
      %v211 = vld [vmem:[%s165 + $0x7c] sm:$0xf]
      %v212 = vld [vmem:[%s165 + $0x80] sm:$0xf]
      %v213 = vld [vmem:[%s165 + $0x84] sm:$0xf]
      %v214 = vld [vmem:[%s165 + $0x88] sm:$0xf]
      %v215 = vld [vmem:[%s165 + $0x8c] sm:$0xf]
      %v216 = vld [vmem:[%s2] sm:$0xff]
      %v217 = vld [vmem:[%s2 + $0x8] sm:$0xff]
      %v218 = vld [vmem:[%s2 + $0x10] sm:$0xff]
      %v219 = vld [vmem:[%s2 + $0x18] sm:$0xff]
      %221 = vset.pattern.permute.xlu0 0
      %222 = vperm.xlu0 %221, %v216
      %v223 = vpop.permute.xlu0 %222
      %226 = vset.pattern.permute.xlu0 0
      %227 = vperm.xlu0 %226, %v217
      %v228 = vpop.permute.xlu0 %227
      %231 = vset.pattern.permute.xlu0 0
      %232 = vperm.xlu0 %231, %v218
      %v233 = vpop.permute.xlu0 %232
      %236 = vset.pattern.permute.xlu0 0
      %237 = vperm.xlu0 %236, %v219
      %v238 = vpop.permute.xlu0 %237
      %v248 = vunpack.c.l.b16 %v172
      %v249 = vunpack.c.h.b16 %v172
      %v250 = vunpack.c.l.b16 %v173
      %v251 = vunpack.c.l.b16 %v174
      %v252 = vunpack.c.h.b16 %v174
      %v253 = vunpack.c.l.b16 %v175
      %v254 = vunpack.c.l.b16 %v176
      %v255 = vunpack.c.h.b16 %v176
      %v256 = vunpack.c.l.b16 %v177
      %v257 = vunpack.c.l.b16 %v178
      %v258 = vunpack.c.h.b16 %v178
      %v259 = vunpack.c.l.b16 %v179
      %v260 = vpack.c.b16 %v251, %v248
      %v261 = vpack.c.b16 %v252, %v249
      %v262 = vpack.c.b16 %v253, %v250
      %v263 = vpack.c.b16 %v257, %v254
      %v264 = vpack.c.b16 %v258, %v255
      %v265 = vpack.c.b16 %v259, %v256
      %v306 = vunpack.c.l.b16 %v180
      %v307 = vunpack.c.l.b16 %v181
      %v308 = vunpack.c.l.b16 %v182
      %v309 = vunpack.c.l.b16 %v183
      %v310 = vunpack.c.l.b16 %v184
      %v311 = vunpack.c.l.b16 %v185
      %v312 = vunpack.c.l.b16 %v186
      %v313 = vunpack.c.l.b16 %v187
      %v314 = vunpack.c.l.b16 %v188
      %v315 = vunpack.c.l.b16 %v189
      %v316 = vunpack.c.l.b16 %v190
      %v317 = vunpack.c.l.b16 %v191
      %v318 = vunpack.c.l.b16 %v192
      %v319 = vunpack.c.l.b16 %v193
      %v320 = vunpack.c.l.b16 %v194
      %v321 = vunpack.c.l.b16 %v195
      %v322 = vunpack.c.l.b16 %v196
      %v323 = vunpack.c.l.b16 %v197
      %v324 = vunpack.c.l.b16 %v198
      %v325 = vunpack.c.l.b16 %v199
      %v326 = vunpack.c.l.b16 %v200
      %v327 = vunpack.c.l.b16 %v201
      %v328 = vunpack.c.l.b16 %v202
      %v329 = vunpack.c.l.b16 %v203
      %v330 = vunpack.c.l.b16 %v204
      %v331 = vunpack.c.l.b16 %v205
      %v332 = vunpack.c.l.b16 %v206
      %v333 = vunpack.c.l.b16 %v207
      %v334 = vunpack.c.l.b16 %v208
      %v335 = vunpack.c.l.b16 %v209
      %v336 = vunpack.c.l.b16 %v210
      %v337 = vunpack.c.l.b16 %v211
      %v338 = vunpack.c.l.b16 %v212
      %v339 = vunpack.c.l.b16 %v213
      %v340 = vunpack.c.l.b16 %v214
      %v341 = vunpack.c.l.b16 %v215
      %v342 = vpack.c.b16 %v307, %v306
      %v343 = vpack.c.b16 %v309, %v308
      %v344 = vpack.c.b16 %v311, %v310
      %v345 = vpack.c.b16 %v313, %v312
      %v346 = vpack.c.b16 %v315, %v314
      %v347 = vpack.c.b16 %v317, %v316
      %v348 = vpack.c.b16 %v319, %v318
      %v349 = vpack.c.b16 %v321, %v320
      %v350 = vpack.c.b16 %v323, %v322
      %v351 = vpack.c.b16 %v325, %v324
      %v352 = vpack.c.b16 %v327, %v326
      %v353 = vpack.c.b16 %v329, %v328
      %v354 = vpack.c.b16 %v331, %v330
      %v355 = vpack.c.b16 %v333, %v332
      %v356 = vpack.c.b16 %v335, %v334
      %v357 = vpack.c.b16 %v337, %v336
      %v358 = vpack.c.b16 %v339, %v338
      %v359 = vpack.c.b16 %v341, %v340
      %vm378 = vcmask 261120
      %v380 = vsel %vm378, %v262, 0
      %v383 = vsel %vm378, %v265, 0
      %385 = vmatprep.subr.bf16.mxu0 0
      %386 = vmatpush1.bf16.msra.mxu0 %v342
      %387 = vmatprep.subr.bf16.mxu0 0
      %388 = vmatpush1.bf16.msra.mxu0 %v343
      %389 = vmatprep.subr.bf16.mxu0 0
      %390 = vmatpush1.bf16.msra.mxu0 %v344
      %391 = vmatprep.subr.bf16.mxu0 0
      %392 = vmatpush1.bf16.msra.mxu0 %v345
      %393 = vmatprep.subr.bf16.mxu0 0
      %394 = vmatpush1.bf16.msra.mxu0 %v346
      %395 = vmatprep.subr.bf16.mxu0 0
      %396 = vmatpush1.bf16.msra.mxu0 %v347
      %397 = vmatprep.subr.bf16.mxu0 0
      %398 = vmatpush1.bf16.msra.mxu0 %v348
      %399 = vmatprep.subr.bf16.mxu0 0
      %400 = vmatpush1.bf16.msra.mxu0 %v349
      %401 = vmatprep.subr.bf16.mxu0 0
      %402 = vmatpush1.bf16.msra.mxu0 %v350
      %403 = vmatprep.subr.bf16.mxu0 0
      %404 = vmatpush1.bf16.msra.mxu0 %v351
      %405 = vmatprep.subr.bf16.mxu0 0
      %406 = vmatpush1.bf16.msra.mxu0 %v352
      %407 = vmatprep.subr.bf16.mxu0 0
      %408 = vmatpush1.bf16.msra.mxu0 %v353
      %409 = vmatprep.subr.bf16.mxu0 0
      %410 = vmatpush1.bf16.msra.mxu0 %v354
      %411 = vmatprep.subr.bf16.mxu0 0
      %412 = vmatpush1.bf16.msra.mxu0 %v355
      %413 = vmatprep.subr.bf16.mxu0 0
      %414 = vmatpush1.bf16.msra.mxu0 %v356
      %415 = vmatprep.subr.bf16.mxu0 0
      %416 = vmatpush1.bf16.msra.mxu0 %v357
      %417 = vmatprep.mubr.bf16.mxu0 %v261
      %418 = vmatmul.mubr.bf16.gmra.mrb[0].mxu0 %v260
      %v419 = vpop.f32.mrb[0].mxu0
      %v420 = vadd.f32 %v223, %v419
      %v421 = vpop.f32.mrb[0].mxu0
      %v422 = vpop.f32.mrb[0].mxu0
      %v423 = vadd.f32 %v228, %v422
      %v424 = vpop.f32.mrb[0].mxu0
      %425 = vmatprep.mubr.bf16.mxu0 %v264
      %426 = vmatmul.mubr.bf16.gmra.mrb[0].mxu0 %v263
      %v427 = vpop.f32.mrb[0].mxu0
      %v428 = vadd.f32 %v233, %v427
      %v429 = vpop.f32.mrb[0].mxu0
      %v430 = vpop.f32.mrb[0].mxu0
      %v431 = vadd.f32 %v238, %v430
      %v432 = vpop.f32.mrb[0].mxu0
      %433 = vdwg.mxu0
      %434 = vmatprep.subr.bf16.mxu0 0
      %435 = vmatpush1.bf16.msra.mxu0 %v358
      %436 = vmatprep.subr.bf16.mxu0 0
      %437 = vmatpush1.bf16.msra.mxu0 %v359
      %438 = vmatprep.subr.bf16.mxu0 0
      %439 = vmatpush1.bf16.msra.mxu0 0
      %440 = vmatprep.subr.bf16.mxu0 0
      %441 = vmatpush1.bf16.msra.mxu0 0
      %442 = vmatprep.subr.bf16.mxu0 0
      %443 = vmatpush1.bf16.msra.mxu0 0
      %444 = vmatprep.subr.bf16.mxu0 0
      %445 = vmatpush1.bf16.msra.mxu0 0
      %446 = vmatprep.subr.bf16.mxu0 0
      %447 = vmatpush1.bf16.msra.mxu0 0
      %448 = vmatprep.subr.bf16.mxu0 0
      %449 = vmatpush1.bf16.msra.mxu0 0
      %450 = vmatprep.subr.bf16.mxu0 0
      %451 = vmatpush1.bf16.msra.mxu0 0
      %452 = vmatprep.subr.bf16.mxu0 0
      %453 = vmatpush1.bf16.msra.mxu0 0
      %454 = vmatprep.subr.bf16.mxu0 0
      %455 = vmatpush1.bf16.msra.mxu0 0
      %456 = vmatprep.subr.bf16.mxu0 0
      %457 = vmatpush1.bf16.msra.mxu0 0
      %458 = vmatprep.subr.bf16.mxu0 0
      %459 = vmatpush1.bf16.msra.mxu0 0
      %460 = vmatprep.subr.bf16.mxu0 0
      %461 = vmatpush1.bf16.msra.mxu0 0
      %462 = vmatprep.subr.bf16.mxu0 0
      %463 = vmatpush1.bf16.msra.mxu0 0
      %464 = vmatprep.subr.bf16.mxu0 0
      %465 = vmatpush1.bf16.msra.mxu0 0
      %466 = vmatprep.mubr.bf16.mxu0 0
      %467 = vmatmul.mubr.bf16.gmra.mrb[0].mxu0 %v380
      %v468 = vpop.f32.mrb[0].mxu0
      %v469 = vadd.f32 %v420, %v468
      %v470 = vpop.f32.mrb[0].mxu0
      %v471 = vpop.f32.mrb[0].mxu0
      %v472 = vadd.f32 %v423, %v471
      %v473 = vpop.f32.mrb[0].mxu0
      %474 = vmatprep.mubr.bf16.mxu0 0
      %475 = vmatmul.mubr.bf16.gmra.mrb[0].mxu0 %v383
      %v476 = vpop.f32.mrb[0].mxu0
      %v477 = vadd.f32 %v428, %v476
      %v478 = vpop.f32.mrb[0].mxu0
      %v479 = vpop.f32.mrb[0].mxu0
      %v480 = vadd.f32 %v431, %v479
      %v481 = vpop.f32.mrb[0].mxu0
      %482 = vdwg.mxu0
      %v483 = vsel %vm378, %v469, 0.0
      %484 = vadd.xlane.f32.xlu0 %v483
      %v485 = vpop.xlane.xlu0 %484
      %v486 = vsel %vm378, %v472, 0.0
      %487 = vadd.xlane.f32.xlu0 %v486
      %v488 = vpop.xlane.xlu0 %487
      %v489 = vsel %vm378, %v477, 0.0
      %490 = vadd.xlane.f32.xlu0 %v489
      %v491 = vpop.xlane.xlu0 %490
      %v492 = vsel %vm378, %v480, 0.0
      %493 = vadd.xlane.f32.xlu0 %v492
      %v494 = vpop.xlane.xlu0 %493
      %v495 = vrcp.pop 32.0
      %v496 = vmul.f32 %v485, %v495
      %v497 = vmul.f32 %v488, %v495
      %v498 = vmul.f32 %v491, %v495
      %v499 = vmul.f32 %v494, %v495
      %v500 = vsub.f32 %v469, %v496
      %v501 = vsub.f32 %v472, %v497
      %v502 = vsub.f32 %v477, %v498
      %v503 = vsub.f32 %v480, %v499
      %v504 = vmul.f32 %v500, %v500
      %v505 = vmul.f32 %v501, %v501
      %v506 = vmul.f32 %v502, %v502
      %v507 = vmul.f32 %v503, %v503
      %v508 = vsel %vm378, %v504, 0.0
      %509 = vadd.xlane.f32.xlu0 %v508
      %v510 = vpop.xlane.xlu0 %509
      %v511 = vsel %vm378, %v505, 0.0
      %512 = vadd.xlane.f32.xlu0 %v511
      %v513 = vpop.xlane.xlu0 %512
      %v514 = vsel %vm378, %v506, 0.0
      %515 = vadd.xlane.f32.xlu0 %v514
      %v516 = vpop.xlane.xlu0 %515
      %v517 = vsel %vm378, %v507, 0.0
      %518 = vadd.xlane.f32.xlu0 %v517
      %v519 = vpop.xlane.xlu0 %518
      %v520 = vmul.f32 %v510, %v495
      %v521 = vmul.f32 %v513, %v495
      %v522 = vmul.f32 %v516, %v495
      %v523 = vmul.f32 %v519, %v495
      %v524 = vadd.f32 %v520, 1e-05
      %v525 = vadd.f32 %v521, 1e-05
      %v526 = vadd.f32 %v522, 1e-05
      %v527 = vadd.f32 %v523, 1e-05
      %v528 = vrsqrt.pop %v524
      %v529 = vrsqrt.pop %v525
      %v530 = vrsqrt.pop %v526
      %v531 = vrsqrt.pop %v527
      %v532 = vmul.f32 %v500, %v528
      %v533 = vmul.f32 %v501, %v529
      %v534 = vmul.f32 %v502, %v530
      %v535 = vmul.f32 %v503, %v531
      %536 = vst.msk [vmem:[%s170] sm:$0xff] %vm378, %v532
      %537 = vst.msk [vmem:[%s170 + $0x8] sm:$0xff] %vm378, %v533
      %538 = vst.msk [vmem:[%s170 + $0x10] sm:$0xff] %vm378, %v534
      %539 = vst.msk [vmem:[%s170 + $0x18] sm:$0xff] %vm378, %v535
      %p540 = scmp.lt.s32.totalorder %s14, 1
      %s541 = scalar_select %p540, %s14, 1
      %s542 = smul.addr %s541, 4
      %s543 = smul.addr %s542, 8
      %s544 = scalar_lea.vmem %s3, %s543
      // Predicated region
      $region33: #{decoder_forward.8} parent=31 // pred_check
        %p545 = pneg %p100
      $region34: #{decoder_forward.8} parent=31 // pred_check_branch
        %547 = sbr.rel (%p545) target = $region36
      $region35: #{decoder_forward.8} parent=31 // pred_region
        _
      $region36: #{decoder_forward.8} parent=31 // pred_fallthru
        _
    $region32: #{decoder_forward.8} parent=5 // pred_fallthru
      _
    %p548 = scmp.le.s32.totalorder 2, %s9
    // Predicated region
    $region37: #{decoder_forward.8} parent=5 // pred_check
      %p549 = pneg %p548
    $region38: #{decoder_forward.8} parent=5 // pred_check_branch
      %551 = sbr.rel (%p549) target = $region40
    $region39: #{decoder_forward.8} parent=5 // pred_region
      %s552 = ssub.s32 %s9, 2
      // Predicated region
      $region41: #{decoder_forward.8} parent=39 // pred_check
        %p553 = pneg %p106
      $region42: #{decoder_forward.8} parent=39 // pred_check_branch
        %555 = sbr.rel (%p553) target = $region44
      $region43: #{decoder_forward.8} parent=39 // pred_region
        %p556 = scmp.lt.s32.totalorder %s15, 1
        %s557 = scalar_select %p556, %s15, 1
        %s558 = smul.addr %s557, 4
        %s559 = smul.addr %s558, 8
        %s560 = scalar_lea.vmem %s3, %s559
      $region44: #{decoder_forward.8} parent=39 // pred_fallthru
        _
    $region40: #{decoder_forward.8} parent=5 // pred_fallthru
      _
  $region6: #{decoder_forward.8} parent=0 // loop_footer
    %s13 = sadd.s32 1, %s9
  $region7: #{decoder_forward.8} parent=0 // loop_footer_branch
    %8 = sbr.rel target = $region3
  $region8: #{decoder_forward.8} parent=0 // loop_exit
    _

// kernel: decoder_forward.9
$region0: #{decoder_forward.9}
  #allocation0 [shape = 'u32[]', space=smem, size = 0x4, offset = 0x4, fixed_abs, tag = 'smem constant byte address 0x4 - core index']
  #allocation1 [shape = 'u32[144,128]{1,0:T(1,128)}', space=vmem, size = 0x12000, scoped, tag = 'internal scratch']
  %s0 = inlined_call_operand.vmem [shape: bf16[2,800,128], index: 0, kind: input, shape index: {}]
  %s1 = inlined_call_operand.vmem [shape: bf16[16,800], index: 1, kind: input, shape index: {}]
  %s2 = inlined_call_operand.vmem [shape: f32[16,1], index: 2, kind: input, shape index: {}]
  %s3 = inlined_call_operand.vmem [shape: f32[2,16,128], index: 3, kind: output, shape index: {}]
  %s4 = sld [smem:[#allocation0]]
  $region45: #{decoder_forward.9} parent=0
    _
  %s6 = ssub.s32 1, %s4
  %s7 = scalar_select 0, %s6, %s4
  loop: start=0, step=1, limit=4
  $region2: #{decoder_forward.9} parent=0 // loop_pre_header
    _
  $region3: #{decoder_forward.9} parent=0 // loop_header
    %s9 = sphi 0, %s13
    %p10 = scmp.ge.s32.totalorder %s9, 4
    %s19 = sphi 0, %s21
    %s22 = sphi 0, %s19
    %s23 = sphi 0, %s22
    %s39 = sphi 0, %s23
    %s43 = sphi 0, %s43
    %s45 = sphi 0, %s43
    %s46 = sphi 0, %s45
    %s60 = sphi 0, %s46
    %s64 = sphi 0, %s64
    %s66 = sphi 0, %s64
    %s67 = sphi 0, %s66
    %s81 = sphi 0, %s67
    %s87 = sphi 0, %s89
    %s90 = sphi 0, %s87
    %s91 = sphi 0, %s90
    %s107 = sphi 0, %s91
  $region4: #{decoder_forward.9} parent=0 // loop_header_branch
    %12 = sbr.rel (%p10) target = $region8
  $region5: #{decoder_forward.9} parent=0 // loop_body
    %s14 = ssub.s32 %s9, 1
    %s15 = ssub.s32 %s9, 2
    %s16 = sadd.s32 %s9, 1
    %s17 = ssub.s32 %s9, %s16
    %p18 = scmp.eq.s32.totalorder %s17, 0
    %s20 = sadd.s32 %s19, 1
    %s21 = scalar_select %p18, %s19, %s20
    %p24 = pneg %p18
    %p25 = scmp.eq.s32.totalorder %s9, 1
    %p26 = por %p24, %p25
    %p27 = scmp.ne.s32.totalorder %s19, %s22
    %p28 = scmp.eq.s32.totalorder %s9, 0
    %p29 = por %p27, %p28
    %p30 = scmp.ne.s32.totalorder %s19, %s22
    %p31 = scmp.eq.s32.totalorder %s14, 1
    %p32 = por %p30, %p31
    %p33 = scmp.ne.s32.totalorder %s22, %s23
    %p34 = scmp.eq.s32.totalorder %s14, 0
    %p35 = por %p33, %p34
    %p36 = scmp.ne.s32.totalorder %s22, %s23
    %p37 = scmp.eq.s32.totalorder %s15, 1
    %p38 = por %p36, %p37
    %p40 = scmp.ne.s32.totalorder %s23, %s39
    %p41 = scmp.eq.s32.totalorder %s15, 0
    %p42 = por %p40, %p41
    %s44 = sadd.s32 %s43, 1
    %p47 = scmp.eq.s32.totalorder %s9, 1
    %p48 = scmp.ne.s32.totalorder %s43, %s45
    %p49 = scmp.eq.s32.totalorder %s9, 0
    %p50 = por %p48, %p49
    %p51 = scmp.ne.s32.totalorder %s43, %s45
    %p52 = scmp.eq.s32.totalorder %s14, 1
    %p53 = por %p51, %p52
    %p54 = scmp.ne.s32.totalorder %s45, %s46
    %p55 = scmp.eq.s32.totalorder %s14, 0
    %p56 = por %p54, %p55
    %p57 = scmp.ne.s32.totalorder %s45, %s46
    %p58 = scmp.eq.s32.totalorder %s15, 1
    %p59 = por %p57, %p58
    %p61 = scmp.ne.s32.totalorder %s46, %s60
    %p62 = scmp.eq.s32.totalorder %s15, 0
    %p63 = por %p61, %p62
    %s65 = sadd.s32 %s64, 1
    %p68 = scmp.eq.s32.totalorder %s9, 1
    %p69 = scmp.ne.s32.totalorder %s64, %s66
    %p70 = scmp.eq.s32.totalorder %s9, 0
    %p71 = por %p69, %p70
    %p72 = scmp.ne.s32.totalorder %s64, %s66
    %p73 = scmp.eq.s32.totalorder %s14, 1
    %p74 = por %p72, %p73
    %p75 = scmp.ne.s32.totalorder %s66, %s67
    %p76 = scmp.eq.s32.totalorder %s14, 0
    %p77 = por %p75, %p76
    %p78 = scmp.ne.s32.totalorder %s66, %s67
    %p79 = scmp.eq.s32.totalorder %s15, 1
    %p80 = por %p78, %p79
    %p82 = scmp.ne.s32.totalorder %s67, %s81
    %p83 = scmp.eq.s32.totalorder %s15, 0
    %p84 = por %p82, %p83
    %s85 = ssub.s32 %s9, %s16
    %p86 = scmp.eq.s32.totalorder %s85, 0
    %s88 = sadd.s32 %s87, 1
    %s89 = scalar_select %p86, %s87, %s88
    %p92 = pneg %p86
    %p93 = scmp.eq.s32.totalorder %s9, 1
    %p94 = por %p92, %p93
    %p95 = scmp.ne.s32.totalorder %s87, %s90
    %p96 = scmp.eq.s32.totalorder %s9, 0
    %p97 = por %p95, %p96
    %p98 = scmp.ne.s32.totalorder %s87, %s90
    %p99 = scmp.eq.s32.totalorder %s14, 1
    %p100 = por %p98, %p99
    %p101 = scmp.ne.s32.totalorder %s90, %s91
    %p102 = scmp.eq.s32.totalorder %s14, 0
    %p103 = por %p101, %p102
    %p104 = scmp.ne.s32.totalorder %s90, %s91
    %p105 = scmp.eq.s32.totalorder %s15, 1
    %p106 = por %p104, %p105
    %p108 = scmp.ne.s32.totalorder %s91, %s107
    %p109 = scmp.eq.s32.totalorder %s15, 0
    %p110 = por %p108, %p109
    %p111 = scmp.le.s32.totalorder 1, %s9
    %p112 = scmp.lt.s32.totalorder %s9, 3
    %p113 = pnand %p111, %p112
    %p114 = pneg %p113
    // Predicated region
    $region9: #{decoder_forward.9} parent=5 // pred_check
      _
    $region10: #{decoder_forward.9} parent=5 // pred_check_branch
      %116 = sbr.rel (%p113) target = $region12
    $region11: #{decoder_forward.9} parent=5 // pred_region
      %s117 = ssub.s32 %s9, 1
      // Predicated region
      $region13: #{decoder_forward.9} parent=11 // pred_check
        %p118 = pneg %p56
      $region14: #{decoder_forward.9} parent=11 // pred_check_branch
        %120 = sbr.rel (%p118) target = $region16
      $region15: #{decoder_forward.9} parent=11 // pred_region
        _
      $region16: #{decoder_forward.9} parent=11 // pred_fallthru
        _
      // Predicated region
      $region17: #{decoder_forward.9} parent=11 // pred_check
        %p121 = pneg %p77
      $region18: #{decoder_forward.9} parent=11 // pred_check_branch
        %123 = sbr.rel (%p121) target = $region20
      $region19: #{decoder_forward.9} parent=11 // pred_region
        _
      $region20: #{decoder_forward.9} parent=11 // pred_fallthru
        _
    $region12: #{decoder_forward.9} parent=5 // pred_fallthru
      _
    %p124 = scmp.lt.s32.totalorder %s9, 2
    // Predicated region
    $region21: #{decoder_forward.9} parent=5 // pred_check
      %p125 = pneg %p124
    $region22: #{decoder_forward.9} parent=5 // pred_check_branch
      %127 = sbr.rel (%p125) target = $region24
    $region23: #{decoder_forward.9} parent=5 // pred_region
      // Predicated region
      $region25: #{decoder_forward.9} parent=23 // pred_check
        %p128 = pneg %p29
      $region26: #{decoder_forward.9} parent=23 // pred_check_branch
        %130 = sbr.rel (%p128) target = $region28
      $region27: #{decoder_forward.9} parent=23 // pred_region
        %p131 = scmp.lt.s32.totalorder %s9, 1
        %s132 = scalar_select %p131, %s9, 1
        %s133 = smul.addr %s132, 100
        %s134 = smul.addr %s133, 4
        %s135 = scalar_lea.vmem %s0, %s134
      $region28: #{decoder_forward.9} parent=23 // pred_fallthru
        _
    $region24: #{decoder_forward.9} parent=5 // pred_fallthru
      _
    %p136 = scmp.le.s32.totalorder 1, %s9
    %p137 = scmp.lt.s32.totalorder %s9, 3
    %p138 = pnand %p136, %p137
    %p139 = pneg %p138
    // Predicated region
    $region29: #{decoder_forward.9} parent=5 // pred_check
      _
    $region30: #{decoder_forward.9} parent=5 // pred_check_branch
      %141 = sbr.rel (%p138) target = $region32
    $region31: #{decoder_forward.9} parent=5 // pred_region
      %s142 = ssub.s32 %s9, 1
      %p143 = scmp.lt.s32.totalorder %s14, 1
      %s144 = scalar_select %p143, %s14, 1
      %s145 = smul.addr %s144, 100
      %s146 = smul.addr %s145, 4
      %s147 = scalar_lea.vmem %s0, %s146
      %p148 = pneg %p35
      %p149 = pneg %p32
      %p150 = pneg %p56
      %p151 = pneg %p53
      %p152 = pneg %p77
      %p153 = pneg %p74
      %p154 = pneg %p103
      %p155 = pneg %p100
      %p156 = scmp.lt.s32.totalorder %s14, 1
      %s157 = scalar_select %p156, %s14, 1
      %s158 = smul.addr %s157, 2
      %s159 = smul.addr %s158, 8
      %s160 = scalar_lea.vmem %s3, %s159
      %p161 = scmp.lt.s32.totalorder %s14, 1
      %s162 = scalar_select %p161, %s14, 1
      %s163 = smul.addr %s162, 100
      %s164 = smul.addr %s163, 4
      %s165 = scalar_lea.vmem %s0, %s164
      %p166 = scmp.lt.s32.totalorder %s14, 1
      %s167 = scalar_select %p166, %s14, 1
      %s168 = smul.addr %s167, 2
      %s169 = smul.addr %s168, 8
      %s170 = scalar_lea.vmem %s3, %s169
      %v172 = vld [vmem:[%s1] sm:$0xff]
      %v173 = vld [vmem:[%s1 + $0x8] sm:$0xff]
      %v174 = vld [vmem:[%s1 + $0x10] sm:$0xff]
      %v175 = vld [vmem:[%s1 + $0x18] sm:$0xf]
      %v176 = vld [vmem:[%s1 + $0x1c] sm:$0xff]
      %v177 = vld [vmem:[%s1 + $0x24] sm:$0xff]
      %v178 = vld [vmem:[%s1 + $0x2c] sm:$0xff]
      %v179 = vld [vmem:[%s1 + $0x34] sm:$0xf]
      %v180 = vld [vmem:[%s165] sm:$0xf]
      %v181 = vld [vmem:[%s165 + $0x4] sm:$0xf]
      %v182 = vld [vmem:[%s165 + $0x8] sm:$0xf]
      %v183 = vld [vmem:[%s165 + $0xc] sm:$0xf]
      %v184 = vld [vmem:[%s165 + $0x10] sm:$0xf]
      %v185 = vld [vmem:[%s165 + $0x14] sm:$0xf]
      %v186 = vld [vmem:[%s165 + $0x18] sm:$0xf]
      %v187 = vld [vmem:[%s165 + $0x1c] sm:$0xf]
      %v188 = vld [vmem:[%s165 + $0x20] sm:$0xf]
      %v189 = vld [vmem:[%s165 + $0x24] sm:$0xf]
      %v190 = vld [vmem:[%s165 + $0x28] sm:$0xf]
      %v191 = vld [vmem:[%s165 + $0x2c] sm:$0xf]
      %v192 = vld [vmem:[%s165 + $0x30] sm:$0xf]
      %v193 = vld [vmem:[%s165 + $0x34] sm:$0xf]
      %v194 = vld [vmem:[%s165 + $0x38] sm:$0xf]
      %v195 = vld [vmem:[%s165 + $0x3c] sm:$0xf]
      %v196 = vld [vmem:[%s165 + $0x40] sm:$0xf]
      %v197 = vld [vmem:[%s165 + $0x44] sm:$0xf]
      %v198 = vld [vmem:[%s165 + $0x48] sm:$0xf]
      %v199 = vld [vmem:[%s165 + $0x4c] sm:$0xf]
      %v200 = vld [vmem:[%s165 + $0x50] sm:$0xf]
      %v201 = vld [vmem:[%s165 + $0x54] sm:$0xf]
      %v202 = vld [vmem:[%s165 + $0x58] sm:$0xf]
      %v203 = vld [vmem:[%s165 + $0x5c] sm:$0xf]
      %v204 = vld [vmem:[%s165 + $0x60] sm:$0xf]
      %v205 = vld [vmem:[%s165 + $0x64] sm:$0xf]
      %v206 = vld [vmem:[%s165 + $0x68] sm:$0xf]
      %v207 = vld [vmem:[%s165 + $0x6c] sm:$0xf]
      %v208 = vld [vmem:[%s165 + $0x70] sm:$0xf]
      %v209 = vld [vmem:[%s165 + $0x74] sm:$0xf]
      %v210 = vld [vmem:[%s165 + $0x78] sm:$0xf]
      %v211 = vld [vmem:[%s165 + $0x7c] sm:$0xf]
      %v212 = vld [vmem:[%s165 + $0x80] sm:$0xf]
      %v213 = vld [vmem:[%s165 + $0x84] sm:$0xf]
      %v214 = vld [vmem:[%s165 + $0x88] sm:$0xf]
      %v215 = vld [vmem:[%s165 + $0x8c] sm:$0xf]
      %v216 = vld [vmem:[%s165 + $0x90] sm:$0xf]
      %v217 = vld [vmem:[%s165 + $0x94] sm:$0xf]
      %v218 = vld [vmem:[%s165 + $0x98] sm:$0xf]
      %v219 = vld [vmem:[%s165 + $0x9c] sm:$0xf]
      %v220 = vld [vmem:[%s165 + $0xa0] sm:$0xf]
      %v221 = vld [vmem:[%s165 + $0xa4] sm:$0xf]
      %v222 = vld [vmem:[%s165 + $0xa8] sm:$0xf]
      %v223 = vld [vmem:[%s165 + $0xac] sm:$0xf]
      %v224 = vld [vmem:[%s165 + $0xb0] sm:$0xf]
      %v225 = vld [vmem:[%s165 + $0xb4] sm:$0xf]
      %v226 = vld [vmem:[%s165 + $0xb8] sm:$0xf]
      %v227 = vld [vmem:[%s165 + $0xbc] sm:$0xf]
      %v228 = vld [vmem:[%s165 + $0xc0] sm:$0xf]
      %v229 = vld [vmem:[%s165 + $0xc4] sm:$0xf]
      %v230 = vld [vmem:[%s165 + $0xc8] sm:$0xf]
      %v231 = vld [vmem:[%s165 + $0xcc] sm:$0xf]
      %v232 = vld [vmem:[%s165 + $0xd0] sm:$0xf]
      %v233 = vld [vmem:[%s165 + $0xd4] sm:$0xf]
      %v234 = vld [vmem:[%s165 + $0xd8] sm:$0xf]
      %v235 = vld [vmem:[%s165 + $0xdc] sm:$0xf]
      %v236 = vld [vmem:[%s165 + $0xe0] sm:$0xf]
      %v237 = vld [vmem:[%s165 + $0xe4] sm:$0xf]
      %v238 = vld [vmem:[%s165 + $0xe8] sm:$0xf]
      %v239 = vld [vmem:[%s165 + $0xec] sm:$0xf]
      %v240 = vld [vmem:[%s165 + $0xf0] sm:$0xf]
      %v241 = vld [vmem:[%s165 + $0xf4] sm:$0xf]
      %v242 = vld [vmem:[%s165 + $0xf8] sm:$0xf]
      %v243 = vld [vmem:[%s165 + $0xfc] sm:$0xf]
      %v244 = vld [vmem:[%s165 + $0x100] sm:$0xf]
      %v245 = vld [vmem:[%s165 + $0x104] sm:$0xf]
      %v246 = vld [vmem:[%s165 + $0x108] sm:$0xf]
      %v247 = vld [vmem:[%s165 + $0x10c] sm:$0xf]
      %v248 = vld [vmem:[%s165 + $0x110] sm:$0xf]
      %v249 = vld [vmem:[%s165 + $0x114] sm:$0xf]
      %v250 = vld [vmem:[%s165 + $0x118] sm:$0xf]
      %v251 = vld [vmem:[%s165 + $0x11c] sm:$0xf]
      %v252 = vld [vmem:[%s165 + $0x120] sm:$0xf]
      %v253 = vld [vmem:[%s165 + $0x124] sm:$0xf]
      %v254 = vld [vmem:[%s165 + $0x128] sm:$0xf]
      %v255 = vld [vmem:[%s165 + $0x12c] sm:$0xf]
      %v256 = vld [vmem:[%s165 + $0x130] sm:$0xf]
      %v257 = vld [vmem:[%s165 + $0x134] sm:$0xf]
      %v258 = vld [vmem:[%s165 + $0x138] sm:$0xf]
      %v259 = vld [vmem:[%s165 + $0x13c] sm:$0xf]
      %v260 = vld [vmem:[%s165 + $0x140] sm:$0xf]
      %v261 = vld [vmem:[%s165 + $0x144] sm:$0xf]
      %v262 = vld [vmem:[%s165 + $0x148] sm:$0xf]
      %v263 = vld [vmem:[%s165 + $0x14c] sm:$0xf]
      %v264 = vld [vmem:[%s165 + $0x150] sm:$0xf]
      %v265 = vld [vmem:[%s165 + $0x154] sm:$0xf]
      %v266 = vld [vmem:[%s165 + $0x158] sm:$0xf]
      %v267 = vld [vmem:[%s165 + $0x15c] sm:$0xf]
      %v268 = vld [vmem:[%s165 + $0x160] sm:$0xf]
      %v269 = vld [vmem:[%s165 + $0x164] sm:$0xf]
      %v270 = vld [vmem:[%s165 + $0x168] sm:$0xf]
      %v271 = vld [vmem:[%s165 + $0x16c] sm:$0xf]
      %v272 = vld [vmem:[%s165 + $0x170] sm:$0xf]
      %v273 = vld [vmem:[%s165 + $0x174] sm:$0xf]
      %v274 = vld [vmem:[%s165 + $0x178] sm:$0xf]
      %v275 = vld [vmem:[%s165 + $0x17c] sm:$0xf]
      %v276 = vld [vmem:[%s165 + $0x180] sm:$0xf]
      %v277 = vld [vmem:[%s165 + $0x184] sm:$0xf]
      %v278 = vld [vmem:[%s165 + $0x188] sm:$0xf]
      %v279 = vld [vmem:[%s165 + $0x18c] sm:$0xf]
      %v280 = vld [vmem:[%s2] sm:$0xff]
      %v281 = vld [vmem:[%s2 + $0x8] sm:$0xff]
      %283 = vset.pattern.permute.xlu0 0
      %284 = vperm.xlu0 %283, %v280
      %v285 = vpop.permute.xlu0 %284
      %288 = vset.pattern.permute.xlu0 0
      %289 = vperm.xlu0 %288, %v281
      %v290 = vpop.permute.xlu0 %289
      %v300 = vunpack.c.l.b16 %v172
      %v301 = vunpack.c.h.b16 %v172
      %v302 = vunpack.c.l.b16 %v173
      %v303 = vunpack.c.h.b16 %v173
      %v304 = vunpack.c.l.b16 %v174
      %v305 = vunpack.c.h.b16 %v174
      %v306 = vunpack.c.l.b16 %v175
      %v307 = vunpack.c.l.b16 %v176
      %v308 = vunpack.c.h.b16 %v176
      %v309 = vunpack.c.l.b16 %v177
      %v310 = vunpack.c.h.b16 %v177
      %v311 = vunpack.c.l.b16 %v178
      %v312 = vunpack.c.h.b16 %v178
      %v313 = vunpack.c.l.b16 %v179
      %v314 = vpack.c.b16 %v307, %v300
      %v315 = vpack.c.b16 %v308, %v301
      %v316 = vpack.c.b16 %v309, %v302
      %v317 = vpack.c.b16 %v310, %v303
      %v318 = vpack.c.b16 %v311, %v304
      %v319 = vpack.c.b16 %v312, %v305
      %v320 = vpack.c.b16 %v313, %v306
      %v427 = vunpack.c.l.b16 %v180
      %v428 = vunpack.c.l.b16 %v181
      %v429 = vunpack.c.l.b16 %v182
      %v430 = vunpack.c.l.b16 %v183
      %v431 = vunpack.c.l.b16 %v184
      %v432 = vunpack.c.l.b16 %v185
      %v433 = vunpack.c.l.b16 %v186
      %v434 = vunpack.c.l.b16 %v187
      %v435 = vunpack.c.l.b16 %v188
      %v436 = vunpack.c.l.b16 %v189
      %v437 = vunpack.c.l.b16 %v190
      %v438 = vunpack.c.l.b16 %v191
      %v439 = vunpack.c.l.b16 %v192
      %v440 = vunpack.c.l.b16 %v193
      %v441 = vunpack.c.l.b16 %v194
      %v442 = vunpack.c.l.b16 %v195
      %v443 = vunpack.c.l.b16 %v196
      %v444 = vunpack.c.l.b16 %v197
      %v445 = vunpack.c.l.b16 %v198
      %v446 = vunpack.c.l.b16 %v199
      %v447 = vunpack.c.l.b16 %v200
      %v448 = vunpack.c.l.b16 %v201
      %v449 = vunpack.c.l.b16 %v202
      %v450 = vunpack.c.l.b16 %v203
      %v451 = vunpack.c.l.b16 %v204
      %v452 = vunpack.c.l.b16 %v205
      %v453 = vunpack.c.l.b16 %v206
      %v454 = vunpack.c.l.b16 %v207
      %v455 = vunpack.c.l.b16 %v208
      %v456 = vunpack.c.l.b16 %v209
      %v457 = vunpack.c.l.b16 %v210
      %v458 = vunpack.c.l.b16 %v211
      %v459 = vunpack.c.l.b16 %v212
      %v460 = vunpack.c.l.b16 %v213
      %v461 = vunpack.c.l.b16 %v214
      %v462 = vunpack.c.l.b16 %v215
      %v463 = vunpack.c.l.b16 %v216
      %v464 = vunpack.c.l.b16 %v217
      %v465 = vunpack.c.l.b16 %v218
      %v466 = vunpack.c.l.b16 %v219
      %v467 = vunpack.c.l.b16 %v220
      %v468 = vunpack.c.l.b16 %v221
      %v469 = vunpack.c.l.b16 %v222
      %v470 = vunpack.c.l.b16 %v223
      %v471 = vunpack.c.l.b16 %v224
      %v472 = vunpack.c.l.b16 %v225
      %v473 = vunpack.c.l.b16 %v226
      %v474 = vunpack.c.l.b16 %v227
      %v475 = vunpack.c.l.b16 %v228
      %v476 = vunpack.c.l.b16 %v229
      %v477 = vunpack.c.l.b16 %v230
      %v478 = vunpack.c.l.b16 %v231
      %v479 = vunpack.c.l.b16 %v232
      %v480 = vunpack.c.l.b16 %v233
      %v481 = vunpack.c.l.b16 %v234
      %v482 = vunpack.c.l.b16 %v235
      %v483 = vunpack.c.l.b16 %v236
      %v484 = vunpack.c.l.b16 %v237
      %v485 = vunpack.c.l.b16 %v238
      %v486 = vunpack.c.l.b16 %v239
      %v487 = vunpack.c.l.b16 %v240
      %v488 = vunpack.c.l.b16 %v241
      %v489 = vunpack.c.l.b16 %v242
      %v490 = vunpack.c.l.b16 %v243
      %v491 = vunpack.c.l.b16 %v244
      %v492 = vunpack.c.l.b16 %v245
      %v493 = vunpack.c.l.b16 %v246
      %v494 = vunpack.c.l.b16 %v247
      %v495 = vunpack.c.l.b16 %v248
      %v496 = vunpack.c.l.b16 %v249
      %v497 = vunpack.c.l.b16 %v250
      %v498 = vunpack.c.l.b16 %v251
      %v499 = vunpack.c.l.b16 %v252
      %v500 = vunpack.c.l.b16 %v253
      %v501 = vunpack.c.l.b16 %v254
      %v502 = vunpack.c.l.b16 %v255
      %v503 = vunpack.c.l.b16 %v256
      %v504 = vunpack.c.l.b16 %v257
      %v505 = vunpack.c.l.b16 %v258
      %v506 = vunpack.c.l.b16 %v259
      %v507 = vunpack.c.l.b16 %v260
      %v508 = vunpack.c.l.b16 %v261
      %v509 = vunpack.c.l.b16 %v262
      %v510 = vunpack.c.l.b16 %v263
      %v511 = vunpack.c.l.b16 %v264
      %v512 = vunpack.c.l.b16 %v265
      %v513 = vunpack.c.l.b16 %v266
      %v514 = vunpack.c.l.b16 %v267
      %v515 = vunpack.c.l.b16 %v268
      %v516 = vunpack.c.l.b16 %v269
      %v517 = vunpack.c.l.b16 %v270
      %v518 = vunpack.c.l.b16 %v271
      %v519 = vunpack.c.l.b16 %v272
      %v520 = vunpack.c.l.b16 %v273
      %v521 = vunpack.c.l.b16 %v274
      %v522 = vunpack.c.l.b16 %v275
      %v523 = vunpack.c.l.b16 %v276
      %v524 = vunpack.c.l.b16 %v277
      %v525 = vunpack.c.l.b16 %v278
      %v526 = vunpack.c.l.b16 %v279
      %v527 = vpack.c.b16 %v428, %v427
      %v528 = vpack.c.b16 %v430, %v429
      %v529 = vpack.c.b16 %v432, %v431
      %v530 = vpack.c.b16 %v434, %v433
      %v531 = vpack.c.b16 %v436, %v435
      %v532 = vpack.c.b16 %v438, %v437
      %v533 = vpack.c.b16 %v440, %v439
      %v534 = vpack.c.b16 %v442, %v441
      %v535 = vpack.c.b16 %v444, %v443
      %v536 = vpack.c.b16 %v446, %v445
      %v537 = vpack.c.b16 %v448, %v447
      %v538 = vpack.c.b16 %v450, %v449
      %v539 = vpack.c.b16 %v452, %v451
      %v540 = vpack.c.b16 %v454, %v453
      %v541 = vpack.c.b16 %v456, %v455
      %v542 = vpack.c.b16 %v458, %v457
      %v543 = vpack.c.b16 %v460, %v459
      %v544 = vpack.c.b16 %v462, %v461
      %v545 = vpack.c.b16 %v464, %v463
      %v546 = vpack.c.b16 %v466, %v465
      %v547 = vpack.c.b16 %v468, %v467
      %v548 = vpack.c.b16 %v470, %v469
      %v549 = vpack.c.b16 %v472, %v471
      %v550 = vpack.c.b16 %v474, %v473
      %v551 = vpack.c.b16 %v476, %v475
      %v552 = vpack.c.b16 %v478, %v477
      %v553 = vpack.c.b16 %v480, %v479
      %v554 = vpack.c.b16 %v482, %v481
      %v555 = vpack.c.b16 %v484, %v483
      %v556 = vpack.c.b16 %v486, %v485
      %v557 = vpack.c.b16 %v488, %v487
      %v558 = vpack.c.b16 %v490, %v489
      %v559 = vpack.c.b16 %v492, %v491
      %v560 = vpack.c.b16 %v494, %v493
      %v561 = vpack.c.b16 %v496, %v495
      %v562 = vpack.c.b16 %v498, %v497
      %v563 = vpack.c.b16 %v500, %v499
      %v564 = vpack.c.b16 %v502, %v501
      %v565 = vpack.c.b16 %v504, %v503
      %v566 = vpack.c.b16 %v506, %v505
      %v567 = vpack.c.b16 %v508, %v507
      %v568 = vpack.c.b16 %v510, %v509
      %v569 = vpack.c.b16 %v512, %v511
      %v570 = vpack.c.b16 %v514, %v513
      %v571 = vpack.c.b16 %v516, %v515
      %v572 = vpack.c.b16 %v518, %v517
      %v573 = vpack.c.b16 %v520, %v519
      %v574 = vpack.c.b16 %v522, %v521
      %v575 = vpack.c.b16 %v524, %v523
      %v576 = vpack.c.b16 %v526, %v525
      %vm627 = vcmask 261120
      %v629 = vsel %vm627, %v320, 0
      %631 = vmatprep.subr.bf16.mxu0 0
      %632 = vmatpush1.bf16.msra.mxu0 %v527
      %633 = vmatprep.subr.bf16.mxu0 0
      %634 = vmatpush1.bf16.msra.mxu0 %v528
      %635 = vmatprep.subr.bf16.mxu0 0
      %636 = vmatpush1.bf16.msra.mxu0 %v529
      %637 = vmatprep.subr.bf16.mxu0 0
      %638 = vmatpush1.bf16.msra.mxu0 %v530
      %639 = vmatprep.subr.bf16.mxu0 0
      %640 = vmatpush1.bf16.msra.mxu0 %v531
      %641 = vmatprep.subr.bf16.mxu0 0
      %642 = vmatpush1.bf16.msra.mxu0 %v532
      %643 = vmatprep.subr.bf16.mxu0 0
      %644 = vmatpush1.bf16.msra.mxu0 %v533
      %645 = vmatprep.subr.bf16.mxu0 0
      %646 = vmatpush1.bf16.msra.mxu0 %v534
      %647 = vmatprep.subr.bf16.mxu0 0
      %648 = vmatpush1.bf16.msra.mxu0 %v535
      %649 = vmatprep.subr.bf16.mxu0 0
      %650 = vmatpush1.bf16.msra.mxu0 %v536
      %651 = vmatprep.subr.bf16.mxu0 0
      %652 = vmatpush1.bf16.msra.mxu0 %v537
      %653 = vmatprep.subr.bf16.mxu0 0
      %654 = vmatpush1.bf16.msra.mxu0 %v538
      %655 = vmatprep.subr.bf16.mxu0 0
      %656 = vmatpush1.bf16.msra.mxu0 %v539
      %657 = vmatprep.subr.bf16.mxu0 0
      %658 = vmatpush1.bf16.msra.mxu0 %v540
      %659 = vmatprep.subr.bf16.mxu0 0
      %660 = vmatpush1.bf16.msra.mxu0 %v541
      %661 = vmatprep.subr.bf16.mxu0 0
      %662 = vmatpush1.bf16.msra.mxu0 %v542
      %663 = vmatprep.mubr.bf16.mxu0 %v315
      %664 = vmatmul.mubr.bf16.gmra.mrb[0].mxu0 %v314
      %v665 = vpop.f32.mrb[0].mxu0
      %v666 = vadd.f32 %v285, %v665
      %v667 = vpop.f32.mrb[0].mxu0
      %v668 = vpop.f32.mrb[0].mxu0
      %v669 = vadd.f32 %v290, %v668
      %v670 = vpop.f32.mrb[0].mxu0
      %671 = vdwg.mxu0
      %672 = vmatprep.subr.bf16.mxu0 0
      %673 = vmatpush1.bf16.msra.mxu0 %v543
      %674 = vmatprep.subr.bf16.mxu0 0
      %675 = vmatpush1.bf16.msra.mxu0 %v544
      %676 = vmatprep.subr.bf16.mxu0 0
      %677 = vmatpush1.bf16.msra.mxu0 %v545
      %678 = vmatprep.subr.bf16.mxu0 0
      %679 = vmatpush1.bf16.msra.mxu0 %v546
      %680 = vmatprep.subr.bf16.mxu0 0
      %681 = vmatpush1.bf16.msra.mxu0 %v547
      %682 = vmatprep.subr.bf16.mxu0 0
      %683 = vmatpush1.bf16.msra.mxu0 %v548
      %684 = vmatprep.subr.bf16.mxu0 0
      %685 = vmatpush1.bf16.msra.mxu0 %v549
      %686 = vmatprep.subr.bf16.mxu0 0
      %687 = vmatpush1.bf16.msra.mxu0 %v550
      %688 = vmatprep.subr.bf16.mxu0 0
      %689 = vmatpush1.bf16.msra.mxu0 %v551
      %690 = vmatprep.subr.bf16.mxu0 0
      %691 = vmatpush1.bf16.msra.mxu0 %v552
      %692 = vmatprep.subr.bf16.mxu0 0
      %693 = vmatpush1.bf16.msra.mxu0 %v553
      %694 = vmatprep.subr.bf16.mxu0 0
      %695 = vmatpush1.bf16.msra.mxu0 %v554
      %696 = vmatprep.subr.bf16.mxu0 0
      %697 = vmatpush1.bf16.msra.mxu0 %v555
      %698 = vmatprep.subr.bf16.mxu0 0
      %699 = vmatpush1.bf16.msra.mxu0 %v556
      %700 = vmatprep.subr.bf16.mxu0 0
      %701 = vmatpush1.bf16.msra.mxu0 %v557
      %702 = vmatprep.subr.bf16.mxu0 0
      %703 = vmatpush1.bf16.msra.mxu0 %v558
      %704 = vmatprep.mubr.bf16.mxu0 %v317
      %705 = vmatmul.mubr.bf16.gmra.mrb[0].mxu0 %v316
      %v706 = vpop.f32.mrb[0].mxu0
      %v707 = vadd.f32 %v666, %v706
      %v708 = vpop.f32.mrb[0].mxu0
      %v709 = vpop.f32.mrb[0].mxu0
      %v710 = vadd.f32 %v669, %v709
      %v711 = vpop.f32.mrb[0].mxu0
      %712 = vdwg.mxu0
      %713 = vmatprep.subr.bf16.mxu0 0
      %714 = vmatpush1.bf16.msra.mxu0 %v559
      %715 = vmatprep.subr.bf16.mxu0 0
      %716 = vmatpush1.bf16.msra.mxu0 %v560
      %717 = vmatprep.subr.bf16.mxu0 0
      %718 = vmatpush1.bf16.msra.mxu0 %v561
      %719 = vmatprep.subr.bf16.mxu0 0
      %720 = vmatpush1.bf16.msra.mxu0 %v562
      %721 = vmatprep.subr.bf16.mxu0 0
      %722 = vmatpush1.bf16.msra.mxu0 %v563
      %723 = vmatprep.subr.bf16.mxu0 0
      %724 = vmatpush1.bf16.msra.mxu0 %v564
      %725 = vmatprep.subr.bf16.mxu0 0
      %726 = vmatpush1.bf16.msra.mxu0 %v565
      %727 = vmatprep.subr.bf16.mxu0 0
      %728 = vmatpush1.bf16.msra.mxu0 %v566
      %729 = vmatprep.subr.bf16.mxu0 0
      %730 = vmatpush1.bf16.msra.mxu0 %v567
      %731 = vmatprep.subr.bf16.mxu0 0
      %732 = vmatpush1.bf16.msra.mxu0 %v568
      %733 = vmatprep.subr.bf16.mxu0 0
      %734 = vmatpush1.bf16.msra.mxu0 %v569
      %735 = vmatprep.subr.bf16.mxu0 0
      %736 = vmatpush1.bf16.msra.mxu0 %v570
      %737 = vmatprep.subr.bf16.mxu0 0
      %738 = vmatpush1.bf16.msra.mxu0 %v571
      %739 = vmatprep.subr.bf16.mxu0 0
      %740 = vmatpush1.bf16.msra.mxu0 %v572
      %741 = vmatprep.subr.bf16.mxu0 0
      %742 = vmatpush1.bf16.msra.mxu0 %v573
      %743 = vmatprep.subr.bf16.mxu0 0
      %744 = vmatpush1.bf16.msra.mxu0 %v574
      %745 = vmatprep.mubr.bf16.mxu0 %v319
      %746 = vmatmul.mubr.bf16.gmra.mrb[0].mxu0 %v318
      %v747 = vpop.f32.mrb[0].mxu0
      %v748 = vadd.f32 %v707, %v747
      %v749 = vpop.f32.mrb[0].mxu0
      %v750 = vpop.f32.mrb[0].mxu0
      %v751 = vadd.f32 %v710, %v750
      %v752 = vpop.f32.mrb[0].mxu0
      %753 = vdwg.mxu0
      %754 = vmatprep.subr.bf16.mxu0 0
      %755 = vmatpush1.bf16.msra.mxu0 %v575
      %756 = vmatprep.subr.bf16.mxu0 0
      %757 = vmatpush1.bf16.msra.mxu0 %v576
      %758 = vmatprep.subr.bf16.mxu0 0
      %759 = vmatpush1.bf16.msra.mxu0 0
      %760 = vmatprep.subr.bf16.mxu0 0
      %761 = vmatpush1.bf16.msra.mxu0 0
      %762 = vmatprep.subr.bf16.mxu0 0
      %763 = vmatpush1.bf16.msra.mxu0 0
      %764 = vmatprep.subr.bf16.mxu0 0
      %765 = vmatpush1.bf16.msra.mxu0 0
      %766 = vmatprep.subr.bf16.mxu0 0
      %767 = vmatpush1.bf16.msra.mxu0 0
      %768 = vmatprep.subr.bf16.mxu0 0
      %769 = vmatpush1.bf16.msra.mxu0 0
      %770 = vmatprep.subr.bf16.mxu0 0
      %771 = vmatpush1.bf16.msra.mxu0 0
      %772 = vmatprep.subr.bf16.mxu0 0
      %773 = vmatpush1.bf16.msra.mxu0 0
      %774 = vmatprep.subr.bf16.mxu0 0
      %775 = vmatpush1.bf16.msra.mxu0 0
      %776 = vmatprep.subr.bf16.mxu0 0
      %777 = vmatpush1.bf16.msra.mxu0 0
      %778 = vmatprep.subr.bf16.mxu0 0
      %779 = vmatpush1.bf16.msra.mxu0 0
      %780 = vmatprep.subr.bf16.mxu0 0
      %781 = vmatpush1.bf16.msra.mxu0 0
      %782 = vmatprep.subr.bf16.mxu0 0
      %783 = vmatpush1.bf16.msra.mxu0 0
      %784 = vmatprep.subr.bf16.mxu0 0
      %785 = vmatpush1.bf16.msra.mxu0 0
      %786 = vmatprep.mubr.bf16.mxu0 0
      %787 = vmatmul.mubr.bf16.gmra.mrb[0].mxu0 %v629
      %v788 = vpop.f32.mrb[0].mxu0
      %v789 = vadd.f32 %v748, %v788
      %v790 = vpop.f32.mrb[0].mxu0
      %v791 = vpop.f32.mrb[0].mxu0
      %v792 = vadd.f32 %v751, %v791
      %v793 = vpop.f32.mrb[0].mxu0
      %794 = vdwg.mxu0
      %795 = vadd.xlane.f32.xlu0 %v789
      %v796 = vpop.xlane.xlu0 %795
      %797 = vadd.xlane.f32.xlu0 %v792
      %v798 = vpop.xlane.xlu0 %797
      %v799 = vrcp.pop 128.0
      %v800 = vmul.f32 %v796, %v799
      %v801 = vmul.f32 %v798, %v799
      %v802 = vsub.f32 %v789, %v800
      %v803 = vsub.f32 %v792, %v801
      %v804 = vmul.f32 %v802, %v802
      %v805 = vmul.f32 %v803, %v803
      %806 = vadd.xlane.f32.xlu0 %v804
      %v807 = vpop.xlane.xlu0 %806
      %808 = vadd.xlane.f32.xlu0 %v805
      %v809 = vpop.xlane.xlu0 %808
      %v810 = vmul.f32 %v807, %v799
      %v811 = vmul.f32 %v809, %v799
      %v812 = vadd.f32 %v810, 1e-05
      %v813 = vadd.f32 %v811, 1e-05
      %v814 = vrsqrt.pop %v812
      %v815 = vrsqrt.pop %v813
      %v816 = vmul.f32 %v802, %v814
      %v817 = vmul.f32 %v803, %v815
      %v818 = vmax.f32 %v816, 0.0
      %v819 = vmax.f32 %v817, 0.0
      %820 = vst [vmem:[%s170] sm:$0xff] %v818
      %821 = vst [vmem:[%s170 + $0x8] sm:$0xff] %v819
      %p822 = scmp.lt.s32.totalorder %s14, 1
      %s823 = scalar_select %p822, %s14, 1
      %s824 = smul.addr %s823, 2
      %s825 = smul.addr %s824, 8
      %s826 = scalar_lea.vmem %s3, %s825
      // Predicated region
      $region33: #{decoder_forward.9} parent=31 // pred_check
        %p827 = pneg %p100
      $region34: #{decoder_forward.9} parent=31 // pred_check_branch
        %829 = sbr.rel (%p827) target = $region36
      $region35: #{decoder_forward.9} parent=31 // pred_region
        _
      $region36: #{decoder_forward.9} parent=31 // pred_fallthru
        _
    $region32: #{decoder_forward.9} parent=5 // pred_fallthru
      _
    %p830 = scmp.le.s32.totalorder 2, %s9
    // Predicated region
    $region37: #{decoder_forward.9} parent=5 // pred_check
      %p831 = pneg %p830
    $region38: #{decoder_forward.9} parent=5 // pred_check_branch
      %833 = sbr.rel (%p831) target = $region40
    $region39: #{decoder_forward.9} parent=5 // pred_region
      %s834 = ssub.s32 %s9, 2
      // Predicated region
      $region41: #{decoder_forward.9} parent=39 // pred_check
        %p835 = pneg %p106
      $region42: #{decoder_forward.9} parent=39 // pred_check_branch
        %837 = sbr.rel (%p835) target = $region44
      $region43: #{decoder_forward.9} parent=39 // pred_region
        %p838 = scmp.lt.s32.totalorder %s15, 1
        %s839 = scalar_select %p838, %s15, 1
        %s840 = smul.addr %s839, 2
        %s841 = smul.addr %s840, 8
        %s842 = scalar_lea.vmem %s3, %s841
      $region44: #{decoder_forward.9} parent=39 // pred_fallthru
        _
    $region40: #{decoder_forward.9} parent=5 // pred_fallthru
      _
  $region6: #{decoder_forward.9} parent=0 // loop_footer
    %s13 = sadd.s32 1, %s9
  $region7: #{decoder_forward.9} parent=0 // loop_footer_branch
    %8 = sbr.rel target = $region3
  $region8: #{decoder_forward.9} parent=0 // loop_exit
    _

// kernel: decoder_forward.10
$region0: #{decoder_forward.10}
  #allocation0 [shape = 'u32[]', space=smem, size = 0x4, offset = 0x4, fixed_abs, tag = 'smem constant byte address 0x4 - core index']
  #allocation1 [shape = 'u32[144,128]{1,0:T(1,128)}', space=vmem, size = 0x12000, scoped, tag = 'internal scratch']
  %s0 = inlined_call_operand.vmem [shape: bf16[2,400,512], index: 0, kind: input, shape index: {}]
  %s1 = inlined_call_operand.vmem [shape: bf16[8,400], index: 1, kind: input, shape index: {}]
  %s2 = inlined_call_operand.vmem [shape: f32[8,1], index: 2, kind: input, shape index: {}]
  %s3 = inlined_call_operand.vmem [shape: f32[2,8,512], index: 3, kind: output, shape index: {}]
  %s4 = sld [smem:[#allocation0]]
  $region45: #{decoder_forward.10} parent=0
    _
  %s6 = ssub.s32 1, %s4
  %s7 = scalar_select 0, %s6, %s4
  loop: start=0, step=1, limit=4
  $region2: #{decoder_forward.10} parent=0 // loop_pre_header
    _
  $region3: #{decoder_forward.10} parent=0 // loop_header
    %s9 = sphi 0, %s13
    %p10 = scmp.ge.s32.totalorder %s9, 4
    %s19 = sphi 0, %s21
    %s22 = sphi 0, %s19
    %s23 = sphi 0, %s22
    %s39 = sphi 0, %s23
    %s43 = sphi 0, %s43
    %s45 = sphi 0, %s43
    %s46 = sphi 0, %s45
    %s60 = sphi 0, %s46
    %s64 = sphi 0, %s64
    %s66 = sphi 0, %s64
    %s67 = sphi 0, %s66
    %s81 = sphi 0, %s67
    %s87 = sphi 0, %s89
    %s90 = sphi 0, %s87
    %s91 = sphi 0, %s90
    %s107 = sphi 0, %s91
  $region4: #{decoder_forward.10} parent=0 // loop_header_branch
    %12 = sbr.rel (%p10) target = $region8
  $region5: #{decoder_forward.10} parent=0 // loop_body
    %s14 = ssub.s32 %s9, 1
    %s15 = ssub.s32 %s9, 2
    %s16 = sadd.s32 %s9, 1
    %s17 = ssub.s32 %s9, %s16
    %p18 = scmp.eq.s32.totalorder %s17, 0
    %s20 = sadd.s32 %s19, 1
    %s21 = scalar_select %p18, %s19, %s20
    %p24 = pneg %p18
    %p25 = scmp.eq.s32.totalorder %s9, 1
    %p26 = por %p24, %p25
    %p27 = scmp.ne.s32.totalorder %s19, %s22
    %p28 = scmp.eq.s32.totalorder %s9, 0
    %p29 = por %p27, %p28
    %p30 = scmp.ne.s32.totalorder %s19, %s22
    %p31 = scmp.eq.s32.totalorder %s14, 1
    %p32 = por %p30, %p31
    %p33 = scmp.ne.s32.totalorder %s22, %s23
    %p34 = scmp.eq.s32.totalorder %s14, 0
    %p35 = por %p33, %p34
    %p36 = scmp.ne.s32.totalorder %s22, %s23
    %p37 = scmp.eq.s32.totalorder %s15, 1
    %p38 = por %p36, %p37
    %p40 = scmp.ne.s32.totalorder %s23, %s39
    %p41 = scmp.eq.s32.totalorder %s15, 0
    %p42 = por %p40, %p41
    %s44 = sadd.s32 %s43, 1
    %p47 = scmp.eq.s32.totalorder %s9, 1
    %p48 = scmp.ne.s32.totalorder %s43, %s45
    %p49 = scmp.eq.s32.totalorder %s9, 0
    %p50 = por %p48, %p49
    %p51 = scmp.ne.s32.totalorder %s43, %s45
    %p52 = scmp.eq.s32.totalorder %s14, 1
    %p53 = por %p51, %p52
    %p54 = scmp.ne.s32.totalorder %s45, %s46
    %p55 = scmp.eq.s32.totalorder %s14, 0
    %p56 = por %p54, %p55
    %p57 = scmp.ne.s32.totalorder %s45, %s46
    %p58 = scmp.eq.s32.totalorder %s15, 1
    %p59 = por %p57, %p58
    %p61 = scmp.ne.s32.totalorder %s46, %s60
    %p62 = scmp.eq.s32.totalorder %s15, 0
    %p63 = por %p61, %p62
    %s65 = sadd.s32 %s64, 1
    %p68 = scmp.eq.s32.totalorder %s9, 1
    %p69 = scmp.ne.s32.totalorder %s64, %s66
    %p70 = scmp.eq.s32.totalorder %s9, 0
    %p71 = por %p69, %p70
    %p72 = scmp.ne.s32.totalorder %s64, %s66
    %p73 = scmp.eq.s32.totalorder %s14, 1
    %p74 = por %p72, %p73
    %p75 = scmp.ne.s32.totalorder %s66, %s67
    %p76 = scmp.eq.s32.totalorder %s14, 0
    %p77 = por %p75, %p76
    %p78 = scmp.ne.s32.totalorder %s66, %s67
    %p79 = scmp.eq.s32.totalorder %s15, 1
    %p80 = por %p78, %p79
    %p82 = scmp.ne.s32.totalorder %s67, %s81
    %p83 = scmp.eq.s32.totalorder %s15, 0
    %p84 = por %p82, %p83
    %s85 = ssub.s32 %s9, %s16
    %p86 = scmp.eq.s32.totalorder %s85, 0
    %s88 = sadd.s32 %s87, 1
    %s89 = scalar_select %p86, %s87, %s88
    %p92 = pneg %p86
    %p93 = scmp.eq.s32.totalorder %s9, 1
    %p94 = por %p92, %p93
    %p95 = scmp.ne.s32.totalorder %s87, %s90
    %p96 = scmp.eq.s32.totalorder %s9, 0
    %p97 = por %p95, %p96
    %p98 = scmp.ne.s32.totalorder %s87, %s90
    %p99 = scmp.eq.s32.totalorder %s14, 1
    %p100 = por %p98, %p99
    %p101 = scmp.ne.s32.totalorder %s90, %s91
    %p102 = scmp.eq.s32.totalorder %s14, 0
    %p103 = por %p101, %p102
    %p104 = scmp.ne.s32.totalorder %s90, %s91
    %p105 = scmp.eq.s32.totalorder %s15, 1
    %p106 = por %p104, %p105
    %p108 = scmp.ne.s32.totalorder %s91, %s107
    %p109 = scmp.eq.s32.totalorder %s15, 0
    %p110 = por %p108, %p109
    %p111 = scmp.le.s32.totalorder 1, %s9
    %p112 = scmp.lt.s32.totalorder %s9, 3
    %p113 = pnand %p111, %p112
    %p114 = pneg %p113
    // Predicated region
    $region9: #{decoder_forward.10} parent=5 // pred_check
      _
    $region10: #{decoder_forward.10} parent=5 // pred_check_branch
      %116 = sbr.rel (%p113) target = $region12
    $region11: #{decoder_forward.10} parent=5 // pred_region
      %s117 = ssub.s32 %s9, 1
      // Predicated region
      $region13: #{decoder_forward.10} parent=11 // pred_check
        %p118 = pneg %p56
      $region14: #{decoder_forward.10} parent=11 // pred_check_branch
        %120 = sbr.rel (%p118) target = $region16
      $region15: #{decoder_forward.10} parent=11 // pred_region
        _
      $region16: #{decoder_forward.10} parent=11 // pred_fallthru
        _
      // Predicated region
      $region17: #{decoder_forward.10} parent=11 // pred_check
        %p121 = pneg %p77
      $region18: #{decoder_forward.10} parent=11 // pred_check_branch
        %123 = sbr.rel (%p121) target = $region20
      $region19: #{decoder_forward.10} parent=11 // pred_region
        _
      $region20: #{decoder_forward.10} parent=11 // pred_fallthru
        _
    $region12: #{decoder_forward.10} parent=5 // pred_fallthru
      _
    %p124 = scmp.lt.s32.totalorder %s9, 2
    // Predicated region
    $region21: #{decoder_forward.10} parent=5 // pred_check
      %p125 = pneg %p124
    $region22: #{decoder_forward.10} parent=5 // pred_check_branch
      %127 = sbr.rel (%p125) target = $region24
    $region23: #{decoder_forward.10} parent=5 // pred_region
      // Predicated region
      $region25: #{decoder_forward.10} parent=23 // pred_check
        %p128 = pneg %p29
      $region26: #{decoder_forward.10} parent=23 // pred_check_branch
        %130 = sbr.rel (%p128) target = $region28
      $region27: #{decoder_forward.10} parent=23 // pred_region
        %p131 = scmp.lt.s32.totalorder %s9, 1
        %s132 = scalar_select %p131, %s9, 1
        %s133 = smul.addr %s132, 200
        %s134 = smul.addr %s133, 4
        %s135 = scalar_lea.vmem %s0, %s134
      $region28: #{decoder_forward.10} parent=23 // pred_fallthru
        _
    $region24: #{decoder_forward.10} parent=5 // pred_fallthru
      _
    %p136 = scmp.le.s32.totalorder 1, %s9
    %p137 = scmp.lt.s32.totalorder %s9, 3
    %p138 = pnand %p136, %p137
    %p139 = pneg %p138
    // Predicated region
    $region29: #{decoder_forward.10} parent=5 // pred_check
      _
    $region30: #{decoder_forward.10} parent=5 // pred_check_branch
      %141 = sbr.rel (%p138) target = $region32
    $region31: #{decoder_forward.10} parent=5 // pred_region
      %s142 = ssub.s32 %s9, 1
      %p143 = scmp.lt.s32.totalorder %s14, 1
      %s144 = scalar_select %p143, %s14, 1
      %s145 = smul.addr %s144, 200
      %s146 = smul.addr %s145, 4
      %s147 = scalar_lea.vmem %s0, %s146
      %p148 = pneg %p35
      %p149 = pneg %p32
      %p150 = pneg %p56
      %p151 = pneg %p53
      %p152 = pneg %p77
      %p153 = pneg %p74
      %p154 = pneg %p103
      %p155 = pneg %p100
      %p156 = scmp.lt.s32.totalorder %s14, 1
      %s157 = scalar_select %p156, %s14, 1
      %s158 = smul.addr %s157, 4
      %s159 = smul.addr %s158, 8
      %s160 = scalar_lea.vmem %s3, %s159
      %p161 = scmp.lt.s32.totalorder %s14, 1
      %s162 = scalar_select %p161, %s14, 1
      %s163 = smul.addr %s162, 200
      %s164 = smul.addr %s163, 4
      %s165 = scalar_lea.vmem %s0, %s164
      %p166 = scmp.lt.s32.totalorder %s14, 1
      %s167 = scalar_select %p166, %s14, 1
      %s168 = smul.addr %s167, 4
      %s169 = smul.addr %s168, 8
      %s170 = scalar_lea.vmem %s3, %s169
      %v172 = vld [vmem:[%s1] sm:$0xff]
      %v173 = vld [vmem:[%s1 + $0x8] sm:$0xff]
      %v174 = vld [vmem:[%s165] sm:$0xff]
      %v175 = vld [vmem:[%s165 + $0x8] sm:$0xff]
      %v176 = vld [vmem:[%s165 + $0x10] sm:$0xff]
      %v177 = vld [vmem:[%s165 + $0x18] sm:$0xff]
      %v178 = vld [vmem:[%s165 + $0x20] sm:$0xff]
      %v179 = vld [vmem:[%s165 + $0x28] sm:$0xff]
      %v180 = vld [vmem:[%s165 + $0x30] sm:$0xff]
      %v181 = vld [vmem:[%s165 + $0x38] sm:$0xff]
      %v182 = vld [vmem:[%s165 + $0x40] sm:$0xff]
      %v183 = vld [vmem:[%s165 + $0x48] sm:$0xff]
      %v184 = vld [vmem:[%s165 + $0x50] sm:$0xff]
      %v185 = vld [vmem:[%s165 + $0x58] sm:$0xff]
      %v186 = vld [vmem:[%s165 + $0x60] sm:$0xff]
      %v187 = vld [vmem:[%s165 + $0x68] sm:$0xff]
      %v188 = vld [vmem:[%s165 + $0x70] sm:$0xff]
      %v189 = vld [vmem:[%s165 + $0x78] sm:$0xff]
      %v190 = vld [vmem:[%s165 + $0x80] sm:$0xff]
      %v191 = vld [vmem:[%s165 + $0x88] sm:$0xff]
      %v192 = vld [vmem:[%s165 + $0x90] sm:$0xff]
      %v193 = vld [vmem:[%s165 + $0x98] sm:$0xff]
      %v194 = vld [vmem:[%s165 + $0xa0] sm:$0xff]
      %v195 = vld [vmem:[%s165 + $0xa8] sm:$0xff]
      %v196 = vld [vmem:[%s165 + $0xb0] sm:$0xff]
      %v197 = vld [vmem:[%s165 + $0xb8] sm:$0xff]
      %v198 = vld [vmem:[%s165 + $0xc0] sm:$0xff]
      %v199 = vld [vmem:[%s165 + $0xc8] sm:$0xff]
      %v200 = vld [vmem:[%s165 + $0xd0] sm:$0xff]
      %v201 = vld [vmem:[%s165 + $0xd8] sm:$0xff]
      %v202 = vld [vmem:[%s165 + $0xe0] sm:$0xff]
      %v203 = vld [vmem:[%s165 + $0xe8] sm:$0xff]
      %v204 = vld [vmem:[%s165 + $0xf0] sm:$0xff]
      %v205 = vld [vmem:[%s165 + $0xf8] sm:$0xff]
      %v206 = vld [vmem:[%s165 + $0x100] sm:$0xff]
      %v207 = vld [vmem:[%s165 + $0x108] sm:$0xff]
      %v208 = vld [vmem:[%s165 + $0x110] sm:$0xff]
      %v209 = vld [vmem:[%s165 + $0x118] sm:$0xff]
      %v210 = vld [vmem:[%s165 + $0x120] sm:$0xff]
      %v211 = vld [vmem:[%s165 + $0x128] sm:$0xff]
      %v212 = vld [vmem:[%s165 + $0x130] sm:$0xff]
      %v213 = vld [vmem:[%s165 + $0x138] sm:$0xff]
      %v214 = vld [vmem:[%s165 + $0x140] sm:$0xff]
      %v215 = vld [vmem:[%s165 + $0x148] sm:$0xff]
      %v216 = vld [vmem:[%s165 + $0x150] sm:$0xff]
      %v217 = vld [vmem:[%s165 + $0x158] sm:$0xff]
      %v218 = vld [vmem:[%s165 + $0x160] sm:$0xff]
      %v219 = vld [vmem:[%s165 + $0x168] sm:$0xff]
      %v220 = vld [vmem:[%s165 + $0x170] sm:$0xff]
      %v221 = vld [vmem:[%s165 + $0x178] sm:$0xff]
      %v222 = vld [vmem:[%s165 + $0x180] sm:$0xff]
      %v223 = vld [vmem:[%s165 + $0x188] sm:$0xff]
      %v224 = vld [vmem:[%s165 + $0x190] sm:$0xff]
      %v225 = vld [vmem:[%s165 + $0x198] sm:$0xff]
      %v226 = vld [vmem:[%s165 + $0x1a0] sm:$0xff]
      %v227 = vld [vmem:[%s165 + $0x1a8] sm:$0xff]
      %v228 = vld [vmem:[%s165 + $0x1b0] sm:$0xff]
      %v229 = vld [vmem:[%s165 + $0x1b8] sm:$0xff]
      %v230 = vld [vmem:[%s165 + $0x1c0] sm:$0xff]
      %v231 = vld [vmem:[%s165 + $0x1c8] sm:$0xff]
      %v232 = vld [vmem:[%s165 + $0x1d0] sm:$0xff]
      %v233 = vld [vmem:[%s165 + $0x1d8] sm:$0xff]
      %v234 = vld [vmem:[%s165 + $0x1e0] sm:$0xff]
      %v235 = vld [vmem:[%s165 + $0x1e8] sm:$0xff]
      %v236 = vld [vmem:[%s165 + $0x1f0] sm:$0xff]
      %v237 = vld [vmem:[%s165 + $0x1f8] sm:$0xff]
      %v238 = vld [vmem:[%s165 + $0x200] sm:$0xff]
      %v239 = vld [vmem:[%s165 + $0x208] sm:$0xff]
      %v240 = vld [vmem:[%s165 + $0x210] sm:$0xff]
      %v241 = vld [vmem:[%s165 + $0x218] sm:$0xff]
      %v242 = vld [vmem:[%s165 + $0x220] sm:$0xff]
      %v243 = vld [vmem:[%s165 + $0x228] sm:$0xff]
      %v244 = vld [vmem:[%s165 + $0x230] sm:$0xff]
      %v245 = vld [vmem:[%s165 + $0x238] sm:$0xff]
      %v246 = vld [vmem:[%s165 + $0x240] sm:$0xff]
      %v247 = vld [vmem:[%s165 + $0x248] sm:$0xff]
      %v248 = vld [vmem:[%s165 + $0x250] sm:$0xff]
      %v249 = vld [vmem:[%s165 + $0x258] sm:$0xff]
      %v250 = vld [vmem:[%s165 + $0x260] sm:$0xff]
      %v251 = vld [vmem:[%s165 + $0x268] sm:$0xff]
      %v252 = vld [vmem:[%s165 + $0x270] sm:$0xff]
      %v253 = vld [vmem:[%s165 + $0x278] sm:$0xff]
      %v254 = vld [vmem:[%s165 + $0x280] sm:$0xff]
      %v255 = vld [vmem:[%s165 + $0x288] sm:$0xff]
      %v256 = vld [vmem:[%s165 + $0x290] sm:$0xff]
      %v257 = vld [vmem:[%s165 + $0x298] sm:$0xff]
      %v258 = vld [vmem:[%s165 + $0x2a0] sm:$0xff]
      %v259 = vld [vmem:[%s165 + $0x2a8] sm:$0xff]
      %v260 = vld [vmem:[%s165 + $0x2b0] sm:$0xff]
      %v261 = vld [vmem:[%s165 + $0x2b8] sm:$0xff]
      %v262 = vld [vmem:[%s165 + $0x2c0] sm:$0xff]
      %v263 = vld [vmem:[%s165 + $0x2c8] sm:$0xff]
      %v264 = vld [vmem:[%s165 + $0x2d0] sm:$0xff]
      %v265 = vld [vmem:[%s165 + $0x2d8] sm:$0xff]
      %v266 = vld [vmem:[%s165 + $0x2e0] sm:$0xff]
      %v267 = vld [vmem:[%s165 + $0x2e8] sm:$0xff]
      %v268 = vld [vmem:[%s165 + $0x2f0] sm:$0xff]
      %v269 = vld [vmem:[%s165 + $0x2f8] sm:$0xff]
      %v270 = vld [vmem:[%s165 + $0x300] sm:$0xff]
      %v271 = vld [vmem:[%s165 + $0x308] sm:$0xff]
      %v272 = vld [vmem:[%s165 + $0x310] sm:$0xff]
      %v273 = vld [vmem:[%s165 + $0x318] sm:$0xff]
      %v274 = vld [vmem:[%s2] sm:$0xff]
      %276 = vset.pattern.permute.xlu0 0
      %277 = vperm.xlu0 %276, %v274
      %v278 = vpop.permute.xlu0 %277
      %v282 = vunpack.c.l.b16 %v172
      %v283 = vunpack.c.h.b16 %v172
      %v284 = vunpack.c.l.b16 %v173
      %v285 = vunpack.c.h.b16 %v173
      %v286 = vpack.c.b16 %v282, %v282
      %v287 = vpack.c.b16 %v283, %v283
      %v288 = vpack.c.b16 %v284, %v284
      %v289 = vpack.c.b16 %v285, %v285
      %v393 = vunpack.c.l.b16 %v174
      %v394 = vunpack.c.h.b16 %v174
      %v395 = vunpack.c.l.b16 %v175
      %v396 = vunpack.c.h.b16 %v175
      %v397 = vunpack.c.l.b16 %v176
      %v398 = vunpack.c.h.b16 %v176
      %v399 = vunpack.c.l.b16 %v177
      %v400 = vunpack.c.h.b16 %v177
      %v401 = vunpack.c.l.b16 %v178
      %v402 = vunpack.c.h.b16 %v178
      %v403 = vunpack.c.l.b16 %v179
      %v404 = vunpack.c.h.b16 %v179
      %v405 = vunpack.c.l.b16 %v180
      %v406 = vunpack.c.h.b16 %v180
      %v407 = vunpack.c.l.b16 %v181
      %v408 = vunpack.c.h.b16 %v181
      %v409 = vunpack.c.l.b16 %v182
      %v410 = vunpack.c.h.b16 %v182
      %v411 = vunpack.c.l.b16 %v183
      %v412 = vunpack.c.h.b16 %v183
      %v413 = vunpack.c.l.b16 %v184
      %v414 = vunpack.c.h.b16 %v184
      %v415 = vunpack.c.l.b16 %v185
      %v416 = vunpack.c.h.b16 %v185
      %v417 = vunpack.c.l.b16 %v186
      %v418 = vunpack.c.h.b16 %v186
      %v419 = vunpack.c.l.b16 %v187
      %v420 = vunpack.c.h.b16 %v187
      %v421 = vunpack.c.l.b16 %v188
      %v422 = vunpack.c.h.b16 %v188
      %v423 = vunpack.c.l.b16 %v189
      %v424 = vunpack.c.h.b16 %v189
      %v425 = vunpack.c.l.b16 %v190
      %v426 = vunpack.c.h.b16 %v190
      %v427 = vunpack.c.l.b16 %v191
      %v428 = vunpack.c.h.b16 %v191
      %v429 = vunpack.c.l.b16 %v192
      %v430 = vunpack.c.h.b16 %v192
      %v431 = vunpack.c.l.b16 %v193
      %v432 = vunpack.c.h.b16 %v193
      %v433 = vunpack.c.l.b16 %v194
      %v434 = vunpack.c.h.b16 %v194
      %v435 = vunpack.c.l.b16 %v195
      %v436 = vunpack.c.h.b16 %v195
      %v437 = vunpack.c.l.b16 %v196
      %v438 = vunpack.c.h.b16 %v196
      %v439 = vunpack.c.l.b16 %v197
      %v440 = vunpack.c.h.b16 %v197
      %v441 = vunpack.c.l.b16 %v198
      %v442 = vunpack.c.h.b16 %v198
      %v443 = vunpack.c.l.b16 %v199
      %v444 = vunpack.c.h.b16 %v199
      %v445 = vunpack.c.l.b16 %v200
      %v446 = vunpack.c.h.b16 %v200
      %v447 = vunpack.c.l.b16 %v201
      %v448 = vunpack.c.h.b16 %v201
      %v449 = vunpack.c.l.b16 %v202
      %v450 = vunpack.c.h.b16 %v202
      %v451 = vunpack.c.l.b16 %v203
      %v452 = vunpack.c.h.b16 %v203
      %v453 = vunpack.c.l.b16 %v204
      %v454 = vunpack.c.h.b16 %v204
      %v455 = vunpack.c.l.b16 %v205
      %v456 = vunpack.c.h.b16 %v205
      %v457 = vunpack.c.l.b16 %v206
      %v458 = vunpack.c.h.b16 %v206
      %v459 = vunpack.c.l.b16 %v207
      %v460 = vunpack.c.h.b16 %v207
      %v461 = vunpack.c.l.b16 %v208
      %v462 = vunpack.c.h.b16 %v208
      %v463 = vunpack.c.l.b16 %v209
      %v464 = vunpack.c.h.b16 %v209
      %v465 = vunpack.c.l.b16 %v210
      %v466 = vunpack.c.h.b16 %v210
      %v467 = vunpack.c.l.b16 %v211
      %v468 = vunpack.c.h.b16 %v211
      %v469 = vunpack.c.l.b16 %v212
      %v470 = vunpack.c.h.b16 %v212
      %v471 = vunpack.c.l.b16 %v213
      %v472 = vunpack.c.h.b16 %v213
      %v473 = vunpack.c.l.b16 %v214
      %v474 = vunpack.c.h.b16 %v214
      %v475 = vunpack.c.l.b16 %v215
      %v476 = vunpack.c.h.b16 %v215
      %v477 = vunpack.c.l.b16 %v216
      %v478 = vunpack.c.h.b16 %v216
      %v479 = vunpack.c.l.b16 %v217
      %v480 = vunpack.c.h.b16 %v217
      %v481 = vunpack.c.l.b16 %v218
      %v482 = vunpack.c.h.b16 %v218
      %v483 = vunpack.c.l.b16 %v219
      %v484 = vunpack.c.h.b16 %v219
      %v485 = vunpack.c.l.b16 %v220
      %v486 = vunpack.c.h.b16 %v220
      %v487 = vunpack.c.l.b16 %v221
      %v488 = vunpack.c.h.b16 %v221
      %v489 = vunpack.c.l.b16 %v222
      %v490 = vunpack.c.h.b16 %v222
      %v491 = vunpack.c.l.b16 %v223
      %v492 = vunpack.c.h.b16 %v223
      %v493 = vunpack.c.l.b16 %v224
      %v494 = vunpack.c.h.b16 %v224
      %v495 = vunpack.c.l.b16 %v225
      %v496 = vunpack.c.h.b16 %v225
      %v497 = vunpack.c.l.b16 %v226
      %v498 = vunpack.c.h.b16 %v226
      %v499 = vunpack.c.l.b16 %v227
      %v500 = vunpack.c.h.b16 %v227
      %v501 = vunpack.c.l.b16 %v228
      %v502 = vunpack.c.h.b16 %v228
      %v503 = vunpack.c.l.b16 %v229
      %v504 = vunpack.c.h.b16 %v229
      %v505 = vunpack.c.l.b16 %v230
      %v506 = vunpack.c.h.b16 %v230
      %v507 = vunpack.c.l.b16 %v231
      %v508 = vunpack.c.h.b16 %v231
      %v509 = vunpack.c.l.b16 %v232
      %v510 = vunpack.c.h.b16 %v232
      %v511 = vunpack.c.l.b16 %v233
      %v512 = vunpack.c.h.b16 %v233
      %v513 = vunpack.c.l.b16 %v234
      %v514 = vunpack.c.h.b16 %v234
      %v515 = vunpack.c.l.b16 %v235
      %v516 = vunpack.c.h.b16 %v235
      %v517 = vunpack.c.l.b16 %v236
      %v518 = vunpack.c.h.b16 %v236
      %v519 = vunpack.c.l.b16 %v237
      %v520 = vunpack.c.h.b16 %v237
      %v521 = vunpack.c.l.b16 %v238
      %v522 = vunpack.c.h.b16 %v238
      %v523 = vunpack.c.l.b16 %v239
      %v524 = vunpack.c.h.b16 %v239
      %v525 = vunpack.c.l.b16 %v240
      %v526 = vunpack.c.h.b16 %v240
      %v527 = vunpack.c.l.b16 %v241
      %v528 = vunpack.c.h.b16 %v241
      %v529 = vunpack.c.l.b16 %v242
      %v530 = vunpack.c.h.b16 %v242
      %v531 = vunpack.c.l.b16 %v243
      %v532 = vunpack.c.h.b16 %v243
      %v533 = vunpack.c.l.b16 %v244
      %v534 = vunpack.c.h.b16 %v244
      %v535 = vunpack.c.l.b16 %v245
      %v536 = vunpack.c.h.b16 %v245
      %v537 = vunpack.c.l.b16 %v246
      %v538 = vunpack.c.h.b16 %v246
      %v539 = vunpack.c.l.b16 %v247
      %v540 = vunpack.c.h.b16 %v247
      %v541 = vunpack.c.l.b16 %v248
      %v542 = vunpack.c.h.b16 %v248
      %v543 = vunpack.c.l.b16 %v249
      %v544 = vunpack.c.h.b16 %v249
      %v545 = vunpack.c.l.b16 %v250
      %v546 = vunpack.c.h.b16 %v250
      %v547 = vunpack.c.l.b16 %v251
      %v548 = vunpack.c.h.b16 %v251
      %v549 = vunpack.c.l.b16 %v252
      %v550 = vunpack.c.h.b16 %v252
      %v551 = vunpack.c.l.b16 %v253
      %v552 = vunpack.c.h.b16 %v253
      %v553 = vunpack.c.l.b16 %v254
      %v554 = vunpack.c.h.b16 %v254
      %v555 = vunpack.c.l.b16 %v255
      %v556 = vunpack.c.h.b16 %v255
      %v557 = vunpack.c.l.b16 %v256
      %v558 = vunpack.c.h.b16 %v256
      %v559 = vunpack.c.l.b16 %v257
      %v560 = vunpack.c.h.b16 %v257
      %v561 = vunpack.c.l.b16 %v258
      %v562 = vunpack.c.h.b16 %v258
      %v563 = vunpack.c.l.b16 %v259
      %v564 = vunpack.c.h.b16 %v259
      %v565 = vunpack.c.l.b16 %v260
      %v566 = vunpack.c.h.b16 %v260
      %v567 = vunpack.c.l.b16 %v261
      %v568 = vunpack.c.h.b16 %v261
      %v569 = vunpack.c.l.b16 %v262
      %v570 = vunpack.c.h.b16 %v262
      %v571 = vunpack.c.l.b16 %v263
      %v572 = vunpack.c.h.b16 %v263
      %v573 = vunpack.c.l.b16 %v264
      %v574 = vunpack.c.h.b16 %v264
      %v575 = vunpack.c.l.b16 %v265
      %v576 = vunpack.c.h.b16 %v265
      %v577 = vunpack.c.l.b16 %v266
      %v578 = vunpack.c.h.b16 %v266
      %v579 = vunpack.c.l.b16 %v267
      %v580 = vunpack.c.h.b16 %v267
      %v581 = vunpack.c.l.b16 %v268
      %v582 = vunpack.c.h.b16 %v268
      %v583 = vunpack.c.l.b16 %v269
      %v584 = vunpack.c.h.b16 %v269
      %v585 = vunpack.c.l.b16 %v270
      %v586 = vunpack.c.h.b16 %v270
      %v587 = vunpack.c.l.b16 %v271
      %v588 = vunpack.c.h.b16 %v271
      %v589 = vunpack.c.l.b16 %v272
      %v590 = vunpack.c.h.b16 %v272
      %v591 = vunpack.c.l.b16 %v273
      %v592 = vunpack.c.h.b16 %v273
      %v593 = vpack.c.b16 %v397, %v393
      %v594 = vpack.c.b16 %v398, %v394
      %v595 = vpack.c.b16 %v399, %v395
      %v596 = vpack.c.b16 %v400, %v396
      %v597 = vpack.c.b16 %v405, %v401
      %v598 = vpack.c.b16 %v406, %v402
      %v599 = vpack.c.b16 %v407, %v403
      %v600 = vpack.c.b16 %v408, %v404
      %v601 = vpack.c.b16 %v413, %v409
      %v602 = vpack.c.b16 %v414, %v410
      %v603 = vpack.c.b16 %v415, %v411
      %v604 = vpack.c.b16 %v416, %v412
      %v605 = vpack.c.b16 %v421, %v417
      %v606 = vpack.c.b16 %v422, %v418
      %v607 = vpack.c.b16 %v423, %v419
      %v608 = vpack.c.b16 %v424, %v420
      %v609 = vpack.c.b16 %v429, %v425
      %v610 = vpack.c.b16 %v430, %v426
      %v611 = vpack.c.b16 %v431, %v427
      %v612 = vpack.c.b16 %v432, %v428
      %v613 = vpack.c.b16 %v437, %v433
      %v614 = vpack.c.b16 %v438, %v434
      %v615 = vpack.c.b16 %v439, %v435
      %v616 = vpack.c.b16 %v440, %v436
      %v617 = vpack.c.b16 %v445, %v441
      %v618 = vpack.c.b16 %v446, %v442
      %v619 = vpack.c.b16 %v447, %v443
      %v620 = vpack.c.b16 %v448, %v444
      %v621 = vpack.c.b16 %v453, %v449
      %v622 = vpack.c.b16 %v454, %v450
      %v623 = vpack.c.b16 %v455, %v451
      %v624 = vpack.c.b16 %v456, %v452
      %v625 = vpack.c.b16 %v461, %v457
      %v626 = vpack.c.b16 %v462, %v458
      %v627 = vpack.c.b16 %v463, %v459
      %v628 = vpack.c.b16 %v464, %v460
      %v629 = vpack.c.b16 %v469, %v465
      %v630 = vpack.c.b16 %v470, %v466
      %v631 = vpack.c.b16 %v471, %v467
      %v632 = vpack.c.b16 %v472, %v468
      %v633 = vpack.c.b16 %v477, %v473
      %v634 = vpack.c.b16 %v478, %v474
      %v635 = vpack.c.b16 %v479, %v475
      %v636 = vpack.c.b16 %v480, %v476
      %v637 = vpack.c.b16 %v485, %v481
      %v638 = vpack.c.b16 %v486, %v482
      %v639 = vpack.c.b16 %v487, %v483
      %v640 = vpack.c.b16 %v488, %v484
      %v641 = vpack.c.b16 %v493, %v489
      %v642 = vpack.c.b16 %v494, %v490
      %v643 = vpack.c.b16 %v495, %v491
      %v644 = vpack.c.b16 %v496, %v492
      %v645 = vpack.c.b16 %v501, %v497
      %v646 = vpack.c.b16 %v502, %v498
      %v647 = vpack.c.b16 %v503, %v499
      %v648 = vpack.c.b16 %v504, %v500
      %v649 = vpack.c.b16 %v509, %v505
      %v650 = vpack.c.b16 %v510, %v506
      %v651 = vpack.c.b16 %v511, %v507
      %v652 = vpack.c.b16 %v512, %v508
      %v653 = vpack.c.b16 %v517, %v513
      %v654 = vpack.c.b16 %v518, %v514
      %v655 = vpack.c.b16 %v519, %v515
      %v656 = vpack.c.b16 %v520, %v516
      %v657 = vpack.c.b16 %v525, %v521
      %v658 = vpack.c.b16 %v526, %v522
      %v659 = vpack.c.b16 %v527, %v523
      %v660 = vpack.c.b16 %v528, %v524
      %v661 = vpack.c.b16 %v533, %v529
      %v662 = vpack.c.b16 %v534, %v530
      %v663 = vpack.c.b16 %v535, %v531
      %v664 = vpack.c.b16 %v536, %v532
      %v665 = vpack.c.b16 %v541, %v537
      %v666 = vpack.c.b16 %v542, %v538
      %v667 = vpack.c.b16 %v543, %v539
      %v668 = vpack.c.b16 %v544, %v540
      %v669 = vpack.c.b16 %v549, %v545
      %v670 = vpack.c.b16 %v550, %v546
      %v671 = vpack.c.b16 %v551, %v547
      %v672 = vpack.c.b16 %v552, %v548
      %v673 = vpack.c.b16 %v557, %v553
      %v674 = vpack.c.b16 %v558, %v554
      %v675 = vpack.c.b16 %v559, %v555
      %v676 = vpack.c.b16 %v560, %v556
      %v677 = vpack.c.b16 %v565, %v561
      %v678 = vpack.c.b16 %v566, %v562
      %v679 = vpack.c.b16 %v567, %v563
      %v680 = vpack.c.b16 %v568, %v564
      %v681 = vpack.c.b16 %v573, %v569
      %v682 = vpack.c.b16 %v574, %v570
      %v683 = vpack.c.b16 %v575, %v571
      %v684 = vpack.c.b16 %v576, %v572
      %v685 = vpack.c.b16 %v581, %v577
      %v686 = vpack.c.b16 %v582, %v578
      %v687 = vpack.c.b16 %v583, %v579
      %v688 = vpack.c.b16 %v584, %v580
      %v689 = vpack.c.b16 %v589, %v585
      %v690 = vpack.c.b16 %v590, %v586
      %v691 = vpack.c.b16 %v591, %v587
      %v692 = vpack.c.b16 %v592, %v588
      %vm793 = vcmask 130048
      %v795 = vsel %vm793, %v289, 0
      %797 = vmatprep.subr.bf16.mxu0 %v594
      %798 = vmatpush1.bf16.msra.mxu0 %v593
      %799 = vmatprep.subr.bf16.mxu0 %v598
      %800 = vmatpush1.bf16.msra.mxu0 %v597
      %801 = vmatprep.subr.bf16.mxu0 %v602
      %802 = vmatpush1.bf16.msra.mxu0 %v601
      %803 = vmatprep.subr.bf16.mxu0 %v606
      %804 = vmatpush1.bf16.msra.mxu0 %v605
      %805 = vmatprep.subr.bf16.mxu0 %v610
      %806 = vmatpush1.bf16.msra.mxu0 %v609
      %807 = vmatprep.subr.bf16.mxu0 %v614
      %808 = vmatpush1.bf16.msra.mxu0 %v613
      %809 = vmatprep.subr.bf16.mxu0 %v618
      %810 = vmatpush1.bf16.msra.mxu0 %v617
      %811 = vmatprep.subr.bf16.mxu0 %v622
      %812 = vmatpush1.bf16.msra.mxu0 %v621
      %813 = vmatprep.subr.bf16.mxu0 %v626
      %814 = vmatpush1.bf16.msra.mxu0 %v625
      %815 = vmatprep.subr.bf16.mxu0 %v630
      %816 = vmatpush1.bf16.msra.mxu0 %v629
      %817 = vmatprep.subr.bf16.mxu0 %v634
      %818 = vmatpush1.bf16.msra.mxu0 %v633
      %819 = vmatprep.subr.bf16.mxu0 %v638
      %820 = vmatpush1.bf16.msra.mxu0 %v637
      %821 = vmatprep.subr.bf16.mxu0 %v642
      %822 = vmatpush1.bf16.msra.mxu0 %v641
      %823 = vmatprep.subr.bf16.mxu0 %v646
      %824 = vmatpush1.bf16.msra.mxu0 %v645
      %825 = vmatprep.subr.bf16.mxu0 %v650
      %826 = vmatpush1.bf16.msra.mxu0 %v649
      %827 = vmatprep.subr.bf16.mxu0 %v654
      %828 = vmatpush1.bf16.msra.mxu0 %v653
      %829 = vmatprep.mubr.bf16.mxu0 %v287
      %830 = vmatmul.mubr.bf16.gmra.mrb[0].mxu0 %v286
      %v831 = vpop.f32.mrb[0].mxu0
      %v832 = vadd.f32 %v278, %v831
      %v833 = vpop.f32.mrb[0].mxu0
      %v834 = vadd.f32 %v278, %v833
      %v835 = vpop.f32.mrb[0].mxu0
      %v836 = vpop.f32.mrb[0].mxu0
      %837 = vdwg.mxu0
      %838 = vmatprep.subr.bf16.mxu0 %v658
      %839 = vmatpush1.bf16.msra.mxu0 %v657
      %840 = vmatprep.subr.bf16.mxu0 %v662
      %841 = vmatpush1.bf16.msra.mxu0 %v661
      %842 = vmatprep.subr.bf16.mxu0 %v666
      %843 = vmatpush1.bf16.msra.mxu0 %v665
      %844 = vmatprep.subr.bf16.mxu0 %v670
      %845 = vmatpush1.bf16.msra.mxu0 %v669
      %846 = vmatprep.subr.bf16.mxu0 %v674
      %847 = vmatpush1.bf16.msra.mxu0 %v673
      %848 = vmatprep.subr.bf16.mxu0 %v678
      %849 = vmatpush1.bf16.msra.mxu0 %v677
      %850 = vmatprep.subr.bf16.mxu0 %v682
      %851 = vmatpush1.bf16.msra.mxu0 %v681
      %852 = vmatprep.subr.bf16.mxu0 %v686
      %853 = vmatpush1.bf16.msra.mxu0 %v685
      %854 = vmatprep.subr.bf16.mxu0 %v690
      %855 = vmatpush1.bf16.msra.mxu0 %v689
      %856 = vmatprep.subr.bf16.mxu0 0
      %857 = vmatpush1.bf16.msra.mxu0 0
      %858 = vmatprep.subr.bf16.mxu0 0
      %859 = vmatpush1.bf16.msra.mxu0 0
      %860 = vmatprep.subr.bf16.mxu0 0
      %861 = vmatpush1.bf16.msra.mxu0 0
      %862 = vmatprep.subr.bf16.mxu0 0
      %863 = vmatpush1.bf16.msra.mxu0 0
      %864 = vmatprep.subr.bf16.mxu0 0
      %865 = vmatpush1.bf16.msra.mxu0 0
      %866 = vmatprep.subr.bf16.mxu0 0
      %867 = vmatpush1.bf16.msra.mxu0 0
      %868 = vmatprep.subr.bf16.mxu0 0
      %869 = vmatpush1.bf16.msra.mxu0 0
      %870 = vmatprep.mubr.bf16.mxu0 %v795
      %871 = vmatmul.mubr.bf16.gmra.mrb[0].mxu0 %v288
      %v872 = vpop.f32.mrb[0].mxu0
      %v873 = vadd.f32 %v832, %v872
      %v874 = vpop.f32.mrb[0].mxu0
      %v875 = vadd.f32 %v834, %v874
      %v876 = vpop.f32.mrb[0].mxu0
      %v877 = vpop.f32.mrb[0].mxu0
      %878 = vdwg.mxu0
      %879 = vmatprep.subr.bf16.mxu0 %v596
      %880 = vmatpush1.bf16.msra.mxu0 %v595
      %881 = vmatprep.subr.bf16.mxu0 %v600
      %882 = vmatpush1.bf16.msra.mxu0 %v599
      %883 = vmatprep.subr.bf16.mxu0 %v604
      %884 = vmatpush1.bf16.msra.mxu0 %v603
      %885 = vmatprep.subr.bf16.mxu0 %v608
      %886 = vmatpush1.bf16.msra.mxu0 %v607
      %887 = vmatprep.subr.bf16.mxu0 %v612
      %888 = vmatpush1.bf16.msra.mxu0 %v611
      %889 = vmatprep.subr.bf16.mxu0 %v616
      %890 = vmatpush1.bf16.msra.mxu0 %v615
      %891 = vmatprep.subr.bf16.mxu0 %v620
      %892 = vmatpush1.bf16.msra.mxu0 %v619
      %893 = vmatprep.subr.bf16.mxu0 %v624
      %894 = vmatpush1.bf16.msra.mxu0 %v623
      %895 = vmatprep.subr.bf16.mxu0 %v628
      %896 = vmatpush1.bf16.msra.mxu0 %v627
      %897 = vmatprep.subr.bf16.mxu0 %v632
      %898 = vmatpush1.bf16.msra.mxu0 %v631
      %899 = vmatprep.subr.bf16.mxu0 %v636
      %900 = vmatpush1.bf16.msra.mxu0 %v635
      %901 = vmatprep.subr.bf16.mxu0 %v640
      %902 = vmatpush1.bf16.msra.mxu0 %v639
      %903 = vmatprep.subr.bf16.mxu0 %v644
      %904 = vmatpush1.bf16.msra.mxu0 %v643
      %905 = vmatprep.subr.bf16.mxu0 %v648
      %906 = vmatpush1.bf16.msra.mxu0 %v647
      %907 = vmatprep.subr.bf16.mxu0 %v652
      %908 = vmatpush1.bf16.msra.mxu0 %v651
      %909 = vmatprep.subr.bf16.mxu0 %v656
      %910 = vmatpush1.bf16.msra.mxu0 %v655
      %911 = vmatprep.mubr.bf16.mxu0 %v287
      %912 = vmatmul.mubr.bf16.gmra.mrb[0].mxu0 %v286
      %v913 = vpop.f32.mrb[0].mxu0
      %v914 = vadd.f32 %v278, %v913
      %v915 = vpop.f32.mrb[0].mxu0
      %v916 = vadd.f32 %v278, %v915
      %v917 = vpop.f32.mrb[0].mxu0
      %v918 = vpop.f32.mrb[0].mxu0
      %919 = vdwg.mxu0
      %920 = vmatprep.subr.bf16.mxu0 %v660
      %921 = vmatpush1.bf16.msra.mxu0 %v659
      %922 = vmatprep.subr.bf16.mxu0 %v664
      %923 = vmatpush1.bf16.msra.mxu0 %v663
      %924 = vmatprep.subr.bf16.mxu0 %v668
      %925 = vmatpush1.bf16.msra.mxu0 %v667
      %926 = vmatprep.subr.bf16.mxu0 %v672
      %927 = vmatpush1.bf16.msra.mxu0 %v671
      %928 = vmatprep.subr.bf16.mxu0 %v676
      %929 = vmatpush1.bf16.msra.mxu0 %v675
      %930 = vmatprep.subr.bf16.mxu0 %v680
      %931 = vmatpush1.bf16.msra.mxu0 %v679
      %932 = vmatprep.subr.bf16.mxu0 %v684
      %933 = vmatpush1.bf16.msra.mxu0 %v683
      %934 = vmatprep.subr.bf16.mxu0 %v688
      %935 = vmatpush1.bf16.msra.mxu0 %v687
      %936 = vmatprep.subr.bf16.mxu0 %v692
      %937 = vmatpush1.bf16.msra.mxu0 %v691
      %938 = vmatprep.subr.bf16.mxu0 0
      %939 = vmatpush1.bf16.msra.mxu0 0
      %940 = vmatprep.subr.bf16.mxu0 0
      %941 = vmatpush1.bf16.msra.mxu0 0
      %942 = vmatprep.subr.bf16.mxu0 0
      %943 = vmatpush1.bf16.msra.mxu0 0
      %944 = vmatprep.subr.bf16.mxu0 0
      %945 = vmatpush1.bf16.msra.mxu0 0
      %946 = vmatprep.subr.bf16.mxu0 0
      %947 = vmatpush1.bf16.msra.mxu0 0
      %948 = vmatprep.subr.bf16.mxu0 0
      %949 = vmatpush1.bf16.msra.mxu0 0
      %950 = vmatprep.subr.bf16.mxu0 0
      %951 = vmatpush1.bf16.msra.mxu0 0
      %952 = vmatprep.mubr.bf16.mxu0 %v795
      %953 = vmatmul.mubr.bf16.gmra.mrb[0].mxu0 %v288
      %v954 = vpop.f32.mrb[0].mxu0
      %v955 = vadd.f32 %v914, %v954
      %v956 = vpop.f32.mrb[0].mxu0
      %v957 = vadd.f32 %v916, %v956
      %v958 = vpop.f32.mrb[0].mxu0
      %v959 = vpop.f32.mrb[0].mxu0
      %960 = vdwg.mxu0
      %v961 = vadd.f32 %v873, %v875
      %v962 = vadd.f32 %v961, %v955
      %v963 = vadd.f32 %v962, %v957
      %964 = vadd.xlane.f32.xlu0 %v963
      %v965 = vpop.xlane.xlu0 %964
      %v966 = vrcp.pop 512.0
      %v967 = vmul.f32 %v965, %v966
      %v968 = vsub.f32 %v873, %v967
      %v969 = vsub.f32 %v875, %v967
      %v970 = vsub.f32 %v955, %v967
      %v971 = vsub.f32 %v957, %v967
      %v972 = vmul.f32 %v968, %v968
      %v973 = vmul.f32 %v969, %v969
      %v974 = vmul.f32 %v970, %v970
      %v975 = vmul.f32 %v971, %v971
      %v976 = vadd.f32 %v972, %v973
      %v977 = vadd.f32 %v976, %v974
      %v978 = vadd.f32 %v977, %v975
      %979 = vadd.xlane.f32.xlu0 %v978
      %v980 = vpop.xlane.xlu0 %979
      %v981 = vmul.f32 %v980, %v966
      %v982 = vadd.f32 %v981, 1e-05
      %v983 = vrsqrt.pop %v982
      %v984 = vmul.f32 %v968, %v983
      %v985 = vmul.f32 %v969, %v983
      %v986 = vmul.f32 %v970, %v983
      %v987 = vmul.f32 %v971, %v983
      %v988 = vmax.f32 %v984, 0.0
      %v989 = vmax.f32 %v985, 0.0
      %v990 = vmax.f32 %v986, 0.0
      %v991 = vmax.f32 %v987, 0.0
      %992 = vst [vmem:[%s170] sm:$0xff] %v988
      %993 = vst [vmem:[%s170 + $0x8] sm:$0xff] %v989
      %994 = vst [vmem:[%s170 + $0x10] sm:$0xff] %v990
      %995 = vst [vmem:[%s170 + $0x18] sm:$0xff] %v991
      %p996 = scmp.lt.s32.totalorder %s14, 1
      %s997 = scalar_select %p996, %s14, 1
      %s998 = smul.addr %s997, 4
      %s999 = smul.addr %s998, 8
      %s1000 = scalar_lea.vmem %s3, %s999
      // Predicated region
      $region33: #{decoder_forward.10} parent=31 // pred_check
        %p1001 = pneg %p100
      $region34: #{decoder_forward.10} parent=31 // pred_check_branch
        %1003 = sbr.rel (%p1001) target = $region36
      $region35: #{decoder_forward.10} parent=31 // pred_region
        _
      $region36: #{decoder_forward.10} parent=31 // pred_fallthru
        _
    $region32: #{decoder_forward.10} parent=5 // pred_fallthru
      _
    %p1004 = scmp.le.s32.totalorder 2, %s9
    // Predicated region
    $region37: #{decoder_forward.10} parent=5 // pred_check
      %p1005 = pneg %p1004
    $region38: #{decoder_forward.10} parent=5 // pred_check_branch
      %1007 = sbr.rel (%p1005) target = $region40
    $region39: #{decoder_forward.10} parent=5 // pred_region
      %s1008 = ssub.s32 %s9, 2
      // Predicated region
      $region41: #{decoder_forward.10} parent=39 // pred_check
        %p1009 = pneg %p106
      $region42: #{decoder_forward.10} parent=39 // pred_check_branch
        %1011 = sbr.rel (%p1009) target = $region44
      $region43: #{decoder_forward.10} parent=39 // pred_region
        %p1012 = scmp.lt.s32.totalorder %s15, 1
        %s1013 = scalar_select %p1012, %s15, 1
        %s1014 = smul.addr %s1013, 4
        %s1015 = smul.addr %s1014, 8
        %s1016 = scalar_lea.vmem %s3, %s1015
      $region44: #{decoder_forward.10} parent=39 // pred_fallthru
        _
    $region40: #{decoder_forward.10} parent=5 // pred_fallthru
      _
  $region6: #{decoder_forward.10} parent=0 // loop_footer
    %s13 = sadd.s32 1, %s9
  $region7: #{decoder_forward.10} parent=0 // loop_footer_branch
    %8 = sbr.rel target = $region3
  $region8: #{decoder_forward.10} parent=0 // loop_exit
    _

// kernel: decoder_forward.11
$region0: #{decoder_forward.11}
  #allocation0 [shape = 'u32[]', space=smem, size = 0x4, offset = 0x4, fixed_abs, tag = 'smem constant byte address 0x4 - core index']
  #allocation1 [shape = 'u32[144,128]{1,0:T(1,128)}', space=vmem, size = 0x12000, scoped, tag = 'internal scratch']
  #allocation2 [shape = 'f32[1,1]{1,0:T(1,128)S(1)}', space=vmem, size = 0x200, scoped, tag = 'scoped memory for decoder_forward.11']
  %s0 = inlined_call_operand.vmem [shape: bf16[2,392,512], index: 0, kind: input, shape index: {}]
  %s1 = inlined_call_operand.vmem [shape: bf16[1,392], index: 1, kind: input, shape index: {}]
  %s2 = inlined_call_operand.<no memory space> [shape: f32[1,1], index: 2, kind: input, shape index: {}]
  %s3 = inlined_call_operand.vmem [shape: f32[2,1,512], index: 3, kind: output, shape index: {}]
  %s4 = sld [smem:[#allocation0]]
  $region45: #{decoder_forward.11} parent=0
    _
  %s6 = ssub.s32 1, %s4
  %s7 = scalar_select 0, %s6, %s4
  %v8 = vstv %s2
  %9 = vst [vmem:[#allocation2] sm:$0x1] %v8
  loop: start=0, step=1, limit=4
  $region2: #{decoder_forward.11} parent=0 // loop_pre_header
    _
  $region3: #{decoder_forward.11} parent=0 // loop_header
    %s11 = sphi 0, %s15
    %p12 = scmp.ge.s32.totalorder %s11, 4
    %s21 = sphi 0, %s23
    %s24 = sphi 0, %s21
    %s25 = sphi 0, %s24
    %s41 = sphi 0, %s25
    %s45 = sphi 0, %s45
    %s47 = sphi 0, %s45
    %s48 = sphi 0, %s47
    %s62 = sphi 0, %s48
    %s66 = sphi 0, %s66
    %s68 = sphi 0, %s66
    %s69 = sphi 0, %s68
    %s83 = sphi 0, %s69
    %s89 = sphi 0, %s91
    %s92 = sphi 0, %s89
    %s93 = sphi 0, %s92
    %s109 = sphi 0, %s93
  $region4: #{decoder_forward.11} parent=0 // loop_header_branch
    %14 = sbr.rel (%p12) target = $region8
  $region5: #{decoder_forward.11} parent=0 // loop_body
    %s16 = ssub.s32 %s11, 1
    %s17 = ssub.s32 %s11, 2
    %s18 = sadd.s32 %s11, 1
    %s19 = ssub.s32 %s11, %s18
    %p20 = scmp.eq.s32.totalorder %s19, 0
    %s22 = sadd.s32 %s21, 1
    %s23 = scalar_select %p20, %s21, %s22
    %p26 = pneg %p20
    %p27 = scmp.eq.s32.totalorder %s11, 1
    %p28 = por %p26, %p27
    %p29 = scmp.ne.s32.totalorder %s21, %s24
    %p30 = scmp.eq.s32.totalorder %s11, 0
    %p31 = por %p29, %p30
    %p32 = scmp.ne.s32.totalorder %s21, %s24
    %p33 = scmp.eq.s32.totalorder %s16, 1
    %p34 = por %p32, %p33
    %p35 = scmp.ne.s32.totalorder %s24, %s25
    %p36 = scmp.eq.s32.totalorder %s16, 0
    %p37 = por %p35, %p36
    %p38 = scmp.ne.s32.totalorder %s24, %s25
    %p39 = scmp.eq.s32.totalorder %s17, 1
    %p40 = por %p38, %p39
    %p42 = scmp.ne.s32.totalorder %s25, %s41
    %p43 = scmp.eq.s32.totalorder %s17, 0
    %p44 = por %p42, %p43
    %s46 = sadd.s32 %s45, 1
    %p49 = scmp.eq.s32.totalorder %s11, 1
    %p50 = scmp.ne.s32.totalorder %s45, %s47
    %p51 = scmp.eq.s32.totalorder %s11, 0
    %p52 = por %p50, %p51
    %p53 = scmp.ne.s32.totalorder %s45, %s47
    %p54 = scmp.eq.s32.totalorder %s16, 1
    %p55 = por %p53, %p54
    %p56 = scmp.ne.s32.totalorder %s47, %s48
    %p57 = scmp.eq.s32.totalorder %s16, 0
    %p58 = por %p56, %p57
    %p59 = scmp.ne.s32.totalorder %s47, %s48
    %p60 = scmp.eq.s32.totalorder %s17, 1
    %p61 = por %p59, %p60
    %p63 = scmp.ne.s32.totalorder %s48, %s62
    %p64 = scmp.eq.s32.totalorder %s17, 0
    %p65 = por %p63, %p64
    %s67 = sadd.s32 %s66, 1
    %p70 = scmp.eq.s32.totalorder %s11, 1
    %p71 = scmp.ne.s32.totalorder %s66, %s68
    %p72 = scmp.eq.s32.totalorder %s11, 0
    %p73 = por %p71, %p72
    %p74 = scmp.ne.s32.totalorder %s66, %s68
    %p75 = scmp.eq.s32.totalorder %s16, 1
    %p76 = por %p74, %p75
    %p77 = scmp.ne.s32.totalorder %s68, %s69
    %p78 = scmp.eq.s32.totalorder %s16, 0
    %p79 = por %p77, %p78
    %p80 = scmp.ne.s32.totalorder %s68, %s69
    %p81 = scmp.eq.s32.totalorder %s17, 1
    %p82 = por %p80, %p81
    %p84 = scmp.ne.s32.totalorder %s69, %s83
    %p85 = scmp.eq.s32.totalorder %s17, 0
    %p86 = por %p84, %p85
    %s87 = ssub.s32 %s11, %s18
    %p88 = scmp.eq.s32.totalorder %s87, 0
    %s90 = sadd.s32 %s89, 1
    %s91 = scalar_select %p88, %s89, %s90
    %p94 = pneg %p88
    %p95 = scmp.eq.s32.totalorder %s11, 1
    %p96 = por %p94, %p95
    %p97 = scmp.ne.s32.totalorder %s89, %s92
    %p98 = scmp.eq.s32.totalorder %s11, 0
    %p99 = por %p97, %p98
    %p100 = scmp.ne.s32.totalorder %s89, %s92
    %p101 = scmp.eq.s32.totalorder %s16, 1
    %p102 = por %p100, %p101
    %p103 = scmp.ne.s32.totalorder %s92, %s93
    %p104 = scmp.eq.s32.totalorder %s16, 0
    %p105 = por %p103, %p104
    %p106 = scmp.ne.s32.totalorder %s92, %s93
    %p107 = scmp.eq.s32.totalorder %s17, 1
    %p108 = por %p106, %p107
    %p110 = scmp.ne.s32.totalorder %s93, %s109
    %p111 = scmp.eq.s32.totalorder %s17, 0
    %p112 = por %p110, %p111
    %p113 = scmp.le.s32.totalorder 1, %s11
    %p114 = scmp.lt.s32.totalorder %s11, 3
    %p115 = pnand %p113, %p114
    %p116 = pneg %p115
    // Predicated region
    $region9: #{decoder_forward.11} parent=5 // pred_check
      _
    $region10: #{decoder_forward.11} parent=5 // pred_check_branch
      %118 = sbr.rel (%p115) target = $region12
    $region11: #{decoder_forward.11} parent=5 // pred_region
      %s119 = ssub.s32 %s11, 1
      // Predicated region
      $region13: #{decoder_forward.11} parent=11 // pred_check
        %p120 = pneg %p58
      $region14: #{decoder_forward.11} parent=11 // pred_check_branch
        %122 = sbr.rel (%p120) target = $region16
      $region15: #{decoder_forward.11} parent=11 // pred_region
        _
      $region16: #{decoder_forward.11} parent=11 // pred_fallthru
        _
      // Predicated region
      $region17: #{decoder_forward.11} parent=11 // pred_check
        %p123 = pneg %p79
      $region18: #{decoder_forward.11} parent=11 // pred_check_branch
        %125 = sbr.rel (%p123) target = $region20
      $region19: #{decoder_forward.11} parent=11 // pred_region
        _
      $region20: #{decoder_forward.11} parent=11 // pred_fallthru
        _
    $region12: #{decoder_forward.11} parent=5 // pred_fallthru
      _
    %p126 = scmp.lt.s32.totalorder %s11, 2
    // Predicated region
    $region21: #{decoder_forward.11} parent=5 // pred_check
      %p127 = pneg %p126
    $region22: #{decoder_forward.11} parent=5 // pred_check_branch
      %129 = sbr.rel (%p127) target = $region24
    $region23: #{decoder_forward.11} parent=5 // pred_region
      // Predicated region
      $region25: #{decoder_forward.11} parent=23 // pred_check
        %p130 = pneg %p31
      $region26: #{decoder_forward.11} parent=23 // pred_check_branch
        %132 = sbr.rel (%p130) target = $region28
      $region27: #{decoder_forward.11} parent=23 // pred_region
        %p133 = scmp.lt.s32.totalorder %s11, 1
        %s134 = scalar_select %p133, %s11, 1
        %s135 = smul.addr %s134, 196
        %s136 = smul.addr %s135, 4
        %s137 = scalar_lea.vmem %s0, %s136
      $region28: #{decoder_forward.11} parent=23 // pred_fallthru
        _
    $region24: #{decoder_forward.11} parent=5 // pred_fallthru
      _
    %p138 = scmp.le.s32.totalorder 1, %s11
    %p139 = scmp.lt.s32.totalorder %s11, 3
    %p140 = pnand %p138, %p139
    %p141 = pneg %p140
    // Predicated region
    $region29: #{decoder_forward.11} parent=5 // pred_check
      _
    $region30: #{decoder_forward.11} parent=5 // pred_check_branch
      %143 = sbr.rel (%p140) target = $region32
    $region31: #{decoder_forward.11} parent=5 // pred_region
      %s144 = ssub.s32 %s11, 1
      %p145 = scmp.lt.s32.totalorder %s16, 1
      %s146 = scalar_select %p145, %s16, 1
      %s147 = smul.addr %s146, 196
      %s148 = smul.addr %s147, 4
      %s149 = scalar_lea.vmem %s0, %s148
      %p150 = pneg %p37
      %p151 = pneg %p34
      %p152 = pneg %p58
      %p153 = pneg %p55
      %p154 = pneg %p79
      %p155 = pneg %p76
      %p156 = pneg %p105
      %p157 = pneg %p102
      %p158 = scmp.lt.s32.totalorder %s16, 1
      %s159 = scalar_select %p158, %s16, 1
      %s160 = smul.addr %s159, 4
      %s161 = scalar_lea.vmem %s3, %s160
      %p162 = scmp.lt.s32.totalorder %s16, 1
      %s163 = scalar_select %p162, %s16, 1
      %s164 = smul.addr %s163, 196
      %s165 = smul.addr %s164, 4
      %s166 = scalar_lea.vmem %s0, %s165
      %p167 = scmp.lt.s32.totalorder %s16, 1
      %s168 = scalar_select %p167, %s16, 1
      %s169 = smul.addr %s168, 4
      %s170 = scalar_lea.vmem %s3, %s169
      %v172 = vld [vmem:[%s1] sm:$0xf]
      %v173 = vld [vmem:[%s166] sm:$0xff]
      %v174 = vld [vmem:[%s166 + $0x8] sm:$0xff]
      %v175 = vld [vmem:[%s166 + $0x10] sm:$0xff]
      %v176 = vld [vmem:[%s166 + $0x18] sm:$0xff]
      %v177 = vld [vmem:[%s166 + $0x20] sm:$0xff]
      %v178 = vld [vmem:[%s166 + $0x28] sm:$0xff]
      %v179 = vld [vmem:[%s166 + $0x30] sm:$0xff]
      %v180 = vld [vmem:[%s166 + $0x38] sm:$0xff]
      %v181 = vld [vmem:[%s166 + $0x40] sm:$0xff]
      %v182 = vld [vmem:[%s166 + $0x48] sm:$0xff]
      %v183 = vld [vmem:[%s166 + $0x50] sm:$0xff]
      %v184 = vld [vmem:[%s166 + $0x58] sm:$0xff]
      %v185 = vld [vmem:[%s166 + $0x60] sm:$0xff]
      %v186 = vld [vmem:[%s166 + $0x68] sm:$0xff]
      %v187 = vld [vmem:[%s166 + $0x70] sm:$0xff]
      %v188 = vld [vmem:[%s166 + $0x78] sm:$0xff]
      %v189 = vld [vmem:[%s166 + $0x80] sm:$0xff]
      %v190 = vld [vmem:[%s166 + $0x88] sm:$0xff]
      %v191 = vld [vmem:[%s166 + $0x90] sm:$0xff]
      %v192 = vld [vmem:[%s166 + $0x98] sm:$0xff]
      %v193 = vld [vmem:[%s166 + $0xa0] sm:$0xff]
      %v194 = vld [vmem:[%s166 + $0xa8] sm:$0xff]
      %v195 = vld [vmem:[%s166 + $0xb0] sm:$0xff]
      %v196 = vld [vmem:[%s166 + $0xb8] sm:$0xff]
      %v197 = vld [vmem:[%s166 + $0xc0] sm:$0xff]
      %v198 = vld [vmem:[%s166 + $0xc8] sm:$0xff]
      %v199 = vld [vmem:[%s166 + $0xd0] sm:$0xff]
      %v200 = vld [vmem:[%s166 + $0xd8] sm:$0xff]
      %v201 = vld [vmem:[%s166 + $0xe0] sm:$0xff]
      %v202 = vld [vmem:[%s166 + $0xe8] sm:$0xff]
      %v203 = vld [vmem:[%s166 + $0xf0] sm:$0xff]
      %v204 = vld [vmem:[%s166 + $0xf8] sm:$0xff]
      %v205 = vld [vmem:[%s166 + $0x100] sm:$0xff]
      %v206 = vld [vmem:[%s166 + $0x108] sm:$0xff]
      %v207 = vld [vmem:[%s166 + $0x110] sm:$0xff]
      %v208 = vld [vmem:[%s166 + $0x118] sm:$0xff]
      %v209 = vld [vmem:[%s166 + $0x120] sm:$0xff]
      %v210 = vld [vmem:[%s166 + $0x128] sm:$0xff]
      %v211 = vld [vmem:[%s166 + $0x130] sm:$0xff]
      %v212 = vld [vmem:[%s166 + $0x138] sm:$0xff]
      %v213 = vld [vmem:[%s166 + $0x140] sm:$0xff]
      %v214 = vld [vmem:[%s166 + $0x148] sm:$0xff]
      %v215 = vld [vmem:[%s166 + $0x150] sm:$0xff]
      %v216 = vld [vmem:[%s166 + $0x158] sm:$0xff]
      %v217 = vld [vmem:[%s166 + $0x160] sm:$0xff]
      %v218 = vld [vmem:[%s166 + $0x168] sm:$0xff]
      %v219 = vld [vmem:[%s166 + $0x170] sm:$0xff]
      %v220 = vld [vmem:[%s166 + $0x178] sm:$0xff]
      %v221 = vld [vmem:[%s166 + $0x180] sm:$0xff]
      %v222 = vld [vmem:[%s166 + $0x188] sm:$0xff]
      %v223 = vld [vmem:[%s166 + $0x190] sm:$0xff]
      %v224 = vld [vmem:[%s166 + $0x198] sm:$0xff]
      %v225 = vld [vmem:[%s166 + $0x1a0] sm:$0xff]
      %v226 = vld [vmem:[%s166 + $0x1a8] sm:$0xff]
      %v227 = vld [vmem:[%s166 + $0x1b0] sm:$0xff]
      %v228 = vld [vmem:[%s166 + $0x1b8] sm:$0xff]
      %v229 = vld [vmem:[%s166 + $0x1c0] sm:$0xff]
      %v230 = vld [vmem:[%s166 + $0x1c8] sm:$0xff]
      %v231 = vld [vmem:[%s166 + $0x1d0] sm:$0xff]
      %v232 = vld [vmem:[%s166 + $0x1d8] sm:$0xff]
      %v233 = vld [vmem:[%s166 + $0x1e0] sm:$0xff]
      %v234 = vld [vmem:[%s166 + $0x1e8] sm:$0xff]
      %v235 = vld [vmem:[%s166 + $0x1f0] sm:$0xff]
      %v236 = vld [vmem:[%s166 + $0x1f8] sm:$0xff]
      %v237 = vld [vmem:[%s166 + $0x200] sm:$0xff]
      %v238 = vld [vmem:[%s166 + $0x208] sm:$0xff]
      %v239 = vld [vmem:[%s166 + $0x210] sm:$0xff]
      %v240 = vld [vmem:[%s166 + $0x218] sm:$0xff]
      %v241 = vld [vmem:[%s166 + $0x220] sm:$0xff]
      %v242 = vld [vmem:[%s166 + $0x228] sm:$0xff]
      %v243 = vld [vmem:[%s166 + $0x230] sm:$0xff]
      %v244 = vld [vmem:[%s166 + $0x238] sm:$0xff]
      %v245 = vld [vmem:[%s166 + $0x240] sm:$0xff]
      %v246 = vld [vmem:[%s166 + $0x248] sm:$0xff]
      %v247 = vld [vmem:[%s166 + $0x250] sm:$0xff]
      %v248 = vld [vmem:[%s166 + $0x258] sm:$0xff]
      %v249 = vld [vmem:[%s166 + $0x260] sm:$0xff]
      %v250 = vld [vmem:[%s166 + $0x268] sm:$0xff]
      %v251 = vld [vmem:[%s166 + $0x270] sm:$0xff]
      %v252 = vld [vmem:[%s166 + $0x278] sm:$0xff]
      %v253 = vld [vmem:[%s166 + $0x280] sm:$0xff]
      %v254 = vld [vmem:[%s166 + $0x288] sm:$0xff]
      %v255 = vld [vmem:[%s166 + $0x290] sm:$0xff]
      %v256 = vld [vmem:[%s166 + $0x298] sm:$0xff]
      %v257 = vld [vmem:[%s166 + $0x2a0] sm:$0xff]
      %v258 = vld [vmem:[%s166 + $0x2a8] sm:$0xff]
      %v259 = vld [vmem:[%s166 + $0x2b0] sm:$0xff]
      %v260 = vld [vmem:[%s166 + $0x2b8] sm:$0xff]
      %v261 = vld [vmem:[%s166 + $0x2c0] sm:$0xff]
      %v262 = vld [vmem:[%s166 + $0x2c8] sm:$0xff]
      %v263 = vld [vmem:[%s166 + $0x2d0] sm:$0xff]
      %v264 = vld [vmem:[%s166 + $0x2d8] sm:$0xff]
      %v265 = vld [vmem:[%s166 + $0x2e0] sm:$0xff]
      %v266 = vld [vmem:[%s166 + $0x2e8] sm:$0xff]
      %v267 = vld [vmem:[%s166 + $0x2f0] sm:$0xff]
      %v268 = vld [vmem:[%s166 + $0x2f8] sm:$0xff]
      %v269 = vld [vmem:[%s166 + $0x300] sm:$0xff]
      %v270 = vld [vmem:[%s166 + $0x308] sm:$0xff]
      %v271 = vld [vmem:[#allocation2] sm:$0x1]
      %273 = vset.pattern.permute.xlu0 0
      %274 = vperm.xlu0 %273, %v271
      %v275 = vpop.permute.xlu0 %274
      %v277 = vlaneseq
      %v278 = vshrl.u32 %v277, 7
      %v279 = vsub.s32 0, %v278
      %v280 = vrot.slane %v275, %v279
      %v283 = vunpack.c.l.s4 1966171168
      %v284 = vunpack.c.0.s8 %v283
      %v285 = vlaneseq
      %v286 = vshrl.u32 %v285, 7
      %v287 = vsub.s32 %v284, %v286
      %v288 = vrot.slane %v172, %v287
      %v289 = vcombine.high %v288, %v288
      %v291 = vunpack.c.l.s4 1966171168
      %v292 = vunpack.c.0.s8 %v291
      %v293 = vlaneseq
      %v294 = vshrl.u32 %v293, 7
      %v295 = vsub.s32 %v292, %v294
      %v296 = vrot.slane %v288, %v295
      %v298 = vunpack.c.l.s4 1966171168
      %v299 = vunpack.c.0.s8 %v298
      %v300 = vlaneseq
      %v301 = vshrl.u32 %v300, 7
      %v302 = vsub.s32 %v299, %v301
      %v303 = vrot.slane %v289, %v302
      %v304 = vcombine.high %v296, %v296
      %v305 = vcombine.high %v303, %v303
      %v407 = vunpack.c.l.b16 %v173
      %v408 = vunpack.c.h.b16 %v173
      %v409 = vunpack.c.l.b16 %v174
      %v410 = vunpack.c.h.b16 %v174
      %v411 = vunpack.c.l.b16 %v175
      %v412 = vunpack.c.h.b16 %v175
      %v413 = vunpack.c.l.b16 %v176
      %v414 = vunpack.c.h.b16 %v176
      %v415 = vunpack.c.l.b16 %v177
      %v416 = vunpack.c.h.b16 %v177
      %v417 = vunpack.c.l.b16 %v178
      %v418 = vunpack.c.h.b16 %v178
      %v419 = vunpack.c.l.b16 %v179
      %v420 = vunpack.c.h.b16 %v179
      %v421 = vunpack.c.l.b16 %v180
      %v422 = vunpack.c.h.b16 %v180
      %v423 = vunpack.c.l.b16 %v181
      %v424 = vunpack.c.h.b16 %v181
      %v425 = vunpack.c.l.b16 %v182
      %v426 = vunpack.c.h.b16 %v182
      %v427 = vunpack.c.l.b16 %v183
      %v428 = vunpack.c.h.b16 %v183
      %v429 = vunpack.c.l.b16 %v184
      %v430 = vunpack.c.h.b16 %v184
      %v431 = vunpack.c.l.b16 %v185
      %v432 = vunpack.c.h.b16 %v185
      %v433 = vunpack.c.l.b16 %v186
      %v434 = vunpack.c.h.b16 %v186
      %v435 = vunpack.c.l.b16 %v187
      %v436 = vunpack.c.h.b16 %v187
      %v437 = vunpack.c.l.b16 %v188
      %v438 = vunpack.c.h.b16 %v188
      %v439 = vunpack.c.l.b16 %v189
      %v440 = vunpack.c.h.b16 %v189
      %v441 = vunpack.c.l.b16 %v190
      %v442 = vunpack.c.h.b16 %v190
      %v443 = vunpack.c.l.b16 %v191
      %v444 = vunpack.c.h.b16 %v191
      %v445 = vunpack.c.l.b16 %v192
      %v446 = vunpack.c.h.b16 %v192
      %v447 = vunpack.c.l.b16 %v193
      %v448 = vunpack.c.h.b16 %v193
      %v449 = vunpack.c.l.b16 %v194
      %v450 = vunpack.c.h.b16 %v194
      %v451 = vunpack.c.l.b16 %v195
      %v452 = vunpack.c.h.b16 %v195
      %v453 = vunpack.c.l.b16 %v196
      %v454 = vunpack.c.h.b16 %v196
      %v455 = vunpack.c.l.b16 %v197
      %v456 = vunpack.c.h.b16 %v197
      %v457 = vunpack.c.l.b16 %v198
      %v458 = vunpack.c.h.b16 %v198
      %v459 = vunpack.c.l.b16 %v199
      %v460 = vunpack.c.h.b16 %v199
      %v461 = vunpack.c.l.b16 %v200
      %v462 = vunpack.c.h.b16 %v200
      %v463 = vunpack.c.l.b16 %v201
      %v464 = vunpack.c.h.b16 %v201
      %v465 = vunpack.c.l.b16 %v202
      %v466 = vunpack.c.h.b16 %v202
      %v467 = vunpack.c.l.b16 %v203
      %v468 = vunpack.c.h.b16 %v203
      %v469 = vunpack.c.l.b16 %v204
      %v470 = vunpack.c.h.b16 %v204
      %v471 = vunpack.c.l.b16 %v205
      %v472 = vunpack.c.h.b16 %v205
      %v473 = vunpack.c.l.b16 %v206
      %v474 = vunpack.c.h.b16 %v206
      %v475 = vunpack.c.l.b16 %v207
      %v476 = vunpack.c.h.b16 %v207
      %v477 = vunpack.c.l.b16 %v208
      %v478 = vunpack.c.h.b16 %v208
      %v479 = vunpack.c.l.b16 %v209
      %v480 = vunpack.c.h.b16 %v209
      %v481 = vunpack.c.l.b16 %v210
      %v482 = vunpack.c.h.b16 %v210
      %v483 = vunpack.c.l.b16 %v211
      %v484 = vunpack.c.h.b16 %v211
      %v485 = vunpack.c.l.b16 %v212
      %v486 = vunpack.c.h.b16 %v212
      %v487 = vunpack.c.l.b16 %v213
      %v488 = vunpack.c.h.b16 %v213
      %v489 = vunpack.c.l.b16 %v214
      %v490 = vunpack.c.h.b16 %v214
      %v491 = vunpack.c.l.b16 %v215
      %v492 = vunpack.c.h.b16 %v215
      %v493 = vunpack.c.l.b16 %v216
      %v494 = vunpack.c.h.b16 %v216
      %v495 = vunpack.c.l.b16 %v217
      %v496 = vunpack.c.h.b16 %v217
      %v497 = vunpack.c.l.b16 %v218
      %v498 = vunpack.c.h.b16 %v218
      %v499 = vunpack.c.l.b16 %v219
      %v500 = vunpack.c.h.b16 %v219
      %v501 = vunpack.c.l.b16 %v220
      %v502 = vunpack.c.h.b16 %v220
      %v503 = vunpack.c.l.b16 %v221
      %v504 = vunpack.c.h.b16 %v221
      %v505 = vunpack.c.l.b16 %v222
      %v506 = vunpack.c.h.b16 %v222
      %v507 = vunpack.c.l.b16 %v223
      %v508 = vunpack.c.h.b16 %v223
      %v509 = vunpack.c.l.b16 %v224
      %v510 = vunpack.c.h.b16 %v224
      %v511 = vunpack.c.l.b16 %v225
      %v512 = vunpack.c.h.b16 %v225
      %v513 = vunpack.c.l.b16 %v226
      %v514 = vunpack.c.h.b16 %v226
      %v515 = vunpack.c.l.b16 %v227
      %v516 = vunpack.c.h.b16 %v227
      %v517 = vunpack.c.l.b16 %v228
      %v518 = vunpack.c.h.b16 %v228
      %v519 = vunpack.c.l.b16 %v229
      %v520 = vunpack.c.h.b16 %v229
      %v521 = vunpack.c.l.b16 %v230
      %v522 = vunpack.c.h.b16 %v230
      %v523 = vunpack.c.l.b16 %v231
      %v524 = vunpack.c.h.b16 %v231
      %v525 = vunpack.c.l.b16 %v232
      %v526 = vunpack.c.h.b16 %v232
      %v527 = vunpack.c.l.b16 %v233
      %v528 = vunpack.c.h.b16 %v233
      %v529 = vunpack.c.l.b16 %v234
      %v530 = vunpack.c.h.b16 %v234
      %v531 = vunpack.c.l.b16 %v235
      %v532 = vunpack.c.h.b16 %v235
      %v533 = vunpack.c.l.b16 %v236
      %v534 = vunpack.c.h.b16 %v236
      %v535 = vunpack.c.l.b16 %v237
      %v536 = vunpack.c.h.b16 %v237
      %v537 = vunpack.c.l.b16 %v238
      %v538 = vunpack.c.h.b16 %v238
      %v539 = vunpack.c.l.b16 %v239
      %v540 = vunpack.c.h.b16 %v239
      %v541 = vunpack.c.l.b16 %v240
      %v542 = vunpack.c.h.b16 %v240
      %v543 = vunpack.c.l.b16 %v241
      %v544 = vunpack.c.h.b16 %v241
      %v545 = vunpack.c.l.b16 %v242
      %v546 = vunpack.c.h.b16 %v242
      %v547 = vunpack.c.l.b16 %v243
      %v548 = vunpack.c.h.b16 %v243
      %v549 = vunpack.c.l.b16 %v244
      %v550 = vunpack.c.h.b16 %v244
      %v551 = vunpack.c.l.b16 %v245
      %v552 = vunpack.c.h.b16 %v245
      %v553 = vunpack.c.l.b16 %v246
      %v554 = vunpack.c.h.b16 %v246
      %v555 = vunpack.c.l.b16 %v247
      %v556 = vunpack.c.h.b16 %v247
      %v557 = vunpack.c.l.b16 %v248
      %v558 = vunpack.c.h.b16 %v248
      %v559 = vunpack.c.l.b16 %v249
      %v560 = vunpack.c.h.b16 %v249
      %v561 = vunpack.c.l.b16 %v250
      %v562 = vunpack.c.h.b16 %v250
      %v563 = vunpack.c.l.b16 %v251
      %v564 = vunpack.c.h.b16 %v251
      %v565 = vunpack.c.l.b16 %v252
      %v566 = vunpack.c.h.b16 %v252
      %v567 = vunpack.c.l.b16 %v253
      %v568 = vunpack.c.h.b16 %v253
      %v569 = vunpack.c.l.b16 %v254
      %v570 = vunpack.c.h.b16 %v254
      %v571 = vunpack.c.l.b16 %v255
      %v572 = vunpack.c.h.b16 %v255
      %v573 = vunpack.c.l.b16 %v256
      %v574 = vunpack.c.h.b16 %v256
      %v575 = vunpack.c.l.b16 %v257
      %v576 = vunpack.c.h.b16 %v257
      %v577 = vunpack.c.l.b16 %v258
      %v578 = vunpack.c.h.b16 %v258
      %v579 = vunpack.c.l.b16 %v259
      %v580 = vunpack.c.h.b16 %v259
      %v581 = vunpack.c.l.b16 %v260
      %v582 = vunpack.c.h.b16 %v260
      %v583 = vunpack.c.l.b16 %v261
      %v584 = vunpack.c.h.b16 %v261
      %v585 = vunpack.c.l.b16 %v262
      %v586 = vunpack.c.h.b16 %v262
      %v587 = vunpack.c.l.b16 %v263
      %v588 = vunpack.c.h.b16 %v263
      %v589 = vunpack.c.l.b16 %v264
      %v590 = vunpack.c.h.b16 %v264
      %v591 = vunpack.c.l.b16 %v265
      %v592 = vunpack.c.h.b16 %v265
      %v593 = vunpack.c.l.b16 %v266
      %v594 = vunpack.c.h.b16 %v266
      %v595 = vunpack.c.l.b16 %v267
      %v596 = vunpack.c.h.b16 %v267
      %v597 = vunpack.c.l.b16 %v268
      %v598 = vunpack.c.h.b16 %v268
      %v599 = vunpack.c.l.b16 %v269
      %v600 = vunpack.c.h.b16 %v269
      %v601 = vunpack.c.l.b16 %v270
      %v602 = vunpack.c.h.b16 %v270
      %v603 = vpack.c.b16 %v411, %v407
      %v604 = vpack.c.b16 %v412, %v408
      %v605 = vpack.c.b16 %v413, %v409
      %v606 = vpack.c.b16 %v414, %v410
      %v607 = vpack.c.b16 %v419, %v415
      %v608 = vpack.c.b16 %v420, %v416
      %v609 = vpack.c.b16 %v421, %v417
      %v610 = vpack.c.b16 %v422, %v418
      %v611 = vpack.c.b16 %v427, %v423
      %v612 = vpack.c.b16 %v428, %v424
      %v613 = vpack.c.b16 %v429, %v425
      %v614 = vpack.c.b16 %v430, %v426
      %v615 = vpack.c.b16 %v435, %v431
      %v616 = vpack.c.b16 %v436, %v432
      %v617 = vpack.c.b16 %v437, %v433
      %v618 = vpack.c.b16 %v438, %v434
      %v619 = vpack.c.b16 %v443, %v439
      %v620 = vpack.c.b16 %v444, %v440
      %v621 = vpack.c.b16 %v445, %v441
      %v622 = vpack.c.b16 %v446, %v442
      %v623 = vpack.c.b16 %v451, %v447
      %v624 = vpack.c.b16 %v452, %v448
      %v625 = vpack.c.b16 %v453, %v449
      %v626 = vpack.c.b16 %v454, %v450
      %v627 = vpack.c.b16 %v459, %v455
      %v628 = vpack.c.b16 %v460, %v456
      %v629 = vpack.c.b16 %v461, %v457
      %v630 = vpack.c.b16 %v462, %v458
      %v631 = vpack.c.b16 %v467, %v463
      %v632 = vpack.c.b16 %v468, %v464
      %v633 = vpack.c.b16 %v469, %v465
      %v634 = vpack.c.b16 %v470, %v466
      %v635 = vpack.c.b16 %v475, %v471
      %v636 = vpack.c.b16 %v476, %v472
      %v637 = vpack.c.b16 %v477, %v473
      %v638 = vpack.c.b16 %v478, %v474
      %v639 = vpack.c.b16 %v483, %v479
      %v640 = vpack.c.b16 %v484, %v480
      %v641 = vpack.c.b16 %v485, %v481
      %v642 = vpack.c.b16 %v486, %v482
      %v643 = vpack.c.b16 %v491, %v487
      %v644 = vpack.c.b16 %v492, %v488
      %v645 = vpack.c.b16 %v493, %v489
      %v646 = vpack.c.b16 %v494, %v490
      %v647 = vpack.c.b16 %v499, %v495
      %v648 = vpack.c.b16 %v500, %v496
      %v649 = vpack.c.b16 %v501, %v497
      %v650 = vpack.c.b16 %v502, %v498
      %v651 = vpack.c.b16 %v507, %v503
      %v652 = vpack.c.b16 %v508, %v504
      %v653 = vpack.c.b16 %v509, %v505
      %v654 = vpack.c.b16 %v510, %v506
      %v655 = vpack.c.b16 %v515, %v511
      %v656 = vpack.c.b16 %v516, %v512
      %v657 = vpack.c.b16 %v517, %v513
      %v658 = vpack.c.b16 %v518, %v514
      %v659 = vpack.c.b16 %v523, %v519
      %v660 = vpack.c.b16 %v524, %v520
      %v661 = vpack.c.b16 %v525, %v521
      %v662 = vpack.c.b16 %v526, %v522
      %v663 = vpack.c.b16 %v531, %v527
      %v664 = vpack.c.b16 %v532, %v528
      %v665 = vpack.c.b16 %v533, %v529
      %v666 = vpack.c.b16 %v534, %v530
      %v667 = vpack.c.b16 %v539, %v535
      %v668 = vpack.c.b16 %v540, %v536
      %v669 = vpack.c.b16 %v541, %v537
      %v670 = vpack.c.b16 %v542, %v538
      %v671 = vpack.c.b16 %v547, %v543
      %v672 = vpack.c.b16 %v548, %v544
      %v673 = vpack.c.b16 %v549, %v545
      %v674 = vpack.c.b16 %v550, %v546
      %v675 = vpack.c.b16 %v555, %v551
      %v676 = vpack.c.b16 %v556, %v552
      %v677 = vpack.c.b16 %v557, %v553
      %v678 = vpack.c.b16 %v558, %v554
      %v679 = vpack.c.b16 %v563, %v559
      %v680 = vpack.c.b16 %v564, %v560
      %v681 = vpack.c.b16 %v565, %v561
      %v682 = vpack.c.b16 %v566, %v562
      %v683 = vpack.c.b16 %v571, %v567
      %v684 = vpack.c.b16 %v572, %v568
      %v685 = vpack.c.b16 %v573, %v569
      %v686 = vpack.c.b16 %v574, %v570
      %v687 = vpack.c.b16 %v579, %v575
      %v688 = vpack.c.b16 %v580, %v576
      %v689 = vpack.c.b16 %v581, %v577
      %v690 = vpack.c.b16 %v582, %v578
      %v691 = vpack.c.b16 %v587, %v583
      %v692 = vpack.c.b16 %v588, %v584
      %v693 = vpack.c.b16 %v589, %v585
      %v694 = vpack.c.b16 %v590, %v586
      %v695 = vpack.c.b16 %v595, %v591
      %v696 = vpack.c.b16 %v596, %v592
      %v697 = vpack.c.b16 %v597, %v593
      %v698 = vpack.c.b16 %v598, %v594
      %v699 = vpack.c.b16 %v599, %v599
      %v700 = vpack.c.b16 %v600, %v600
      %v701 = vpack.c.b16 %v601, %v601
      %v702 = vpack.c.b16 %v602, %v602
      %vm799 = vcmask 64512
      %v801 = vsel %vm799, %v305, 0
      %vm803 = vcmask 1043456
      %v805 = vsel %vm803, %v699, 0
      %v808 = vsel %vm803, %v700, 0
      %v811 = vsel %vm803, %v701, 0
      %v814 = vsel %vm803, %v702, 0
      %816 = vmatprep.subr.bf16.mxu0 %v604
      %817 = vmatpush1.bf16.msra.mxu0 %v603
      %818 = vmatprep.subr.bf16.mxu0 %v608
      %819 = vmatpush1.bf16.msra.mxu0 %v607
      %820 = vmatprep.subr.bf16.mxu0 %v612
      %821 = vmatpush1.bf16.msra.mxu0 %v611
      %822 = vmatprep.subr.bf16.mxu0 %v616
      %823 = vmatpush1.bf16.msra.mxu0 %v615
      %824 = vmatprep.subr.bf16.mxu0 %v620
      %825 = vmatpush1.bf16.msra.mxu0 %v619
      %826 = vmatprep.subr.bf16.mxu0 %v624
      %827 = vmatpush1.bf16.msra.mxu0 %v623
      %828 = vmatprep.subr.bf16.mxu0 %v628
      %829 = vmatpush1.bf16.msra.mxu0 %v627
      %830 = vmatprep.subr.bf16.mxu0 %v632
      %831 = vmatpush1.bf16.msra.mxu0 %v631
      %832 = vmatprep.subr.bf16.mxu0 %v636
      %833 = vmatpush1.bf16.msra.mxu0 %v635
      %834 = vmatprep.subr.bf16.mxu0 %v640
      %835 = vmatpush1.bf16.msra.mxu0 %v639
      %836 = vmatprep.subr.bf16.mxu0 %v644
      %837 = vmatpush1.bf16.msra.mxu0 %v643
      %838 = vmatprep.subr.bf16.mxu0 %v648
      %839 = vmatpush1.bf16.msra.mxu0 %v647
      %840 = vmatprep.subr.bf16.mxu0 %v652
      %841 = vmatpush1.bf16.msra.mxu0 %v651
      %842 = vmatprep.subr.bf16.mxu0 %v656
      %843 = vmatpush1.bf16.msra.mxu0 %v655
      %844 = vmatprep.subr.bf16.mxu0 %v660
      %845 = vmatpush1.bf16.msra.mxu0 %v659
      %846 = vmatprep.subr.bf16.mxu0 %v664
      %847 = vmatpush1.bf16.msra.mxu0 %v663
      %848 = vmatprep.mubr.bf16.mxu0 %v303
      %849 = vmatmul.mubr.bf16.gmra.mrb[0].mxu0 %v296
      %v850 = vpop.f32.mrb[0].mxu0
      %v851 = vadd.f32 %v280, %v850
      %v852 = vpop.f32.mrb[0].mxu0
      %v853 = vadd.f32 %v280, %v852
      %v854 = vpop.f32.mrb[0].mxu0
      %v855 = vpop.f32.mrb[0].mxu0
      %856 = vdwg.mxu0
      %857 = vmatprep.subr.bf16.mxu0 %v668
      %858 = vmatpush1.bf16.msra.mxu0 %v667
      %859 = vmatprep.subr.bf16.mxu0 %v672
      %860 = vmatpush1.bf16.msra.mxu0 %v671
      %861 = vmatprep.subr.bf16.mxu0 %v676
      %862 = vmatpush1.bf16.msra.mxu0 %v675
      %863 = vmatprep.subr.bf16.mxu0 %v680
      %864 = vmatpush1.bf16.msra.mxu0 %v679
      %865 = vmatprep.subr.bf16.mxu0 %v684
      %866 = vmatpush1.bf16.msra.mxu0 %v683
      %867 = vmatprep.subr.bf16.mxu0 %v688
      %868 = vmatpush1.bf16.msra.mxu0 %v687
      %869 = vmatprep.subr.bf16.mxu0 %v692
      %870 = vmatpush1.bf16.msra.mxu0 %v691
      %871 = vmatprep.subr.bf16.mxu0 %v696
      %872 = vmatpush1.bf16.msra.mxu0 %v695
      %873 = vmatprep.subr.bf16.mxu0 %v808
      %874 = vmatpush1.bf16.msra.mxu0 %v805
      %875 = vmatprep.subr.bf16.mxu0 0
      %876 = vmatpush1.bf16.msra.mxu0 0
      %877 = vmatprep.subr.bf16.mxu0 0
      %878 = vmatpush1.bf16.msra.mxu0 0
      %879 = vmatprep.subr.bf16.mxu0 0
      %880 = vmatpush1.bf16.msra.mxu0 0
      %881 = vmatprep.subr.bf16.mxu0 0
      %882 = vmatpush1.bf16.msra.mxu0 0
      %883 = vmatprep.subr.bf16.mxu0 0
      %884 = vmatpush1.bf16.msra.mxu0 0
      %885 = vmatprep.subr.bf16.mxu0 0
      %886 = vmatpush1.bf16.msra.mxu0 0
      %887 = vmatprep.subr.bf16.mxu0 0
      %888 = vmatpush1.bf16.msra.mxu0 0
      %889 = vmatprep.mubr.bf16.mxu0 %v801
      %890 = vmatmul.mubr.bf16.gmra.mrb[0].mxu0 %v304
      %v891 = vpop.f32.mrb[0].mxu0
      %v892 = vadd.f32 %v851, %v891
      %v893 = vpop.f32.mrb[0].mxu0
      %v894 = vadd.f32 %v853, %v893
      %v895 = vpop.f32.mrb[0].mxu0
      %v896 = vpop.f32.mrb[0].mxu0
      %897 = vdwg.mxu0
      %898 = vmatprep.subr.bf16.mxu0 %v606
      %899 = vmatpush1.bf16.msra.mxu0 %v605
      %900 = vmatprep.subr.bf16.mxu0 %v610
      %901 = vmatpush1.bf16.msra.mxu0 %v609
      %902 = vmatprep.subr.bf16.mxu0 %v614
      %903 = vmatpush1.bf16.msra.mxu0 %v613
      %904 = vmatprep.subr.bf16.mxu0 %v618
      %905 = vmatpush1.bf16.msra.mxu0 %v617
      %906 = vmatprep.subr.bf16.mxu0 %v622
      %907 = vmatpush1.bf16.msra.mxu0 %v621
      %908 = vmatprep.subr.bf16.mxu0 %v626
      %909 = vmatpush1.bf16.msra.mxu0 %v625
      %910 = vmatprep.subr.bf16.mxu0 %v630
      %911 = vmatpush1.bf16.msra.mxu0 %v629
      %912 = vmatprep.subr.bf16.mxu0 %v634
      %913 = vmatpush1.bf16.msra.mxu0 %v633
      %914 = vmatprep.subr.bf16.mxu0 %v638
      %915 = vmatpush1.bf16.msra.mxu0 %v637
      %916 = vmatprep.subr.bf16.mxu0 %v642
      %917 = vmatpush1.bf16.msra.mxu0 %v641
      %918 = vmatprep.subr.bf16.mxu0 %v646
      %919 = vmatpush1.bf16.msra.mxu0 %v645
      %920 = vmatprep.subr.bf16.mxu0 %v650
      %921 = vmatpush1.bf16.msra.mxu0 %v649
      %922 = vmatprep.subr.bf16.mxu0 %v654
      %923 = vmatpush1.bf16.msra.mxu0 %v653
      %924 = vmatprep.subr.bf16.mxu0 %v658
      %925 = vmatpush1.bf16.msra.mxu0 %v657
      %926 = vmatprep.subr.bf16.mxu0 %v662
      %927 = vmatpush1.bf16.msra.mxu0 %v661
      %928 = vmatprep.subr.bf16.mxu0 %v666
      %929 = vmatpush1.bf16.msra.mxu0 %v665
      %930 = vmatprep.mubr.bf16.mxu0 %v303
      %931 = vmatmul.mubr.bf16.gmra.mrb[0].mxu0 %v296
      %v932 = vpop.f32.mrb[0].mxu0
      %v933 = vadd.f32 %v280, %v932
      %v934 = vpop.f32.mrb[0].mxu0
      %v935 = vadd.f32 %v280, %v934
      %v936 = vpop.f32.mrb[0].mxu0
      %v937 = vpop.f32.mrb[0].mxu0
      %938 = vdwg.mxu0
      %939 = vmatprep.subr.bf16.mxu0 %v670
      %940 = vmatpush1.bf16.msra.mxu0 %v669
      %941 = vmatprep.subr.bf16.mxu0 %v674
      %942 = vmatpush1.bf16.msra.mxu0 %v673
      %943 = vmatprep.subr.bf16.mxu0 %v678
      %944 = vmatpush1.bf16.msra.mxu0 %v677
      %945 = vmatprep.subr.bf16.mxu0 %v682
      %946 = vmatpush1.bf16.msra.mxu0 %v681
      %947 = vmatprep.subr.bf16.mxu0 %v686
      %948 = vmatpush1.bf16.msra.mxu0 %v685
      %949 = vmatprep.subr.bf16.mxu0 %v690
      %950 = vmatpush1.bf16.msra.mxu0 %v689
      %951 = vmatprep.subr.bf16.mxu0 %v694
      %952 = vmatpush1.bf16.msra.mxu0 %v693
      %953 = vmatprep.subr.bf16.mxu0 %v698
      %954 = vmatpush1.bf16.msra.mxu0 %v697
      %955 = vmatprep.subr.bf16.mxu0 %v814
      %956 = vmatpush1.bf16.msra.mxu0 %v811
      %957 = vmatprep.subr.bf16.mxu0 0
      %958 = vmatpush1.bf16.msra.mxu0 0
      %959 = vmatprep.subr.bf16.mxu0 0
      %960 = vmatpush1.bf16.msra.mxu0 0
      %961 = vmatprep.subr.bf16.mxu0 0
      %962 = vmatpush1.bf16.msra.mxu0 0
      %963 = vmatprep.subr.bf16.mxu0 0
      %964 = vmatpush1.bf16.msra.mxu0 0
      %965 = vmatprep.subr.bf16.mxu0 0
      %966 = vmatpush1.bf16.msra.mxu0 0
      %967 = vmatprep.subr.bf16.mxu0 0
      %968 = vmatpush1.bf16.msra.mxu0 0
      %969 = vmatprep.subr.bf16.mxu0 0
      %970 = vmatpush1.bf16.msra.mxu0 0
      %971 = vmatprep.mubr.bf16.mxu0 %v801
      %972 = vmatmul.mubr.bf16.gmra.mrb[0].mxu0 %v304
      %v973 = vpop.f32.mrb[0].mxu0
      %v974 = vadd.f32 %v933, %v973
      %v975 = vpop.f32.mrb[0].mxu0
      %v976 = vadd.f32 %v935, %v975
      %v977 = vpop.f32.mrb[0].mxu0
      %v978 = vpop.f32.mrb[0].mxu0
      %979 = vdwg.mxu0
      %v980 = vtanh.pop %v892
      %v981 = vtanh.pop %v894
      %v982 = vtanh.pop %v974
      %v983 = vtanh.pop %v976
      %v988 = vcombine.low %v980, %v981
      %v989 = vcombine.low %v982, %v983
      %v991 = vunpack.c.l.s4 1966171168
      %v992 = vunpack.c.0.s8 %v991
      %v993 = vlaneseq
      %v994 = vshrl.u32 %v993, 7
      %v995 = vsub.s32 %v992, %v994
      %v996 = vrot.slane %v988, %v995
      %v998 = vunpack.c.l.s4 1966171168
      %v999 = vunpack.c.0.s8 %v998
      %v1000 = vlaneseq
      %v1001 = vshrl.u32 %v1000, 7
      %v1002 = vsub.s32 %v999, %v1001
      %v1003 = vrot.slane %v989, %v1002
      %v1004 = vcombine.low %v996, %v1003
      %v1006 = vunpack.c.l.s4 1966171168
      %v1007 = vunpack.c.0.s8 %v1006
      %v1008 = vlaneseq
      %v1009 = vshrl.u32 %v1008, 7
      %v1010 = vsub.s32 %v1007, %v1009
      %v1011 = vrot.slane %v1004, %v1010
      %v1013 = vlaneseq
      %vm1014 = vcmp.ge.s32.totalorder %v1013, 0
      %vm1015 = vcmp.lt.s32.totalorder %v1013, 512
      %vm1016 = vmand %vm1014, %vm1015
      %1017 = vst.msk [vmem:[%s170] sm:$0xf] %vm1016, %v1011
      %p1018 = scmp.lt.s32.totalorder %s16, 1
      %s1019 = scalar_select %p1018, %s16, 1
      %s1020 = smul.addr %s1019, 4
      %s1021 = scalar_lea.vmem %s3, %s1020
      // Predicated region
      $region33: #{decoder_forward.11} parent=31 // pred_check
        %p1022 = pneg %p102
      $region34: #{decoder_forward.11} parent=31 // pred_check_branch
        %1024 = sbr.rel (%p1022) target = $region36
      $region35: #{decoder_forward.11} parent=31 // pred_region
        _
      $region36: #{decoder_forward.11} parent=31 // pred_fallthru
        _
    $region32: #{decoder_forward.11} parent=5 // pred_fallthru
      _
    %p1025 = scmp.le.s32.totalorder 2, %s11
    // Predicated region
    $region37: #{decoder_forward.11} parent=5 // pred_check
      %p1026 = pneg %p1025
    $region38: #{decoder_forward.11} parent=5 // pred_check_branch
      %1028 = sbr.rel (%p1026) target = $region40
    $region39: #{decoder_forward.11} parent=5 // pred_region
      %s1029 = ssub.s32 %s11, 2
      // Predicated region
      $region41: #{decoder_forward.11} parent=39 // pred_check
        %p1030 = pneg %p108
      $region42: #{decoder_forward.11} parent=39 // pred_check_branch
        %1032 = sbr.rel (%p1030) target = $region44
      $region43: #{decoder_forward.11} parent=39 // pred_region
        %p1033 = scmp.lt.s32.totalorder %s17, 1
        %s1034 = scalar_select %p1033, %s17, 1
        %s1035 = smul.addr %s1034, 4
        %s1036 = scalar_lea.vmem %s3, %s1035
      $region44: #{decoder_forward.11} parent=39 // pred_fallthru
        _
    $region40: #{decoder_forward.11} parent=5 // pred_fallthru
      _
  $region6: #{decoder_forward.11} parent=0 // loop_footer
    %s15 = sadd.s32 1, %s11
  $region7: #{decoder_forward.11} parent=0 // loop_footer_branch
    %10 = sbr.rel target = $region3
  $region8: #{decoder_forward.11} parent=0 // loop_exit
    _

</llo_original>
